<compile_context>
chip_gen: v5e
topology: v5e:2x2
jax: 0.10.0
libtpu: 0.0.40
codegen_flags: <defaults>
</compile_context>

<pallas_src>
import functools
import math

import jax
import jax.numpy as jnp
from jax.experimental import pallas as pl
from jax.experimental.pallas import tpu as pltpu


# --------------------------------------------------------------------------
# Tiling configuration
# --------------------------------------------------------------------------
MM_TM = 512       # matmul row tile over M = B*S
ATTN_TQ = 256     # attention query-row tile


def _default_vmem_limit():
    """~3/4 of physical VMEM (96 MiB on v5e/v6e, 48 MiB on v7x)."""
    try:
        cap = pltpu.get_tpu_info().vmem_capacity_bytes
        return int(min(cap * 3 // 4, 100 * 1024 * 1024))
    except Exception:
        return 32 * 1024 * 1024  # conservative: fits every generation


VMEM_LIMIT_BYTES = _default_vmem_limit()


def _mosaic(dim_sem):
    return pltpu.CompilerParams(
        dimension_semantics=dim_sem, vmem_limit_bytes=VMEM_LIMIT_BYTES
    )


def _row_tile(dim, target):
    """Largest divisor of `dim` that is <= target and a sublane multiple (8).

    Guards the v7x 64 MiB VMEM: instead of silently falling back to the full
    dim, pick the biggest legal divisor.  The whole-dim fallback only triggers
    for pathological sizes (no divisor that is a multiple of 8).
    """
    # TODO(synk): for pathological B*S (no multiple-of-8 divisor) pad rows in
    # the wrapper instead of taking the whole-dim fallback.
    for cand in range(min(dim, target), 7, -1):
        if dim % cand == 0 and cand % 8 == 0:
            return cand
    return dim


# --------------------------------------------------------------------------
# Pallas kernels
# --------------------------------------------------------------------------
def _linear_kernel(x_ref, w_ref, b_ref, o_ref, *, activation):
    """One-shot matmul (full K, full N) + bias (+ GELU)."""
    y = jnp.dot(x_ref[...], w_ref[...], preferred_element_type=jnp.float32)
    y = y + b_ref[...]                      # f32 epilogue (v5e VPU has no bf16)
    if activation == "gelu":
        # TODO(synk): tanh-approx GELU; pytorch_pretrained_bert uses exact erf GELU.
        y = 0.5 * y * (1.0 + jnp.tanh(
            0.7978845608028654 * (y + 0.044715 * y * y * y)))
    o_ref[...] = y.astype(o_ref.dtype)


def pallas_linear(x, w, b, activation=None, out_dtype=jnp.bfloat16):
    """x: (E, M, K) ; w: (E, K, N) ; b: (E, N)  ->  (E, M, N).

    Grid is (E, M/tm); the full (K, N) weight block has a constant block index
    within a tower, so it is DMA'd once and stays resident in VMEM.
    """
    E, M, K = x.shape
    N = w.shape[-1]
    tm = _row_tile(M, MM_TM)
    x = x.astype(jnp.bfloat16)
    w = w.astype(jnp.bfloat16)
    b = b.astype(jnp.float32).reshape(E, 1, N)
    return pl.pallas_call(
        functools.partial(_linear_kernel, activation=activation),
        out_shape=jax.ShapeDtypeStruct((E, M, N), out_dtype),
        grid_spec=pltpu.PrefetchScalarGridSpec(
            num_scalar_prefetch=0,
            grid=(E, M // tm),
            in_specs=[
                pl.BlockSpec((None, tm, K), lambda e, i: (e, i, 0)),
                pl.BlockSpec((None, K, N), lambda e, i: (e, 0, 0)),
                pl.BlockSpec((None, 1, N), lambda e, i: (e, 0, 0)),
            ],
            out_specs=pl.BlockSpec((None, tm, N), lambda e, i: (e, i, 0)),
        ),
        compiler_params=_mosaic(("parallel", "parallel")),
    )(x, w, b)


def _linear_res_ln_kernel(x_ref, w_ref, b_ref, res_ref, g_ref, bt_ref,
                          o_ref, *, eps):
    """One-shot matmul (full K, full N=H) + bias + residual + LayerNorm."""
    y = jnp.dot(x_ref[...], w_ref[...], preferred_element_type=jnp.float32)
    y = y + b_ref[...] + res_ref[...].astype(jnp.float32)
    mu = jnp.mean(y, axis=-1, keepdims=True)
    var = jnp.mean(jnp.square(y - mu), axis=-1, keepdims=True)
    o_ref[...] = (
        (y - mu) * jax.lax.rsqrt(var + eps) * g_ref[...] + bt_ref[...]
    ).astype(o_ref.dtype)


def pallas_linear_res_ln(x, w, b, res, gamma, beta, eps=1e-12,
                         out_dtype=jnp.bfloat16):
    """x: (E, M, K); w: (E, K, H); res: (E, M, H) -> LN(x@w + b + res)."""
    E, M, K = x.shape
    N = w.shape[-1]
    tm = _row_tile(M, MM_TM)
    x = x.astype(jnp.bfloat16)
    w = w.astype(jnp.bfloat16)
    res = res.astype(jnp.bfloat16)
    b = b.astype(jnp.float32).reshape(E, 1, N)
    gamma = gamma.astype(jnp.float32).reshape(E, 1, N)
    beta = beta.astype(jnp.float32).reshape(E, 1, N)
    return pl.pallas_call(
        functools.partial(_linear_res_ln_kernel, eps=eps),
        out_shape=jax.ShapeDtypeStruct((E, M, N), out_dtype),
        grid_spec=pltpu.PrefetchScalarGridSpec(
            num_scalar_prefetch=0,
            grid=(E, M // tm),
            in_specs=[
                pl.BlockSpec((None, tm, K), lambda e, i: (e, i, 0)),   # x
                pl.BlockSpec((None, K, N), lambda e, i: (e, 0, 0)),    # w (resident)
                pl.BlockSpec((None, 1, N), lambda e, i: (e, 0, 0)),    # bias
                pl.BlockSpec((None, tm, N), lambda e, i: (e, i, 0)),   # residual
                pl.BlockSpec((None, 1, N), lambda e, i: (e, 0, 0)),    # gamma
                pl.BlockSpec((None, 1, N), lambda e, i: (e, 0, 0)),    # beta
            ],
            out_specs=pl.BlockSpec((None, tm, N), lambda e, i: (e, i, 0)),
        ),
        compiler_params=_mosaic(("parallel", "parallel")),
    )(x, w, b, res, gamma, beta)


def _layernorm_kernel(x_ref, g_ref, b_ref, o_ref, *, eps):
    x = x_ref[...].astype(jnp.float32)
    mu = jnp.mean(x, axis=-1, keepdims=True)
    var = jnp.mean(jnp.square(x - mu), axis=-1, keepdims=True)
    o_ref[...] = (
        (x - mu) * jax.lax.rsqrt(var + eps) * g_ref[...] + b_ref[...]
    ).astype(o_ref.dtype)


def pallas_layernorm(x, gamma, beta, eps=1e-12, out_dtype=jnp.bfloat16):
    """Embedding LayerNorm over both towers: x (E, M, H) f32 -> (E, M, H) bf16."""
    E, M, H = x.shape
    tm = _row_tile(M, MM_TM)
    return pl.pallas_call(
        functools.partial(_layernorm_kernel, eps=eps),
        out_shape=jax.ShapeDtypeStruct((E, M, H), out_dtype),
        grid_spec=pltpu.PrefetchScalarGridSpec(
            num_scalar_prefetch=0,
            grid=(E, M // tm),
            in_specs=[
                pl.BlockSpec((None, tm, H), lambda e, i: (e, i, 0)),
                pl.BlockSpec((None, 1, H), lambda e, i: (e, 0, 0)),
                pl.BlockSpec((None, 1, H), lambda e, i: (e, 0, 0)),
            ],
            out_specs=pl.BlockSpec((None, tm, H), lambda e, i: (e, i, 0)),
        ),
        compiler_params=_mosaic(("parallel", "parallel")),
    )(x, gamma.astype(jnp.float32).reshape(E, 1, H),
      beta.astype(jnp.float32).reshape(E, 1, H))


def _attention_kernel(q_ref, kv_ref, m_ref, o_ref, *,
                      num_heads, head_dim, hidden, scale):
    """Multi-head attention for one (tower, batch, q-tile) block.

    q_ref:  (tq, 3H) bf16  -- QKV slab rows for this query tile (Q part used)
    kv_ref: (S,  3H) bf16  -- full-sequence QKV slab of this batch element
    m_ref:  (1, S)  f32    -- additive padding mask (shared by all heads)
    o_ref:  (tq, H)        -- lane-dense context output, already in (B*S, H) layout
    """
    mask = m_ref[...]                                    # (1, S) f32
    scale_b = jnp.asarray(scale, q_ref.dtype)
    ctx = []
    for h in range(num_heads):                           # static unroll over heads
        q = q_ref[:, pl.ds(h * head_dim, head_dim)] * scale_b          # (tq, dh) bf16
        k = kv_ref[:, pl.ds(hidden + h * head_dim, head_dim)]          # (S, dh)
        v = kv_ref[:, pl.ds(2 * hidden + h * head_dim, head_dim)]      # (S, dh)
        s = jax.lax.dot_general(
            q, k, (((1,), (1,)), ((), ())), preferred_element_type=jnp.float32
        )                                                              # (tq, S) f32
        s = s + mask
        s = s - jnp.max(s, axis=-1, keepdims=True)
        p = jnp.exp(s)
        denom = jnp.sum(p, axis=-1, keepdims=True)
        c = jnp.dot(p.astype(v.dtype), v, preferred_element_type=jnp.float32)
        ctx.append(c / denom)                            # exact divide (parity)
    # Single lane-dense (tq, H) store.
    o_ref[...] = jnp.concatenate(ctx, axis=-1).astype(o_ref.dtype)


def pallas_attention(qkv, mask3d, B, S, num_heads, out_dtype=jnp.bfloat16):
    """qkv: (E, B*S, 3H) bf16 ; mask3d: (B, 1, S) f32 -> (E, B*S, H)."""
    E, M, H3 = qkv.shape
    H = H3 // 3
    dh = H // num_heads
    tq = _row_tile(S, ATTN_TQ)
    qkv4 = qkv.reshape(E, B, S, H3)                      # free reshape (view)
    out = pl.pallas_call(
        functools.partial(_attention_kernel, num_heads=num_heads,
                          head_dim=dh, hidden=H, scale=1.0 / math.sqrt(dh)),
        out_shape=jax.ShapeDtypeStruct((E, B, S, H), out_dtype),
        grid_spec=pltpu.PrefetchScalarGridSpec(
            num_scalar_prefetch=0,
            grid=(E, B, S // tq),
            in_specs=[
                # query-tile rows of the QKV slab
                pl.BlockSpec((None, None, tq, H3), lambda e, b, qi: (e, b, qi, 0)),
                # full-sequence QKV slab (same array, full S): non-causal BERT
                pl.BlockSpec((None, None, S, H3), lambda e, b, qi: (e, b, 0, 0)),
                # one mask row per batch element, shared across towers/heads
                pl.BlockSpec((None, 1, S), lambda e, b, qi: (b, 0, 0)),
            ],
            out_specs=pl.BlockSpec((None, None, tq, H),
                                   lambda e, b, qi: (e, b, qi, 0)),
        ),
        compiler_params=_mosaic(("parallel", "parallel", "parallel")),
    )(qkv4, qkv4, mask3d)
    return out.reshape(E, M, H)                          # free reshape (view)


# --------------------------------------------------------------------------
# BERT forward (both towers at once, built from the Pallas kernels)
# --------------------------------------------------------------------------
def bert_encoder_layer(x, mask3d, lp, B, S, num_heads):
    # x: (E, B*S, H) bf16
    qkv = pallas_linear(x, lp["w_qkv"], lp["b_qkv"])              # (E, M, 3H)
    ctx = pallas_attention(qkv, mask3d, B, S, num_heads)          # (E, M, H)
    x = pallas_linear_res_ln(ctx, lp["wo"], lp["bo"], x,
                             lp["ln1_g"], lp["ln1_b"])
    inter = pallas_linear(x, lp["wi"], lp["bi"], activation="gelu")
    x = pallas_linear_res_ln(inter, lp["wf"], lp["bf"], x,
                             lp["ln2_g"], lp["ln2_b"])
    return x


def ensemble_bert_forward(tp, input_ids, token_type_ids, attention_mask, cfg):
    """tp: stacked tower params (leading dim E=2). Returns (E, B*S, H) bf16."""
    B, S = input_ids.shape
    H = cfg["hidden"]
    E = tp["word_emb"].shape[0]

    # Embedding gathers are plain-JAX glue (no clean Pallas equivalent).
    emb = (
        jnp.take(tp["word_emb"], input_ids, axis=1)                    # (E, B, S, H)
        + jnp.take(tp["pos_emb"], jnp.arange(S), axis=1)[:, None]      # (E, 1, S, H)
        + jnp.take(tp["type_emb"], token_type_ids, axis=1)             # (E, B, S, H)
    ).astype(jnp.float32)
    x = pallas_layernorm(emb.reshape(E, B * S, H),
                         tp["emb_ln_g"], tp["emb_ln_b"])

    # Extended attention mask: (1 - mask) * -10000, shared across heads/query.
    mask3d = ((1.0 - attention_mask.astype(jnp.float32)) * -10000.0
              ).reshape(B, 1, S)

    for lp in tp["layers"]:
        x = bert_encoder_layer(x, mask3d, lp, B, S, cfg["heads"])
    return x  # (E, B*S, H) bf16


def _ce_loss(logits, positions, ignore_index):
    """CrossEntropyLoss(ignore_index=ignore_index), reduction='mean'."""
    positions = jnp.clip(positions, 0, ignore_index)
    valid = positions != ignore_index
    safe = jnp.where(valid, positions, 0)
    logp = jax.nn.log_softmax(logits.astype(jnp.float32), axis=-1)
    nll = -jnp.take_along_axis(logp, safe[:, None], axis=-1)[:, 0]
    nll = jnp.where(valid, nll, 0.0)
    return jnp.sum(nll) / jnp.maximum(jnp.sum(valid.astype(jnp.float32)), 1.0)


def ensemble_forward(params, input_ids, token_type_ids=None, attention_mask=None,
                     start_positions=None, end_positions=None):
    B, S = input_ids.shape
    cfg = params["cfg"]
    if token_type_ids is None:
        token_type_ids = jnp.zeros_like(input_ids)
    if attention_mask is None:
        attention_mask = jnp.ones_like(input_ids)

    seq = ensemble_bert_forward(params["towers"], input_ids, token_type_ids,
                                attention_mask, cfg)                  # (2, B*S, H)
    seq = jnp.concatenate([seq[0], seq[1]], axis=-1).astype(jnp.float32)  # (B*S, 2H)

    # qa_outputs: Linear(2H, 2). N=2 is lane-sparse -- plain XLA is the right
    # tool here (padding to 128 lanes in a Pallas kernel would waste stores).
    logits = seq @ params["qa_w"].astype(jnp.float32) + params["qa_b"]
    logits = logits.reshape(B, S, 2)
    start_logits = logits[..., 0]
    end_logits = logits[..., 1]

    if start_positions is not None and end_positions is not None:
        start_positions = start_positions.reshape(-1)
        end_positions = end_positions.reshape(-1)
        ignored_index = S
        start_loss = _ce_loss(start_logits, start_positions, ignored_index)
        end_loss = _ce_loss(end_logits, end_positions, ignored_index)
        return (start_loss + end_loss) / 2.0
    return start_logits, end_logits


# --------------------------------------------------------------------------
# Deterministic parameter init (one tower); towers are stacked afterwards
# --------------------------------------------------------------------------
def init_bert_params(key, cfg):
    H, I = cfg["hidden"], cfg["intermediate"]
    V, T, P = cfg["vocab"], cfg["type_vocab"], cfg["max_pos"]
    L = cfg["num_layers"]

    def nxt():
        nonlocal key
        key, sub = jax.random.split(key)
        return sub

    def w(shape):
        return 0.02 * jax.random.normal(nxt(), shape, jnp.float32)

    params = dict(
        word_emb=w((V, H)),
        pos_emb=w((P, H)),
        type_emb=w((T, H)),
        emb_ln_g=jnp.ones((H,), jnp.float32),
        emb_ln_b=jnp.zeros((H,), jnp.float32),
        layers=[],
    )
    for _ in range(L):
        params["layers"].append(
            dict(
                w_qkv=w((H, 3 * H)), b_qkv=jnp.zeros((3 * H,), jnp.float32),
                wo=w((H, H)), bo=jnp.zeros((H,), jnp.float32),
                ln1_g=jnp.ones((H,), jnp.float32), ln1_b=jnp.zeros((H,), jnp.float32),
                wi=w((H, I)), bi=jnp.zeros((I,), jnp.float32),
                wf=w((I, H)), bf=jnp.zeros((H,), jnp.float32),
                ln2_g=jnp.ones((H,), jnp.float32), ln2_b=jnp.zeros((H,), jnp.float32),
            )
        )
    return params


def stack_towers(p1, p2):
    """Stack model_1 / model_2 params along a leading E=2 axis."""
    return jax.tree.map(lambda a, b: jnp.stack([a, b], axis=0), p1, p2)


# --------------------------------------------------------------------------
# Main
# --------------------------------------------------------------------------
if __name__ == "__main__":
    cfg = dict(
        hidden=32,
        intermediate=64,
        vocab=100,
        type_vocab=2,
        max_pos=64,
        num_layers=2,
        heads=2,
    )

    key = jax.random.PRNGKey(0)
    k1, k2, k3, kd = jax.random.split(key, 4)

    H = cfg["hidden"]
    params = dict(
        cfg=cfg,
        towers=stack_towers(init_bert_params(k1, cfg), init_bert_params(k2, cfg)),
        qa_w=0.02 * jax.random.normal(k3, (2 * H, 2), jnp.float32),
        qa_b=jnp.zeros((2,), jnp.float32),
    )

    B, S = 2, 8
    input_ids = jax.random.randint(kd, (B, S), 0, cfg["vocab"], dtype=jnp.int32)
    token_type_ids = jnp.zeros((B, S), jnp.int32).at[:, S // 2:].set(1)
    attention_mask = jnp.ones((B, S), jnp.int32).at[:, -2:].set(0)
    start_positions = jnp.array([1, 3], jnp.int32)
    end_positions = jnp.array([4, 6], jnp.int32)

    logits_fn = jax.jit(
        lambda ids, tt, am: ensemble_forward(params, ids, tt, am)
    )
    start_logits, end_logits = logits_fn(input_ids, token_type_ids, attention_mask)
    start_logits = jax.block_until_ready(start_logits)
    end_logits = jax.block_until_ready(end_logits)
    assert start_logits.shape == (B, S), start_logits.shape
    assert end_logits.shape == (B, S), end_logits.shape

    loss_fn = jax.jit(
        lambda ids, tt, am, sp, ep: ensemble_forward(params, ids, tt, am, sp, ep)
    )
    loss = loss_fn(input_ids, token_type_ids, attention_mask,
                   start_positions, end_positions)
    loss = jax.block_until_ready(loss)
    assert loss.shape == (), loss.shape

    print("KERNEL_OK")
</pallas_src>

<mosaic_0001>
module attributes {stable_mosaic.version = 11 : i64} {
  func.func @_attention_kernel(%arg0: i32, %arg1: i32, %arg2: i32, %arg3: memref<1x1x8x96xbf16, #tpu.memory_space<vmem>>, %arg4: memref<1x1x8x96xbf16, #tpu.memory_space<vmem>>, %arg5: memref<1x1x8xf32, #tpu.memory_space<vmem>>, %arg6: memref<1x1x8x32xbf16, #tpu.memory_space<vmem>>) attributes {dimension_semantics = [#tpu.dimension_semantics<parallel>, #tpu.dimension_semantics<parallel>, #tpu.dimension_semantics<parallel>], iteration_bounds = array<i64: 2, 2, 1>, scalar_prefetch = 0 : i64, scratch_operands = 0 : i64, tpu.core_type = #tpu.core_type<tc>, window_params = [{transform_indices = @transform_0, window_bounds = array<i64: 1, 1, 8, 96>}, {transform_indices = @transform_1, window_bounds = array<i64: 1, 1, 8, 96>}, {transform_indices = @transform_2, window_bounds = array<i64: 1, 1, 8>}, {transform_indices = @transform_3, window_bounds = array<i64: 1, 1, 8, 32>}]} {
    %c0 = arith.constant 0 : index
    %c0_0 = arith.constant 0 : index
    %c0_1 = arith.constant 0 : index
    %0 = vector.load %arg5[%c0, %c0_0, %c0_1] : memref<1x1x8xf32, #tpu.memory_space<vmem>>, vector<1x1x8xf32>
    %1 = vector.shape_cast %0 : vector<1x1x8xf32> to vector<1x8xf32>
    %c0_2 = arith.constant 0 : index
    %c0_3 = arith.constant 0 : index
    %c0_4 = arith.constant 0 : index
    %c0_5 = arith.constant 0 : index
    %2 = vector.load %arg3[%c0_2, %c0_3, %c0_4, %c0_5] : memref<1x1x8x96xbf16, #tpu.memory_space<vmem>>, vector<1x1x8x16xbf16>
    %3 = vector.shape_cast %2 : vector<1x1x8x16xbf16> to vector<8x16xbf16>
    %cst = arith.constant 2.500000e-01 : bf16
    %4 = vector.broadcast %cst : bf16 to vector<8x16xbf16>
    %5 = arith.mulf %3, %4 : vector<8x16xbf16>
    %c0_6 = arith.constant 0 : index
    %c0_7 = arith.constant 0 : index
    %c0_8 = arith.constant 0 : index
    %c32 = arith.constant 32 : index
    %6 = vector.load %arg4[%c0_6, %c0_7, %c0_8, %c32] : memref<1x1x8x96xbf16, #tpu.memory_space<vmem>>, vector<1x1x8x16xbf16>
    %7 = vector.shape_cast %6 : vector<1x1x8x16xbf16> to vector<8x16xbf16>
    %c0_9 = arith.constant 0 : index
    %c0_10 = arith.constant 0 : index
    %c0_11 = arith.constant 0 : index
    %c64 = arith.constant 64 : index
    %8 = vector.load %arg4[%c0_9, %c0_10, %c0_11, %c64] : memref<1x1x8x96xbf16, #tpu.memory_space<vmem>>, vector<1x1x8x16xbf16>
    %9 = vector.shape_cast %8 : vector<1x1x8x16xbf16> to vector<8x16xbf16>
    %cst_12 = arith.constant dense<0.000000e+00> : vector<8x8xf32>
    %10 = tpu.matmul %5, %7, %cst_12 {dimension_numbers = #tpu.dot_dimension_numbers<[1], [1], [0], [0], [0, 0, 1, 0], [], []>} : vector<8x16xbf16>, vector<8x16xbf16>, vector<8x8xf32> -> vector<8x8xf32>
    %11 = vector.broadcast %1 : vector<1x8xf32> to vector<8x8xf32>
    %12 = arith.addf %10, %11 : vector<8x8xf32>
    %cst_13 = arith.constant dense<0xFF800000> : vector<8xf32>
    %13 = vector.multi_reduction <maximumf>, %12, %cst_13 [1] : vector<8x8xf32> to vector<8xf32>
    %14 = vector.shape_cast %13 : vector<8xf32> to vector<8x1xf32>
    %15 = vector.broadcast %14 : vector<8x1xf32> to vector<8x8xf32>
    %16 = arith.subf %12, %15 : vector<8x8xf32>
    %17 = math.exp %16 : vector<8x8xf32>
    %cst_14 = arith.constant dense<0.000000e+00> : vector<8xf32>
    %18 = vector.multi_reduction <add>, %17, %cst_14 [1] : vector<8x8xf32> to vector<8xf32>
    %19 = vector.shape_cast %18 : vector<8xf32> to vector<8x1xf32>
    %20 = arith.truncf %17 : vector<8x8xf32> to vector<8x8xbf16>
    %cst_15 = arith.constant dense<0.000000e+00> : vector<8x16xf32>
    %21 = tpu.matmul %20, %9, %cst_15 {dimension_numbers = #tpu.dot_dimension_numbers<[1], [0], [0], [1], [0, 0, 1, 1], [], []>} : vector<8x8xbf16>, vector<8x16xbf16>, vector<8x16xf32> -> vector<8x16xf32>
    %22 = vector.broadcast %19 : vector<8x1xf32> to vector<8x16xf32>
    %23 = arith.divf %21, %22 : vector<8x16xf32>
    %c0_16 = arith.constant 0 : index
    %c0_17 = arith.constant 0 : index
    %c0_18 = arith.constant 0 : index
    %c16 = arith.constant 16 : index
    %24 = vector.load %arg3[%c0_16, %c0_17, %c0_18, %c16] : memref<1x1x8x96xbf16, #tpu.memory_space<vmem>>, vector<1x1x8x16xbf16>
    %25 = vector.shape_cast %24 : vector<1x1x8x16xbf16> to vector<8x16xbf16>
    %cst_19 = arith.constant 2.500000e-01 : bf16
    %26 = vector.broadcast %cst_19 : bf16 to vector<8x16xbf16>
    %27 = arith.mulf %25, %26 : vector<8x16xbf16>
    %c0_20 = arith.constant 0 : index
    %c0_21 = arith.constant 0 : index
    %c0_22 = arith.constant 0 : index
    %c48 = arith.constant 48 : index
    %28 = vector.load %arg4[%c0_20, %c0_21, %c0_22, %c48] : memref<1x1x8x96xbf16, #tpu.memory_space<vmem>>, vector<1x1x8x16xbf16>
    %29 = vector.shape_cast %28 : vector<1x1x8x16xbf16> to vector<8x16xbf16>
    %c0_23 = arith.constant 0 : index
    %c0_24 = arith.constant 0 : index
    %c0_25 = arith.constant 0 : index
    %c80 = arith.constant 80 : index
    %30 = vector.load %arg4[%c0_23, %c0_24, %c0_25, %c80] : memref<1x1x8x96xbf16, #tpu.memory_space<vmem>>, vector<1x1x8x16xbf16>
    %31 = vector.shape_cast %30 : vector<1x1x8x16xbf16> to vector<8x16xbf16>
    %cst_26 = arith.constant dense<0.000000e+00> : vector<8x8xf32>
    %32 = tpu.matmul %27, %29, %cst_26 {dimension_numbers = #tpu.dot_dimension_numbers<[1], [1], [0], [0], [0, 0, 1, 0], [], []>} : vector<8x16xbf16>, vector<8x16xbf16>, vector<8x8xf32> -> vector<8x8xf32>
    %33 = vector.broadcast %1 : vector<1x8xf32> to vector<8x8xf32>
    %34 = arith.addf %32, %33 : vector<8x8xf32>
    %cst_27 = arith.constant dense<0xFF800000> : vector<8xf32>
    %35 = vector.multi_reduction <maximumf>, %34, %cst_27 [1] : vector<8x8xf32> to vector<8xf32>
    %36 = vector.shape_cast %35 : vector<8xf32> to vector<8x1xf32>
    %37 = vector.broadcast %36 : vector<8x1xf32> to vector<8x8xf32>
    %38 = arith.subf %34, %37 : vector<8x8xf32>
    %39 = math.exp %38 : vector<8x8xf32>
    %cst_28 = arith.constant dense<0.000000e+00> : vector<8xf32>
    %40 = vector.multi_reduction <add>, %39, %cst_28 [1] : vector<8x8xf32> to vector<8xf32>
    %41 = vector.shape_cast %40 : vector<8xf32> to vector<8x1xf32>
    %42 = arith.truncf %39 : vector<8x8xf32> to vector<8x8xbf16>
    %cst_29 = arith.constant dense<0.000000e+00> : vector<8x16xf32>
    %43 = tpu.matmul %42, %31, %cst_29 {dimension_numbers = #tpu.dot_dimension_numbers<[1], [0], [0], [1], [0, 0, 1, 1], [], []>} : vector<8x8xbf16>, vector<8x16xbf16>, vector<8x16xf32> -> vector<8x16xf32>
    %44 = vector.broadcast %41 : vector<8x1xf32> to vector<8x16xf32>
    %45 = arith.divf %43, %44 : vector<8x16xf32>
    %46 = tpu.concatenate %23, %45 in 1 : vector<8x16xf32>, vector<8x16xf32> -> vector<8x32xf32>
    %47 = arith.truncf %46 : vector<8x32xf32> to vector<8x32xbf16>
    %c0_30 = arith.constant 0 : index
    %c0_31 = arith.constant 0 : index
    %c0_32 = arith.constant 0 : index
    %c0_33 = arith.constant 0 : index
    %48 = vector.load %arg6[%c0_30, %c0_31, %c0_32, %c0_33] : memref<1x1x8x32xbf16, #tpu.memory_space<vmem>>, vector<1x1x8x32xbf16>
    %49 = vector.shape_cast %48 : vector<1x1x8x32xbf16> to vector<8x32xbf16>
    %50 = vector.shape_cast %47 : vector<8x32xbf16> to vector<1x1x8x32xbf16>
    tpu.vector_store %arg6[%c0_30, %c0_31, %c0_32, %c0_33], %50 {strides = array<i32>} : memref<1x1x8x32xbf16, #tpu.memory_space<vmem>>, vector<1x1x8x32xbf16>,
    return
  }
  func.func @transform_0(%arg0: i32, %arg1: i32, %arg2: i32) -> (i32, i32, i32, i32) {
    %c0_i32 = arith.constant 0 : i32
    %c0_i32_0 = arith.constant 0 : i32
    return %arg0, %arg1, %arg2, %c0_i32 : i32, i32, i32, i32
  }
  func.func @transform_1(%arg0: i32, %arg1: i32, %arg2: i32) -> (i32, i32, i32, i32) {
    %c0_i32 = arith.constant 0 : i32
    %c0_i32_0 = arith.constant 0 : i32
    %c0_i32_1 = arith.constant 0 : i32
    return %arg0, %arg1, %c0_i32, %c0_i32_0 : i32, i32, i32, i32
  }
  func.func @transform_2(%arg0: i32, %arg1: i32, %arg2: i32) -> (i32, i32, i32) {
    %c0_i32 = arith.constant 0 : i32
    %c0_i32_0 = arith.constant 0 : i32
    %c0_i32_1 = arith.constant 0 : i32
    return %arg1, %c0_i32, %c0_i32_0 : i32, i32, i32
  }
  func.func @transform_3(%arg0: i32, %arg1: i32, %arg2: i32) -> (i32, i32, i32, i32) {
    %c0_i32 = arith.constant 0 : i32
    %c0_i32_0 = arith.constant 0 : i32
    return %arg0, %arg1, %arg2, %c0_i32 : i32, i32, i32, i32
  }
}

module attributes {stable_mosaic.version = 11 : i64} {
  func.func @_layernorm_kernel(%arg0: i32, %arg1: i32, %arg2: memref<1x16x32xf32, #tpu.memory_space<vmem>>, %arg3: memref<1x1x32xf32, #tpu.memory_space<vmem>>, %arg4: memref<1x1x32xf32, #tpu.memory_space<vmem>>, %arg5: memref<1x16x32xbf16, #tpu.memory_space<vmem>>) attributes {dimension_semantics = [#tpu.dimension_semantics<parallel>, #tpu.dimension_semantics<parallel>], iteration_bounds = array<i64: 2, 1>, scalar_prefetch = 0 : i64, scratch_operands = 0 : i64, tpu.core_type = #tpu.core_type<tc>, window_params = [{transform_indices = @transform_0, window_bounds = array<i64: 1, 16, 32>}, {transform_indices = @transform_1, window_bounds = array<i64: 1, 1, 32>}, {transform_indices = @transform_2, window_bounds = array<i64: 1, 1, 32>}, {transform_indices = @transform_3, window_bounds = array<i64: 1, 16, 32>}]} {
    %c0 = arith.constant 0 : index
    %c0_0 = arith.constant 0 : index
    %c0_1 = arith.constant 0 : index
    %0 = vector.load %arg2[%c0, %c0_0, %c0_1] : memref<1x16x32xf32, #tpu.memory_space<vmem>>, vector<1x16x32xf32>
    %1 = vector.shape_cast %0 : vector<1x16x32xf32> to vector<16x32xf32>
    %cst = arith.constant dense<0.000000e+00> : vector<16xf32>
    %2 = vector.multi_reduction <add>, %1, %cst [1] : vector<16x32xf32> to vector<16xf32>
    %3 = vector.shape_cast %2 : vector<16xf32> to vector<16x1xf32>
    %cst_2 = arith.constant 3.200000e+01 : f32
    %4 = vector.broadcast %cst_2 : f32 to vector<16x1xf32>
    %5 = arith.divf %3, %4 : vector<16x1xf32>
    %6 = vector.broadcast %5 : vector<16x1xf32> to vector<16x32xf32>
    %7 = arith.subf %1, %6 : vector<16x32xf32>
    %8 = arith.mulf %7, %7 : vector<16x32xf32>
    %cst_3 = arith.constant dense<0.000000e+00> : vector<16xf32>
    %9 = vector.multi_reduction <add>, %8, %cst_3 [1] : vector<16x32xf32> to vector<16xf32>
    %10 = vector.shape_cast %9 : vector<16xf32> to vector<16x1xf32>
    %cst_4 = arith.constant 3.200000e+01 : f32
    %11 = vector.broadcast %cst_4 : f32 to vector<16x1xf32>
    %12 = arith.divf %10, %11 : vector<16x1xf32>
    %13 = vector.broadcast %5 : vector<16x1xf32> to vector<16x32xf32>
    %14 = arith.subf %1, %13 : vector<16x32xf32>
    %cst_5 = arith.constant 9.99999996E-13 : f32
    %15 = vector.broadcast %cst_5 : f32 to vector<16x1xf32>
    %16 = arith.addf %12, %15 : vector<16x1xf32>
    %17 = math.rsqrt %16 : vector<16x1xf32>
    %18 = vector.broadcast %17 : vector<16x1xf32> to vector<16x32xf32>
    %19 = arith.mulf %14, %18 : vector<16x32xf32>
    %c0_6 = arith.constant 0 : index
    %c0_7 = arith.constant 0 : index
    %c0_8 = arith.constant 0 : index
    %20 = vector.load %arg3[%c0_6, %c0_7, %c0_8] : memref<1x1x32xf32, #tpu.memory_space<vmem>>, vector<1x1x32xf32>
    %21 = vector.shape_cast %20 : vector<1x1x32xf32> to vector<1x32xf32>
    %22 = vector.broadcast %21 : vector<1x32xf32> to vector<16x32xf32>
    %23 = arith.mulf %19, %22 : vector<16x32xf32>
    %c0_9 = arith.constant 0 : index
    %c0_10 = arith.constant 0 : index
    %c0_11 = arith.constant 0 : index
    %24 = vector.load %arg4[%c0_9, %c0_10, %c0_11] : memref<1x1x32xf32, #tpu.memory_space<vmem>>, vector<1x1x32xf32>
    %25 = vector.shape_cast %24 : vector<1x1x32xf32> to vector<1x32xf32>
    %26 = vector.broadcast %25 : vector<1x32xf32> to vector<16x32xf32>
    %27 = arith.addf %23, %26 : vector<16x32xf32>
    %28 = arith.truncf %27 : vector<16x32xf32> to vector<16x32xbf16>
    %c0_12 = arith.constant 0 : index
    %c0_13 = arith.constant 0 : index
    %c0_14 = arith.constant 0 : index
    %29 = vector.load %arg5[%c0_12, %c0_13, %c0_14] : memref<1x16x32xbf16, #tpu.memory_space<vmem>>, vector<1x16x32xbf16>
    %30 = vector.shape_cast %29 : vector<1x16x32xbf16> to vector<16x32xbf16>
    %31 = vector.shape_cast %28 : vector<16x32xbf16> to vector<1x16x32xbf16>
    tpu.vector_store %arg5[%c0_12, %c0_13, %c0_14], %31 {strides = array<i32>} : memref<1x16x32xbf16, #tpu.memory_space<vmem>>, vector<1x16x32xbf16>,
    return
  }
  func.func @transform_0(%arg0: i32, %arg1: i32) -> (i32, i32, i32) {
    %c0_i32 = arith.constant 0 : i32
    %c0_i32_0 = arith.constant 0 : i32
    return %arg0, %arg1, %c0_i32 : i32, i32, i32
  }
  func.func @transform_1(%arg0: i32, %arg1: i32) -> (i32, i32, i32) {
    %c0_i32 = arith.constant 0 : i32
    %c0_i32_0 = arith.constant 0 : i32
    %c0_i32_1 = arith.constant 0 : i32
    return %arg0, %c0_i32, %c0_i32_0 : i32, i32, i32
  }
  func.func @transform_2(%arg0: i32, %arg1: i32) -> (i32, i32, i32) {
    %c0_i32 = arith.constant 0 : i32
    %c0_i32_0 = arith.constant 0 : i32
    %c0_i32_1 = arith.constant 0 : i32
    return %arg0, %c0_i32, %c0_i32_0 : i32, i32, i32
  }
  func.func @transform_3(%arg0: i32, %arg1: i32) -> (i32, i32, i32) {
    %c0_i32 = arith.constant 0 : i32
    %c0_i32_0 = arith.constant 0 : i32
    return %arg0, %arg1, %c0_i32 : i32, i32, i32
  }
}

module attributes {stable_mosaic.version = 11 : i64} {
  func.func @_linear_kernel(%arg0: i32, %arg1: i32, %arg2: memref<1x16x32xbf16, #tpu.memory_space<vmem>>, %arg3: memref<1x32x96xbf16, #tpu.memory_space<vmem>>, %arg4: memref<1x1x96xf32, #tpu.memory_space<vmem>>, %arg5: memref<1x16x96xbf16, #tpu.memory_space<vmem>>) attributes {dimension_semantics = [#tpu.dimension_semantics<parallel>, #tpu.dimension_semantics<parallel>], iteration_bounds = array<i64: 2, 1>, scalar_prefetch = 0 : i64, scratch_operands = 0 : i64, tpu.core_type = #tpu.core_type<tc>, window_params = [{transform_indices = @transform_0, window_bounds = array<i64: 1, 16, 32>}, {transform_indices = @transform_1, window_bounds = array<i64: 1, 32, 96>}, {transform_indices = @transform_2, window_bounds = array<i64: 1, 1, 96>}, {transform_indices = @transform_3, window_bounds = array<i64: 1, 16, 96>}]} {
    %c0 = arith.constant 0 : index
    %c0_0 = arith.constant 0 : index
    %c0_1 = arith.constant 0 : index
    %0 = vector.load %arg2[%c0, %c0_0, %c0_1] : memref<1x16x32xbf16, #tpu.memory_space<vmem>>, vector<1x16x32xbf16>
    %1 = vector.shape_cast %0 : vector<1x16x32xbf16> to vector<16x32xbf16>
    %c0_2 = arith.constant 0 : index
    %c0_3 = arith.constant 0 : index
    %c0_4 = arith.constant 0 : index
    %2 = vector.load %arg3[%c0_2, %c0_3, %c0_4] : memref<1x32x96xbf16, #tpu.memory_space<vmem>>, vector<1x32x96xbf16>
    %3 = vector.shape_cast %2 : vector<1x32x96xbf16> to vector<32x96xbf16>
    %cst = arith.constant dense<0.000000e+00> : vector<16x96xf32>
    %4 = tpu.matmul %1, %3, %cst {dimension_numbers = #tpu.dot_dimension_numbers<[1], [0], [0], [1], [0, 0, 1, 1], [], []>} : vector<16x32xbf16>, vector<32x96xbf16>, vector<16x96xf32> -> vector<16x96xf32>
    %c0_5 = arith.constant 0 : index
    %c0_6 = arith.constant 0 : index
    %c0_7 = arith.constant 0 : index
    %5 = vector.load %arg4[%c0_5, %c0_6, %c0_7] : memref<1x1x96xf32, #tpu.memory_space<vmem>>, vector<1x1x96xf32>
    %6 = vector.shape_cast %5 : vector<1x1x96xf32> to vector<1x96xf32>
    %7 = vector.broadcast %6 : vector<1x96xf32> to vector<16x96xf32>
    %8 = arith.addf %4, %7 : vector<16x96xf32>
    %9 = arith.truncf %8 : vector<16x96xf32> to vector<16x96xbf16>
    %c0_8 = arith.constant 0 : index
    %c0_9 = arith.constant 0 : index
    %c0_10 = arith.constant 0 : index
    %10 = vector.load %arg5[%c0_8, %c0_9, %c0_10] : memref<1x16x96xbf16, #tpu.memory_space<vmem>>, vector<1x16x96xbf16>
    %11 = vector.shape_cast %10 : vector<1x16x96xbf16> to vector<16x96xbf16>
    %12 = vector.shape_cast %9 : vector<16x96xbf16> to vector<1x16x96xbf16>
    tpu.vector_store %arg5[%c0_8, %c0_9, %c0_10], %12 {strides = array<i32>} : memref<1x16x96xbf16, #tpu.memory_space<vmem>>, vector<1x16x96xbf16>,
    return
  }
  func.func @transform_0(%arg0: i32, %arg1: i32) -> (i32, i32, i32) {
    %c0_i32 = arith.constant 0 : i32
    %c0_i32_0 = arith.constant 0 : i32
    return %arg0, %arg1, %c0_i32 : i32, i32, i32
  }
  func.func @transform_1(%arg0: i32, %arg1: i32) -> (i32, i32, i32) {
    %c0_i32 = arith.constant 0 : i32
    %c0_i32_0 = arith.constant 0 : i32
    %c0_i32_1 = arith.constant 0 : i32
    return %arg0, %c0_i32, %c0_i32_0 : i32, i32, i32
  }
  func.func @transform_2(%arg0: i32, %arg1: i32) -> (i32, i32, i32) {
    %c0_i32 = arith.constant 0 : i32
    %c0_i32_0 = arith.constant 0 : i32
    %c0_i32_1 = arith.constant 0 : i32
    return %arg0, %c0_i32, %c0_i32_0 : i32, i32, i32
  }
  func.func @transform_3(%arg0: i32, %arg1: i32) -> (i32, i32, i32) {
    %c0_i32 = arith.constant 0 : i32
    %c0_i32_0 = arith.constant 0 : i32
    return %arg0, %arg1, %c0_i32 : i32, i32, i32
  }
}

module attributes {stable_mosaic.version = 11 : i64} {
  func.func @_linear_res_ln_kernel(%arg0: i32, %arg1: i32, %arg2: memref<1x16x32xbf16, #tpu.memory_space<vmem>>, %arg3: memref<1x32x32xbf16, #tpu.memory_space<vmem>>, %arg4: memref<1x1x32xf32, #tpu.memory_space<vmem>>, %arg5: memref<1x16x32xbf16, #tpu.memory_space<vmem>>, %arg6: memref<1x1x32xf32, #tpu.memory_space<vmem>>, %arg7: memref<1x1x32xf32, #tpu.memory_space<vmem>>, %arg8: memref<1x16x32xbf16, #tpu.memory_space<vmem>>) attributes {dimension_semantics = [#tpu.dimension_semantics<parallel>, #tpu.dimension_semantics<parallel>], iteration_bounds = array<i64: 2, 1>, scalar_prefetch = 0 : i64, scratch_operands = 0 : i64, tpu.core_type = #tpu.core_type<tc>, window_params = [{transform_indices = @transform_0, window_bounds = array<i64: 1, 16, 32>}, {transform_indices = @transform_1, window_bounds = array<i64: 1, 32, 32>}, {transform_indices = @transform_2, window_bounds = array<i64: 1, 1, 32>}, {transform_indices = @transform_3, window_bounds = array<i64: 1, 16, 32>}, {transform_indices = @transform_4, window_bounds = array<i64: 1, 1, 32>}, {transform_indices = @transform_5, window_bounds = array<i64: 1, 1, 32>}, {transform_indices = @transform_6, window_bounds = array<i64: 1, 16, 32>}]} {
    %c0 = arith.constant 0 : index
    %c0_0 = arith.constant 0 : index
    %c0_1 = arith.constant 0 : index
    %0 = vector.load %arg2[%c0, %c0_0, %c0_1] : memref<1x16x32xbf16, #tpu.memory_space<vmem>>, vector<1x16x32xbf16>
    %1 = vector.shape_cast %0 : vector<1x16x32xbf16> to vector<16x32xbf16>
    %c0_2 = arith.constant 0 : index
    %c0_3 = arith.constant 0 : index
    %c0_4 = arith.constant 0 : index
    %2 = vector.load %arg3[%c0_2, %c0_3, %c0_4] : memref<1x32x32xbf16, #tpu.memory_space<vmem>>, vector<1x32x32xbf16>
    %3 = vector.shape_cast %2 : vector<1x32x32xbf16> to vector<32x32xbf16>
    %cst = arith.constant dense<0.000000e+00> : vector<16x32xf32>
    %4 = tpu.matmul %1, %3, %cst {dimension_numbers = #tpu.dot_dimension_numbers<[1], [0], [0], [1], [0, 0, 1, 1], [], []>} : vector<16x32xbf16>, vector<32x32xbf16>, vector<16x32xf32> -> vector<16x32xf32>
    %c0_5 = arith.constant 0 : index
    %c0_6 = arith.constant 0 : index
    %c0_7 = arith.constant 0 : index
    %5 = vector.load %arg4[%c0_5, %c0_6, %c0_7] : memref<1x1x32xf32, #tpu.memory_space<vmem>>, vector<1x1x32xf32>
    %6 = vector.shape_cast %5 : vector<1x1x32xf32> to vector<1x32xf32>
    %7 = vector.broadcast %6 : vector<1x32xf32> to vector<16x32xf32>
    %8 = arith.addf %4, %7 : vector<16x32xf32>
    %c0_8 = arith.constant 0 : index
    %c0_9 = arith.constant 0 : index
    %c0_10 = arith.constant 0 : index
    %9 = vector.load %arg5[%c0_8, %c0_9, %c0_10] : memref<1x16x32xbf16, #tpu.memory_space<vmem>>, vector<1x16x32xbf16>
    %10 = vector.shape_cast %9 : vector<1x16x32xbf16> to vector<16x32xbf16>
    %11 = arith.extf %10 : vector<16x32xbf16> to vector<16x32xf32>
    %12 = arith.addf %8, %11 : vector<16x32xf32>
    %cst_11 = arith.constant dense<0.000000e+00> : vector<16xf32>
    %13 = vector.multi_reduction <add>, %12, %cst_11 [1] : vector<16x32xf32> to vector<16xf32>
    %14 = vector.shape_cast %13 : vector<16xf32> to vector<16x1xf32>
    %cst_12 = arith.constant 3.200000e+01 : f32
    %15 = vector.broadcast %cst_12 : f32 to vector<16x1xf32>
    %16 = arith.divf %14, %15 : vector<16x1xf32>
    %17 = vector.broadcast %16 : vector<16x1xf32> to vector<16x32xf32>
    %18 = arith.subf %12, %17 : vector<16x32xf32>
    %19 = arith.mulf %18, %18 : vector<16x32xf32>
    %cst_13 = arith.constant dense<0.000000e+00> : vector<16xf32>
    %20 = vector.multi_reduction <add>, %19, %cst_13 [1] : vector<16x32xf32> to vector<16xf32>
    %21 = vector.shape_cast %20 : vector<16xf32> to vector<16x1xf32>
    %cst_14 = arith.constant 3.200000e+01 : f32
    %22 = vector.broadcast %cst_14 : f32 to vector<16x1xf32>
    %23 = arith.divf %21, %22 : vector<16x1xf32>
    %24 = vector.broadcast %16 : vector<16x1xf32> to vector<16x32xf32>
    %25 = arith.subf %12, %24 : vector<16x32xf32>
    %cst_15 = arith.constant 9.99999996E-13 : f32
    %26 = vector.broadcast %cst_15 : f32 to vector<16x1xf32>
    %27 = arith.addf %23, %26 : vector<16x1xf32>
    %28 = math.rsqrt %27 : vector<16x1xf32>
    %29 = vector.broadcast %28 : vector<16x1xf32> to vector<16x32xf32>
    %30 = arith.mulf %25, %29 : vector<16x32xf32>
    %c0_16 = arith.constant 0 : index
    %c0_17 = arith.constant 0 : index
    %c0_18 = arith.constant 0 : index
    %31 = vector.load %arg6[%c0_16, %c0_17, %c0_18] : memref<1x1x32xf32, #tpu.memory_space<vmem>>, vector<1x1x32xf32>
    %32 = vector.shape_cast %31 : vector<1x1x32xf32> to vector<1x32xf32>
    %33 = vector.broadcast %32 : vector<1x32xf32> to vector<16x32xf32>
    %34 = arith.mulf %30, %33 : vector<16x32xf32>
    %c0_19 = arith.constant 0 : index
    %c0_20 = arith.constant 0 : index
    %c0_21 = arith.constant 0 : index
    %35 = vector.load %arg7[%c0_19, %c0_20, %c0_21] : memref<1x1x32xf32, #tpu.memory_space<vmem>>, vector<1x1x32xf32>
    %36 = vector.shape_cast %35 : vector<1x1x32xf32> to vector<1x32xf32>
    %37 = vector.broadcast %36 : vector<1x32xf32> to vector<16x32xf32>
    %38 = arith.addf %34, %37 : vector<16x32xf32>
    %39 = arith.truncf %38 : vector<16x32xf32> to vector<16x32xbf16>
    %c0_22 = arith.constant 0 : index
    %c0_23 = arith.constant 0 : index
    %c0_24 = arith.constant 0 : index
    %40 = vector.load %arg8[%c0_22, %c0_23, %c0_24] : memref<1x16x32xbf16, #tpu.memory_space<vmem>>, vector<1x16x32xbf16>
    %41 = vector.shape_cast %40 : vector<1x16x32xbf16> to vector<16x32xbf16>
    %42 = vector.shape_cast %39 : vector<16x32xbf16> to vector<1x16x32xbf16>
    tpu.vector_store %arg8[%c0_22, %c0_23, %c0_24], %42 {strides = array<i32>} : memref<1x16x32xbf16, #tpu.memory_space<vmem>>, vector<1x16x32xbf16>,
    return
  }
  func.func @transform_0(%arg0: i32, %arg1: i32) -> (i32, i32, i32) {
    %c0_i32 = arith.constant 0 : i32
    %c0_i32_0 = arith.constant 0 : i32
    return %arg0, %arg1, %c0_i32 : i32, i32, i32
  }
  func.func @transform_1(%arg0: i32, %arg1: i32) -> (i32, i32, i32) {
    %c0_i32 = arith.constant 0 : i32
    %c0_i32_0 = arith.constant 0 : i32
    %c0_i32_1 = arith.constant 0 : i32
    return %arg0, %c0_i32, %c0_i32_0 : i32, i32, i32
  }
  func.func @transform_2(%arg0: i32, %arg1: i32) -> (i32, i32, i32) {
    %c0_i32 = arith.constant 0 : i32
    %c0_i32_0 = arith.constant 0 : i32
    %c0_i32_1 = arith.constant 0 : i32
    return %arg0, %c0_i32, %c0_i32_0 : i32, i32, i32
  }
  func.func @transform_3(%arg0: i32, %arg1: i32) -> (i32, i32, i32) {
    %c0_i32 = arith.constant 0 : i32
    %c0_i32_0 = arith.constant 0 : i32
    return %arg0, %arg1, %c0_i32 : i32, i32, i32
  }
  func.func @transform_4(%arg0: i32, %arg1: i32) -> (i32, i32, i32) {
    %c0_i32 = arith.constant 0 : i32
    %c0_i32_0 = arith.constant 0 : i32
    %c0_i32_1 = arith.constant 0 : i32
    return %arg0, %c0_i32, %c0_i32_0 : i32, i32, i32
  }
  func.func @transform_5(%arg0: i32, %arg1: i32) -> (i32, i32, i32) {
    %c0_i32 = arith.constant 0 : i32
    %c0_i32_0 = arith.constant 0 : i32
    %c0_i32_1 = arith.constant 0 : i32
    return %arg0, %c0_i32, %c0_i32_0 : i32, i32, i32
  }
  func.func @transform_6(%arg0: i32, %arg1: i32) -> (i32, i32, i32) {
    %c0_i32 = arith.constant 0 : i32
    %c0_i32_0 = arith.constant 0 : i32
    return %arg0, %arg1, %c0_i32 : i32, i32, i32
  }
}

module attributes {stable_mosaic.version = 11 : i64} {
  func.func @_linear_kernel(%arg0: i32, %arg1: i32, %arg2: memref<1x16x32xbf16, #tpu.memory_space<vmem>>, %arg3: memref<1x32x96xbf16, #tpu.memory_space<vmem>>, %arg4: memref<1x1x96xf32, #tpu.memory_space<vmem>>, %arg5: memref<1x16x96xbf16, #tpu.memory_space<vmem>>) attributes {dimension_semantics = [#tpu.dimension_semantics<parallel>, #tpu.dimension_semantics<parallel>], iteration_bounds = array<i64: 2, 1>, scalar_prefetch = 0 : i64, scratch_operands = 0 : i64, tpu.core_type = #tpu.core_type<tc>, window_params = [{transform_indices = @transform_0, window_bounds = array<i64: 1, 16, 32>}, {transform_indices = @transform_1, window_bounds = array<i64: 1, 32, 96>}, {transform_indices = @transform_2, window_bounds = array<i64: 1, 1, 96>}, {transform_indices = @transform_3, window_bounds = array<i64: 1, 16, 96>}]} {
    %c0 = arith.constant 0 : index
    %c0_0 = arith.constant 0 : index
    %c0_1 = arith.constant 0 : index
    %0 = vector.load %arg2[%c0, %c0_0, %c0_1] : memref<1x16x32xbf16, #tpu.memory_space<vmem>>, vector<1x16x32xbf16>
    %1 = vector.shape_cast %0 : vector<1x16x32xbf16> to vector<16x32xbf16>
    %c0_2 = arith.constant 0 : index
    %c0_3 = arith.constant 0 : index
    %c0_4 = arith.constant 0 : index
    %2 = vector.load %arg3[%c0_2, %c0_3, %c0_4] : memref<1x32x96xbf16, #tpu.memory_space<vmem>>, vector<1x32x96xbf16>
    %3 = vector.shape_cast %2 : vector<1x32x96xbf16> to vector<32x96xbf16>
    %cst = arith.constant dense<0.000000e+00> : vector<16x96xf32>
    %4 = tpu.matmul %1, %3, %cst {dimension_numbers = #tpu.dot_dimension_numbers<[1], [0], [0], [1], [0, 0, 1, 1], [], []>} : vector<16x32xbf16>, vector<32x96xbf16>, vector<16x96xf32> -> vector<16x96xf32>
    %c0_5 = arith.constant 0 : index
    %c0_6 = arith.constant 0 : index
    %c0_7 = arith.constant 0 : index
    %5 = vector.load %arg4[%c0_5, %c0_6, %c0_7] : memref<1x1x96xf32, #tpu.memory_space<vmem>>, vector<1x1x96xf32>
    %6 = vector.shape_cast %5 : vector<1x1x96xf32> to vector<1x96xf32>
    %7 = vector.broadcast %6 : vector<1x96xf32> to vector<16x96xf32>
    %8 = arith.addf %4, %7 : vector<16x96xf32>
    %9 = arith.truncf %8 : vector<16x96xf32> to vector<16x96xbf16>
    %c0_8 = arith.constant 0 : index
    %c0_9 = arith.constant 0 : index
    %c0_10 = arith.constant 0 : index
    %10 = vector.load %arg5[%c0_8, %c0_9, %c0_10] : memref<1x16x96xbf16, #tpu.memory_space<vmem>>, vector<1x16x96xbf16>
    %11 = vector.shape_cast %10 : vector<1x16x96xbf16> to vector<16x96xbf16>
    %12 = vector.shape_cast %9 : vector<16x96xbf16> to vector<1x16x96xbf16>
    tpu.vector_store %arg5[%c0_8, %c0_9, %c0_10], %12 {strides = array<i32>} : memref<1x16x96xbf16, #tpu.memory_space<vmem>>, vector<1x16x96xbf16>,
    return
  }
  func.func @transform_0(%arg0: i32, %arg1: i32) -> (i32, i32, i32) {
    %c0_i32 = arith.constant 0 : i32
    %c0_i32_0 = arith.constant 0 : i32
    return %arg0, %arg1, %c0_i32 : i32, i32, i32
  }
  func.func @transform_1(%arg0: i32, %arg1: i32) -> (i32, i32, i32) {
    %c0_i32 = arith.constant 0 : i32
    %c0_i32_0 = arith.constant 0 : i32
    %c0_i32_1 = arith.constant 0 : i32
    return %arg0, %c0_i32, %c0_i32_0 : i32, i32, i32
  }
  func.func @transform_2(%arg0: i32, %arg1: i32) -> (i32, i32, i32) {
    %c0_i32 = arith.constant 0 : i32
    %c0_i32_0 = arith.constant 0 : i32
    %c0_i32_1 = arith.constant 0 : i32
    return %arg0, %c0_i32, %c0_i32_0 : i32, i32, i32
  }
  func.func @transform_3(%arg0: i32, %arg1: i32) -> (i32, i32, i32) {
    %c0_i32 = arith.constant 0 : i32
    %c0_i32_0 = arith.constant 0 : i32
    return %arg0, %arg1, %c0_i32 : i32, i32, i32
  }
}

module attributes {stable_mosaic.version = 11 : i64} {
  func.func @_linear_res_ln_kernel(%arg0: i32, %arg1: i32, %arg2: memref<1x16x64xbf16, #tpu.memory_space<vmem>>, %arg3: memref<1x64x32xbf16, #tpu.memory_space<vmem>>, %arg4: memref<1x1x32xf32, #tpu.memory_space<vmem>>, %arg5: memref<1x16x32xbf16, #tpu.memory_space<vmem>>, %arg6: memref<1x1x32xf32, #tpu.memory_space<vmem>>, %arg7: memref<1x1x32xf32, #tpu.memory_space<vmem>>, %arg8: memref<1x16x32xbf16, #tpu.memory_space<vmem>>) attributes {dimension_semantics = [#tpu.dimension_semantics<parallel>, #tpu.dimension_semantics<parallel>], iteration_bounds = array<i64: 2, 1>, scalar_prefetch = 0 : i64, scratch_operands = 0 : i64, tpu.core_type = #tpu.core_type<tc>, window_params = [{transform_indices = @transform_0, window_bounds = array<i64: 1, 16, 64>}, {transform_indices = @transform_1, window_bounds = array<i64: 1, 64, 32>}, {transform_indices = @transform_2, window_bounds = array<i64: 1, 1, 32>}, {transform_indices = @transform_3, window_bounds = array<i64: 1, 16, 32>}, {transform_indices = @transform_4, window_bounds = array<i64: 1, 1, 32>}, {transform_indices = @transform_5, window_bounds = array<i64: 1, 1, 32>}, {transform_indices = @transform_6, window_bounds = array<i64: 1, 16, 32>}]} {
    %c0 = arith.constant 0 : index
    %c0_0 = arith.constant 0 : index
    %c0_1 = arith.constant 0 : index
    %0 = vector.load %arg2[%c0, %c0_0, %c0_1] : memref<1x16x64xbf16, #tpu.memory_space<vmem>>, vector<1x16x64xbf16>
    %1 = vector.shape_cast %0 : vector<1x16x64xbf16> to vector<16x64xbf16>
    %c0_2 = arith.constant 0 : index
    %c0_3 = arith.constant 0 : index
    %c0_4 = arith.constant 0 : index
    %2 = vector.load %arg3[%c0_2, %c0_3, %c0_4] : memref<1x64x32xbf16, #tpu.memory_space<vmem>>, vector<1x64x32xbf16>
    %3 = vector.shape_cast %2 : vector<1x64x32xbf16> to vector<64x32xbf16>
    %cst = arith.constant dense<0.000000e+00> : vector<16x32xf32>
    %4 = tpu.matmul %1, %3, %cst {dimension_numbers = #tpu.dot_dimension_numbers<[1], [0], [0], [1], [0, 0, 1, 1], [], []>} : vector<16x64xbf16>, vector<64x32xbf16>, vector<16x32xf32> -> vector<16x32xf32>
    %c0_5 = arith.constant 0 : index
    %c0_6 = arith.constant 0 : index
    %c0_7 = arith.constant 0 : index
    %5 = vector.load %arg4[%c0_5, %c0_6, %c0_7] : memref<1x1x32xf32, #tpu.memory_space<vmem>>, vector<1x1x32xf32>
    %6 = vector.shape_cast %5 : vector<1x1x32xf32> to vector<1x32xf32>
    %7 = vector.broadcast %6 : vector<1x32xf32> to vector<16x32xf32>
    %8 = arith.addf %4, %7 : vector<16x32xf32>
    %c0_8 = arith.constant 0 : index
    %c0_9 = arith.constant 0 : index
    %c0_10 = arith.constant 0 : index
    %9 = vector.load %arg5[%c0_8, %c0_9, %c0_10] : memref<1x16x32xbf16, #tpu.memory_space<vmem>>, vector<1x16x32xbf16>
    %10 = vector.shape_cast %9 : vector<1x16x32xbf16> to vector<16x32xbf16>
    %11 = arith.extf %10 : vector<16x32xbf16> to vector<16x32xf32>
    %12 = arith.addf %8, %11 : vector<16x32xf32>
    %cst_11 = arith.constant dense<0.000000e+00> : vector<16xf32>
    %13 = vector.multi_reduction <add>, %12, %cst_11 [1] : vector<16x32xf32> to vector<16xf32>
    %14 = vector.shape_cast %13 : vector<16xf32> to vector<16x1xf32>
    %cst_12 = arith.constant 3.200000e+01 : f32
    %15 = vector.broadcast %cst_12 : f32 to vector<16x1xf32>
    %16 = arith.divf %14, %15 : vector<16x1xf32>
    %17 = vector.broadcast %16 : vector<16x1xf32> to vector<16x32xf32>
    %18 = arith.subf %12, %17 : vector<16x32xf32>
    %19 = arith.mulf %18, %18 : vector<16x32xf32>
    %cst_13 = arith.constant dense<0.000000e+00> : vector<16xf32>
    %20 = vector.multi_reduction <add>, %19, %cst_13 [1] : vector<16x32xf32> to vector<16xf32>
    %21 = vector.shape_cast %20 : vector<16xf32> to vector<16x1xf32>
    %cst_14 = arith.constant 3.200000e+01 : f32
    %22 = vector.broadcast %cst_14 : f32 to vector<16x1xf32>
    %23 = arith.divf %21, %22 : vector<16x1xf32>
    %24 = vector.broadcast %16 : vector<16x1xf32> to vector<16x32xf32>
    %25 = arith.subf %12, %24 : vector<16x32xf32>
    %cst_15 = arith.constant 9.99999996E-13 : f32
    %26 = vector.broadcast %cst_15 : f32 to vector<16x1xf32>
    %27 = arith.addf %23, %26 : vector<16x1xf32>
    %28 = math.rsqrt %27 : vector<16x1xf32>
    %29 = vector.broadcast %28 : vector<16x1xf32> to vector<16x32xf32>
    %30 = arith.mulf %25, %29 : vector<16x32xf32>
    %c0_16 = arith.constant 0 : index
    %c0_17 = arith.constant 0 : index
    %c0_18 = arith.constant 0 : index
    %31 = vector.load %arg6[%c0_16, %c0_17, %c0_18] : memref<1x1x32xf32, #tpu.memory_space<vmem>>, vector<1x1x32xf32>
    %32 = vector.shape_cast %31 : vector<1x1x32xf32> to vector<1x32xf32>
    %33 = vector.broadcast %32 : vector<1x32xf32> to vector<16x32xf32>
    %34 = arith.mulf %30, %33 : vector<16x32xf32>
    %c0_19 = arith.constant 0 : index
    %c0_20 = arith.constant 0 : index
    %c0_21 = arith.constant 0 : index
    %35 = vector.load %arg7[%c0_19, %c0_20, %c0_21] : memref<1x1x32xf32, #tpu.memory_space<vmem>>, vector<1x1x32xf32>
    %36 = vector.shape_cast %35 : vector<1x1x32xf32> to vector<1x32xf32>
    %37 = vector.broadcast %36 : vector<1x32xf32> to vector<16x32xf32>
    %38 = arith.addf %34, %37 : vector<16x32xf32>
    %39 = arith.truncf %38 : vector<16x32xf32> to vector<16x32xbf16>
    %c0_22 = arith.constant 0 : index
    %c0_23 = arith.constant 0 : index
    %c0_24 = arith.constant 0 : index
    %40 = vector.load %arg8[%c0_22, %c0_23, %c0_24] : memref<1x16x32xbf16, #tpu.memory_space<vmem>>, vector<1x16x32xbf16>
    %41 = vector.shape_cast %40 : vector<1x16x32xbf16> to vector<16x32xbf16>
    %42 = vector.shape_cast %39 : vector<16x32xbf16> to vector<1x16x32xbf16>
    tpu.vector_store %arg8[%c0_22, %c0_23, %c0_24], %42 {strides = array<i32>} : memref<1x16x32xbf16, #tpu.memory_space<vmem>>, vector<1x16x32xbf16>,
    return
  }
  func.func @transform_0(%arg0: i32, %arg1: i32) -> (i32, i32, i32) {
    %c0_i32 = arith.constant 0 : i32
    %c0_i32_0 = arith.constant 0 : i32
    return %arg0, %arg1, %c0_i32 : i32, i32, i32
  }
  func.func @transform_1(%arg0: i32, %arg1: i32) -> (i32, i32, i32) {
    %c0_i32 = arith.constant 0 : i32
    %c0_i32_0 = arith.constant 0 : i32
    %c0_i32_1 = arith.constant 0 : i32
    return %arg0, %c0_i32, %c0_i32_0 : i32, i32, i32
  }
  func.func @transform_2(%arg0: i32, %arg1: i32) -> (i32, i32, i32) {
    %c0_i32 = arith.constant 0 : i32
    %c0_i32_0 = arith.constant 0 : i32
    %c0_i32_1 = arith.constant 0 : i32
    return %arg0, %c0_i32, %c0_i32_0 : i32, i32, i32
  }
  func.func @transform_3(%arg0: i32, %arg1: i32) -> (i32, i32, i32) {
    %c0_i32 = arith.constant 0 : i32
    %c0_i32_0 = arith.constant 0 : i32
    return %arg0, %arg1, %c0_i32 : i32, i32, i32
  }
  func.func @transform_4(%arg0: i32, %arg1: i32) -> (i32, i32, i32) {
    %c0_i32 = arith.constant 0 : i32
    %c0_i32_0 = arith.constant 0 : i32
    %c0_i32_1 = arith.constant 0 : i32
    return %arg0, %c0_i32, %c0_i32_0 : i32, i32, i32
  }
  func.func @transform_5(%arg0: i32, %arg1: i32) -> (i32, i32, i32) {
    %c0_i32 = arith.constant 0 : i32
    %c0_i32_0 = arith.constant 0 : i32
    %c0_i32_1 = arith.constant 0 : i32
    return %arg0, %c0_i32, %c0_i32_0 : i32, i32, i32
  }
  func.func @transform_6(%arg0: i32, %arg1: i32) -> (i32, i32, i32) {
    %c0_i32 = arith.constant 0 : i32
    %c0_i32_0 = arith.constant 0 : i32
    return %arg0, %arg1, %c0_i32 : i32, i32, i32
  }
}

module attributes {stable_mosaic.version = 11 : i64} {
  func.func @_linear_kernel(%arg0: i32, %arg1: i32, %arg2: memref<1x16x32xbf16, #tpu.memory_space<vmem>>, %arg3: memref<1x32x64xbf16, #tpu.memory_space<vmem>>, %arg4: memref<1x1x64xf32, #tpu.memory_space<vmem>>, %arg5: memref<1x16x64xbf16, #tpu.memory_space<vmem>>) attributes {dimension_semantics = [#tpu.dimension_semantics<parallel>, #tpu.dimension_semantics<parallel>], iteration_bounds = array<i64: 2, 1>, scalar_prefetch = 0 : i64, scratch_operands = 0 : i64, tpu.core_type = #tpu.core_type<tc>, window_params = [{transform_indices = @transform_0, window_bounds = array<i64: 1, 16, 32>}, {transform_indices = @transform_1, window_bounds = array<i64: 1, 32, 64>}, {transform_indices = @transform_2, window_bounds = array<i64: 1, 1, 64>}, {transform_indices = @transform_3, window_bounds = array<i64: 1, 16, 64>}]} {
    %c0 = arith.constant 0 : index
    %c0_0 = arith.constant 0 : index
    %c0_1 = arith.constant 0 : index
    %0 = vector.load %arg2[%c0, %c0_0, %c0_1] : memref<1x16x32xbf16, #tpu.memory_space<vmem>>, vector<1x16x32xbf16>
    %1 = vector.shape_cast %0 : vector<1x16x32xbf16> to vector<16x32xbf16>
    %c0_2 = arith.constant 0 : index
    %c0_3 = arith.constant 0 : index
    %c0_4 = arith.constant 0 : index
    %2 = vector.load %arg3[%c0_2, %c0_3, %c0_4] : memref<1x32x64xbf16, #tpu.memory_space<vmem>>, vector<1x32x64xbf16>
    %3 = vector.shape_cast %2 : vector<1x32x64xbf16> to vector<32x64xbf16>
    %cst = arith.constant dense<0.000000e+00> : vector<16x64xf32>
    %4 = tpu.matmul %1, %3, %cst {dimension_numbers = #tpu.dot_dimension_numbers<[1], [0], [0], [1], [0, 0, 1, 1], [], []>} : vector<16x32xbf16>, vector<32x64xbf16>, vector<16x64xf32> -> vector<16x64xf32>
    %c0_5 = arith.constant 0 : index
    %c0_6 = arith.constant 0 : index
    %c0_7 = arith.constant 0 : index
    %5 = vector.load %arg4[%c0_5, %c0_6, %c0_7] : memref<1x1x64xf32, #tpu.memory_space<vmem>>, vector<1x1x64xf32>
    %6 = vector.shape_cast %5 : vector<1x1x64xf32> to vector<1x64xf32>
    %7 = vector.broadcast %6 : vector<1x64xf32> to vector<16x64xf32>
    %8 = arith.addf %4, %7 : vector<16x64xf32>
    %cst_8 = arith.constant 5.000000e-01 : f32
    %9 = vector.broadcast %cst_8 : f32 to vector<16x64xf32>
    %10 = arith.mulf %9, %8 : vector<16x64xf32>
    %cst_9 = arith.constant 4.471500e-02 : f32
    %11 = vector.broadcast %cst_9 : f32 to vector<16x64xf32>
    %12 = arith.mulf %11, %8 : vector<16x64xf32>
    %13 = arith.mulf %12, %8 : vector<16x64xf32>
    %14 = arith.mulf %13, %8 : vector<16x64xf32>
    %15 = arith.addf %8, %14 : vector<16x64xf32>
    %cst_10 = arith.constant 0.797884583 : f32
    %16 = vector.broadcast %cst_10 : f32 to vector<16x64xf32>
    %17 = arith.mulf %16, %15 : vector<16x64xf32>
    %18 = math.tanh %17 : vector<16x64xf32>
    %cst_11 = arith.constant 1.000000e+00 : f32
    %19 = vector.broadcast %cst_11 : f32 to vector<16x64xf32>
    %20 = arith.addf %19, %18 : vector<16x64xf32>
    %21 = arith.mulf %10, %20 : vector<16x64xf32>
    %22 = arith.truncf %21 : vector<16x64xf32> to vector<16x64xbf16>
    %c0_12 = arith.constant 0 : index
    %c0_13 = arith.constant 0 : index
    %c0_14 = arith.constant 0 : index
    %23 = vector.load %arg5[%c0_12, %c0_13, %c0_14] : memref<1x16x64xbf16, #tpu.memory_space<vmem>>, vector<1x16x64xbf16>
    %24 = vector.shape_cast %23 : vector<1x16x64xbf16> to vector<16x64xbf16>
    %25 = vector.shape_cast %22 : vector<16x64xbf16> to vector<1x16x64xbf16>
    tpu.vector_store %arg5[%c0_12, %c0_13, %c0_14], %25 {strides = array<i32>} : memref<1x16x64xbf16, #tpu.memory_space<vmem>>, vector<1x16x64xbf16>,
    return
  }
  func.func @transform_0(%arg0: i32, %arg1: i32) -> (i32, i32, i32) {
    %c0_i32 = arith.constant 0 : i32
    %c0_i32_0 = arith.constant 0 : i32
    return %arg0, %arg1, %c0_i32 : i32, i32, i32
  }
  func.func @transform_1(%arg0: i32, %arg1: i32) -> (i32, i32, i32) {
    %c0_i32 = arith.constant 0 : i32
    %c0_i32_0 = arith.constant 0 : i32
    %c0_i32_1 = arith.constant 0 : i32
    return %arg0, %c0_i32, %c0_i32_0 : i32, i32, i32
  }
  func.func @transform_2(%arg0: i32, %arg1: i32) -> (i32, i32, i32) {
    %c0_i32 = arith.constant 0 : i32
    %c0_i32_0 = arith.constant 0 : i32
    %c0_i32_1 = arith.constant 0 : i32
    return %arg0, %c0_i32, %c0_i32_0 : i32, i32, i32
  }
  func.func @transform_3(%arg0: i32, %arg1: i32) -> (i32, i32, i32) {
    %c0_i32 = arith.constant 0 : i32
    %c0_i32_0 = arith.constant 0 : i32
    return %arg0, %arg1, %c0_i32 : i32, i32, i32
  }
}

</mosaic_0001>

<llo_original>
// kernel: _lambda_.13
$region0: #{_lambda_.13}
  #allocation0 [shape = 'u32[]', space=smem, size = 0x4, offset = 0x4, fixed_abs, tag = 'smem constant byte address 0x4 - core index']
  #allocation1 [shape = 'u32[72,128]{1,0:T(1,128)}', space=vmem, size = 0x9000, scoped, tag = 'internal scratch']
  %s0 = inlined_call_operand.vmem [shape: bf16[2,2,8,96], index: 0, kind: input, shape index: {}, may-alias: {0,1}]
  %s1 = inlined_call_operand.vmem [shape: bf16[2,2,8,96], index: 1, kind: input, shape index: {}, may-alias: {0,1}]
  %s2 = inlined_call_operand.vmem [shape: f32[2,1,8], index: 2, kind: input, shape index: {}]
  %s3 = inlined_call_operand.vmem [shape: bf16[2,2,8,32], index: 3, kind: output, shape index: {}]
  %s4 = sld [smem:[#allocation0]]
  $region45: #{_lambda_.13} parent=0
    _
  %s6 = ssub.s32 1, %s4
  %s7 = scalar_select 0, %s6, %s4
  loop: start=0, step=1, limit=6
  $region2: #{_lambda_.13} parent=0 // loop_pre_header
    _
  $region3: #{_lambda_.13} parent=0 // loop_header
    %s9 = sphi 0, %s13
    %p10 = scmp.ge.s32.totalorder %s9, 6
    %s16 = sphi 0, %s35
    %s17 = sphi 0, %s31
    %s18 = sphi 0, %s27
    %s19 = sphi 0, %s16
    %s20 = sphi 0, %s17
    %s21 = sphi 0, %s18
    %s22 = sphi 0, %s19
    %s23 = sphi 0, %s20
    %s24 = sphi 0, %s21
    %s42 = sphi 0, %s44
    %s45 = sphi 0, %s42
    %s46 = sphi 0, %s45
    %s62 = sphi 0, %s46
    %s70 = sphi 0, %s72
    %s73 = sphi 0, %s70
    %s74 = sphi 0, %s73
    %s90 = sphi 0, %s74
    %s96 = sphi 0, %s98
    %s99 = sphi 0, %s96
    %s100 = sphi 0, %s99
    %s116 = sphi 0, %s100
    %s126 = sphi 0, %s128
    %s129 = sphi 0, %s126
    %s130 = sphi 0, %s129
    %s146 = sphi 0, %s130
  $region4: #{_lambda_.13} parent=0 // loop_header_branch
    %12 = sbr.rel (%p10) target = $region8
  $region5: #{_lambda_.13} parent=0 // loop_body
    %s14 = ssub.s32 %s9, 1
    %s15 = ssub.s32 %s9, 2
    %s25 = sadd.s32 1, %s18
    %p26 = scmp.ge.s32.totalorder %s25, 1
    %s27 = scalar_select %p26, 0, %s25
    %s28 = sadd.s32 1, %s17
    %s29 = scalar_select %p26, %s28, %s17
    %p30 = scmp.ge.s32.totalorder %s29, 2
    %s31 = scalar_select %p30, 0, %s29
    %s32 = sadd.s32 1, %s16
    %s33 = scalar_select %p30, %s32, %s16
    %p34 = scmp.ge.s32.totalorder %s33, 2
    %s35 = scalar_select %p34, 0, %s33
    %s36 = ssub.s32 %s16, %s35
    %s37 = ssub.s32 %s17, %s31
    %s38 = sor.u32 %s36, %s37
    %s39 = ssub.s32 %s18, %s27
    %s40 = sor.u32 %s38, %s39
    %p41 = scmp.eq.s32.totalorder %s40, 0
    %s43 = sadd.s32 %s42, 1
    %s44 = scalar_select %p41, %s42, %s43
    %p47 = pneg %p41
    %p48 = scmp.eq.s32.totalorder %s9, 3
    %p49 = por %p47, %p48
    %p50 = scmp.ne.s32.totalorder %s42, %s45
    %p51 = scmp.eq.s32.totalorder %s9, 0
    %p52 = por %p50, %p51
    %p53 = scmp.ne.s32.totalorder %s42, %s45
    %p54 = scmp.eq.s32.totalorder %s14, 3
    %p55 = por %p53, %p54
    %p56 = scmp.ne.s32.totalorder %s45, %s46
    %p57 = scmp.eq.s32.totalorder %s14, 0
    %p58 = por %p56, %p57
    %p59 = scmp.ne.s32.totalorder %s45, %s46
    %p60 = scmp.eq.s32.totalorder %s15, 3
    %p61 = por %p59, %p60
    %p63 = scmp.ne.s32.totalorder %s46, %s62
    %p64 = scmp.eq.s32.totalorder %s15, 0
    %p65 = por %p63, %p64
    %s66 = ssub.s32 %s16, %s35
    %s67 = ssub.s32 %s17, %s31
    %s68 = sor.u32 %s66, %s67
    %p69 = scmp.eq.s32.totalorder %s68, 0
    %s71 = sadd.s32 %s70, 1
    %s72 = scalar_select %p69, %s70, %s71
    %p75 = pneg %p69
    %p76 = scmp.eq.s32.totalorder %s9, 3
    %p77 = por %p75, %p76
    %p78 = scmp.ne.s32.totalorder %s70, %s73
    %p79 = scmp.eq.s32.totalorder %s9, 0
    %p80 = por %p78, %p79
    %p81 = scmp.ne.s32.totalorder %s70, %s73
    %p82 = scmp.eq.s32.totalorder %s14, 3
    %p83 = por %p81, %p82
    %p84 = scmp.ne.s32.totalorder %s73, %s74
    %p85 = scmp.eq.s32.totalorder %s14, 0
    %p86 = por %p84, %p85
    %p87 = scmp.ne.s32.totalorder %s73, %s74
    %p88 = scmp.eq.s32.totalorder %s15, 3
    %p89 = por %p87, %p88
    %p91 = scmp.ne.s32.totalorder %s74, %s90
    %p92 = scmp.eq.s32.totalorder %s15, 0
    %p93 = por %p91, %p92
    %s94 = ssub.s32 %s17, %s31
    %p95 = scmp.eq.s32.totalorder %s94, 0
    %s97 = sadd.s32 %s96, 1
    %s98 = scalar_select %p95, %s96, %s97
    %p101 = pneg %p95
    %p102 = scmp.eq.s32.totalorder %s9, 3
    %p103 = por %p101, %p102
    %p104 = scmp.ne.s32.totalorder %s96, %s99
    %p105 = scmp.eq.s32.totalorder %s9, 0
    %p106 = por %p104, %p105
    %p107 = scmp.ne.s32.totalorder %s96, %s99
    %p108 = scmp.eq.s32.totalorder %s14, 3
    %p109 = por %p107, %p108
    %p110 = scmp.ne.s32.totalorder %s99, %s100
    %p111 = scmp.eq.s32.totalorder %s14, 0
    %p112 = por %p110, %p111
    %p113 = scmp.ne.s32.totalorder %s99, %s100
    %p114 = scmp.eq.s32.totalorder %s15, 3
    %p115 = por %p113, %p114
    %p117 = scmp.ne.s32.totalorder %s100, %s116
    %p118 = scmp.eq.s32.totalorder %s15, 0
    %p119 = por %p117, %p118
    %s120 = ssub.s32 %s16, %s35
    %s121 = ssub.s32 %s17, %s31
    %s122 = sor.u32 %s120, %s121
    %s123 = ssub.s32 %s18, %s27
    %s124 = sor.u32 %s122, %s123
    %p125 = scmp.eq.s32.totalorder %s124, 0
    %s127 = sadd.s32 %s126, 1
    %s128 = scalar_select %p125, %s126, %s127
    %p131 = pneg %p125
    %p132 = scmp.eq.s32.totalorder %s9, 3
    %p133 = por %p131, %p132
    %p134 = scmp.ne.s32.totalorder %s126, %s129
    %p135 = scmp.eq.s32.totalorder %s9, 0
    %p136 = por %p134, %p135
    %p137 = scmp.ne.s32.totalorder %s126, %s129
    %p138 = scmp.eq.s32.totalorder %s14, 3
    %p139 = por %p137, %p138
    %p140 = scmp.ne.s32.totalorder %s129, %s130
    %p141 = scmp.eq.s32.totalorder %s14, 0
    %p142 = por %p140, %p141
    %p143 = scmp.ne.s32.totalorder %s129, %s130
    %p144 = scmp.eq.s32.totalorder %s15, 3
    %p145 = por %p143, %p144
    %p147 = scmp.ne.s32.totalorder %s130, %s146
    %p148 = scmp.eq.s32.totalorder %s15, 0
    %p149 = por %p147, %p148
    %p150 = scmp.le.s32.totalorder 1, %s9
    %p151 = scmp.lt.s32.totalorder %s9, 5
    %p152 = pnand %p150, %p151
    %p153 = pneg %p152
    // Predicated region
    $region9: #{_lambda_.13} parent=5 // pred_check
      _
    $region10: #{_lambda_.13} parent=5 // pred_check_branch
      %155 = sbr.rel (%p152) target = $region12
    $region11: #{_lambda_.13} parent=5 // pred_region
      %s156 = ssub.s32 %s9, 1
    $region12: #{_lambda_.13} parent=5 // pred_fallthru
      _
    %p157 = scmp.lt.s32.totalorder %s9, 4
    // Predicated region
    $region13: #{_lambda_.13} parent=5 // pred_check
      %p158 = pneg %p157
    $region14: #{_lambda_.13} parent=5 // pred_check_branch
      %160 = sbr.rel (%p158) target = $region16
    $region15: #{_lambda_.13} parent=5 // pred_region
      // Predicated region
      $region17: #{_lambda_.13} parent=15 // pred_check
        %p161 = pneg %p52
      $region18: #{_lambda_.13} parent=15 // pred_check_branch
        %163 = sbr.rel (%p161) target = $region20
      $region19: #{_lambda_.13} parent=15 // pred_region
        %p164 = scmp.lt.s32.totalorder %s16, 1
        %s165 = scalar_select %p164, %s16, 1
        %p166 = scmp.lt.s32.totalorder %s17, 1
        %s167 = scalar_select %p166, %s17, 1
        %p168 = scmp.lt.s32.totalorder %s18, 0
        %s169 = scalar_select %p168, %s18, 0
        %s170 = sadd.s32 %s169, %s167
        %s171 = smul.addr %s165, 2
        %s172 = sadd.s32 %s170, %s171
        %s173 = smul.addr %s172, 4
        %s174 = scalar_lea.vmem %s0, %s173
      $region20: #{_lambda_.13} parent=15 // pred_fallthru
        _
      // Predicated region
      $region21: #{_lambda_.13} parent=15 // pred_check
        %p175 = pneg %p80
      $region22: #{_lambda_.13} parent=15 // pred_check_branch
        %177 = sbr.rel (%p175) target = $region24
      $region23: #{_lambda_.13} parent=15 // pred_region
        %p178 = scmp.lt.s32.totalorder %s16, 1
        %s179 = scalar_select %p178, %s16, 1
        %p180 = scmp.lt.s32.totalorder %s17, 1
        %s181 = scalar_select %p180, %s17, 1
        %s182 = smul.addr %s179, 2
        %s183 = sadd.s32 %s181, %s182
        %s184 = smul.addr %s183, 4
        %s185 = scalar_lea.vmem %s1, %s184
      $region24: #{_lambda_.13} parent=15 // pred_fallthru
        _
      // Predicated region
      $region25: #{_lambda_.13} parent=15 // pred_check
        %p186 = pneg %p106
      $region26: #{_lambda_.13} parent=15 // pred_check_branch
        %188 = sbr.rel (%p186) target = $region28
      $region27: #{_lambda_.13} parent=15 // pred_region
        %p189 = scmp.lt.s32.totalorder %s17, 1
        %s190 = scalar_select %p189, %s17, 1
        %s191 = scalar_lea.vmem %s2, %s190
      $region28: #{_lambda_.13} parent=15 // pred_fallthru
        _
    $region16: #{_lambda_.13} parent=5 // pred_fallthru
      _
    %p192 = scmp.le.s32.totalorder 1, %s9
    %p193 = scmp.lt.s32.totalorder %s9, 5
    %p194 = pnand %p192, %p193
    %p195 = pneg %p194
    // Predicated region
    $region29: #{_lambda_.13} parent=5 // pred_check
      _
    $region30: #{_lambda_.13} parent=5 // pred_check_branch
      %197 = sbr.rel (%p194) target = $region32
    $region31: #{_lambda_.13} parent=5 // pred_region
      %s198 = ssub.s32 %s9, 1
      %p199 = scmp.lt.s32.totalorder %s19, 1
      %s200 = scalar_select %p199, %s19, 1
      %p201 = scmp.lt.s32.totalorder %s20, 1
      %s202 = scalar_select %p201, %s20, 1
      %p203 = scmp.lt.s32.totalorder %s21, 0
      %s204 = scalar_select %p203, %s21, 0
      %s205 = sadd.s32 %s204, %s202
      %s206 = smul.addr %s200, 2
      %s207 = sadd.s32 %s205, %s206
      %s208 = smul.addr %s207, 4
      %s209 = scalar_lea.vmem %s0, %s208
      %p210 = pneg %p58
      %p211 = pneg %p55
      %p212 = scmp.lt.s32.totalorder %s19, 1
      %s213 = scalar_select %p212, %s19, 1
      %p214 = scmp.lt.s32.totalorder %s20, 1
      %s215 = scalar_select %p214, %s20, 1
      %s216 = smul.addr %s213, 2
      %s217 = sadd.s32 %s215, %s216
      %s218 = smul.addr %s217, 4
      %s219 = scalar_lea.vmem %s1, %s218
      %p220 = pneg %p86
      %p221 = pneg %p83
      %p222 = scmp.lt.s32.totalorder %s20, 1
      %s223 = scalar_select %p222, %s20, 1
      %s224 = scalar_lea.vmem %s2, %s223
      %p225 = pneg %p112
      %p226 = pneg %p109
      %p227 = pneg %p142
      %p228 = pneg %p139
      %p229 = scmp.lt.s32.totalorder %s19, 1
      %s230 = scalar_select %p229, %s19, 1
      %p231 = scmp.lt.s32.totalorder %s20, 1
      %s232 = scalar_select %p231, %s20, 1
      %p233 = scmp.lt.s32.totalorder %s21, 0
      %s234 = scalar_select %p233, %s21, 0
      %s235 = sadd.s32 %s234, %s232
      %s236 = smul.addr %s230, 2
      %s237 = sadd.s32 %s235, %s236
      %s238 = smul.addr %s237, 4
      %s239 = scalar_lea.vmem %s3, %s238
      %p240 = scmp.lt.s32.totalorder %s19, 1
      %s241 = scalar_select %p240, %s19, 1
      %p242 = scmp.lt.s32.totalorder %s20, 1
      %s243 = scalar_select %p242, %s20, 1
      %p244 = scmp.lt.s32.totalorder %s21, 0
      %s245 = scalar_select %p244, %s21, 0
      %s246 = sadd.s32 %s245, %s243
      %s247 = smul.addr %s241, 2
      %s248 = sadd.s32 %s246, %s247
      %s249 = smul.addr %s248, 4
      %s250 = scalar_lea.vmem %s0, %s249
      %p251 = scmp.lt.s32.totalorder %s19, 1
      %s252 = scalar_select %p251, %s19, 1
      %p253 = scmp.lt.s32.totalorder %s20, 1
      %s254 = scalar_select %p253, %s20, 1
      %s255 = smul.addr %s252, 2
      %s256 = sadd.s32 %s254, %s255
      %s257 = smul.addr %s256, 4
      %s258 = scalar_lea.vmem %s1, %s257
      %p259 = scmp.lt.s32.totalorder %s20, 1
      %s260 = scalar_select %p259, %s20, 1
      %s261 = scalar_lea.vmem %s2, %s260
      %p262 = scmp.lt.s32.totalorder %s19, 1
      %s263 = scalar_select %p262, %s19, 1
      %p264 = scmp.lt.s32.totalorder %s20, 1
      %s265 = scalar_select %p264, %s20, 1
      %p266 = scmp.lt.s32.totalorder %s21, 0
      %s267 = scalar_select %p266, %s21, 0
      %s268 = sadd.s32 %s267, %s265
      %s269 = smul.addr %s263, 2
      %s270 = sadd.s32 %s268, %s269
      %s271 = smul.addr %s270, 4
      %s272 = scalar_lea.vmem %s3, %s271
      %v274 = vld [vmem:[%s261] sm:$0x1]
      %v275 = vld [vmem:[%s250] sm:$0xf]
      %v276 = vunpack.c.l.bf16 %v275
      %v277 = vmul.f32 %v276, 0.25
      %v278 = vpack.c.bf16 %v277, %v277
      %v279 = vld [vmem:[%s258] sm:$0xf]
      %v281 = vperm.slane %v274, 0
      %v284 = vunpack.c.l.b16 %v279
      %v285 = vpack.c.b16 %v284, %v284
      %286 = vrot.lane.b32.xlu0 %v285, 96
      %v287 = vpop.permute.xlu0 %286
      %vm288 = vcmask 130048
      %v290 = vsel %vm288, %v278, 0
      %v293 = vsel %vm288, %v287, 0
      %295 = vmatpush.bf16.xpose.msra.mxu0 0
      %296 = vmatpush.bf16.xpose.msra.mxu0 0
      %297 = vmatpush.bf16.xpose.msra.mxu0 0
      %298 = vmatpush.bf16.xpose.msra.mxu0 0
      %299 = vmatpush.bf16.xpose.msra.mxu0 0
      %300 = vmatpush.bf16.xpose.msra.mxu0 0
      %301 = vmatpush.bf16.xpose.msra.mxu0 0
      %302 = vmatpush.bf16.xpose.msra.mxu0 %v293
      %303 = vmatmul.bf16.gmra.mxu0 %v290
      %v304 = vpop.f32.mrf.mxu0
      %v305 = vadd.f32 %v281, %v304
      %v306 = vpop.f32.mrf.mxu0
      %307 = vdwg.mxu0
      %vm308 = vcmask 64512
      %v309 = vsel %vm308, %v305, -inf
      %310 = vmax.xlane.f32.xlu0 %v309
      %v311 = vpop.xlane.xlu0 %310
      %v312 = vsub.f32 %v305, %v311
      %v313 = vmul.f32 %v312, 1.442695
      %v314 = vpow.pop %v313
      %v315 = vsel %vm308, %v314, 0.0
      %316 = vadd.xlane.f32.xlu0 %v315
      %v317 = vpop.xlane.xlu0 %316
      %v318 = vpack.c.bf16 %v314, %v314
      %319 = vrot.lane.b32.xlu0 %v285, 64
      %v320 = vpop.permute.xlu0 %319
      %v322 = vsel %vm308, %v318, 0
      %vm324 = vcmask 1043456
      %v326 = vsel %vm324, %v320, 0
      %328 = vmatpush.bf16.msra.mxu0 0
      %329 = vmatpush.bf16.msra.mxu0 0
      %330 = vmatpush.bf16.msra.mxu0 0
      %331 = vmatpush.bf16.msra.mxu0 0
      %332 = vmatpush.bf16.msra.mxu0 0
      %333 = vmatpush.bf16.msra.mxu0 0
      %334 = vmatpush.bf16.msra.mxu0 0
      %335 = vmatpush.bf16.msra.mxu0 %v326
      %336 = vmatmul.bf16.gmra.mxu0 %v322
      %v337 = vpop.f32.mrf.mxu0
      %v338 = vadd.f32 0.0, %v337
      %v339 = vpop.f32.mrf.mxu0
      %340 = vdwg.mxu0
      %v341 = vrcp.pop %v317
      %v342 = vmul.f32 %v317, %v341
      %v343 = vsub.f32 1.0, %v342
      %v344 = vmul.f32 %v341, %v343
      %v345 = vadd.f32 %v341, %v344
      %vm346 = vweird.f32 %v317
      %vm347 = vweird.f32 %v341
      %vm348 = vmor %vm346, %vm347
      %v349 = vsel %vm348, %v341, %v345
      %v350 = vand.u32 2147483647, %v317
      %vm351 = vcmp.eq.f32.partialorder %v350, 8.507059e+37
      %v352 = vand.u32 %v317, 2147483648
      %v353 = vor.u32 1.1754944e-38, %v352
      %v354 = vsel %vm351, %v353, %v349
      %v355 = vmul.f32 %v338, %v354
      %357 = vrot.lane.b32.xlu0 %v278, 112
      %v358 = vpop.permute.xlu0 %357
      %359 = vrot.lane.b32.xlu0 %v285, 80
      %v360 = vpop.permute.xlu0 %359
      %v362 = vsel %vm288, %v358, 0
      %v365 = vsel %vm288, %v360, 0
      %367 = vmatpush.bf16.xpose.msra.mxu0 0
      %368 = vmatpush.bf16.xpose.msra.mxu0 0
      %369 = vmatpush.bf16.xpose.msra.mxu0 0
      %370 = vmatpush.bf16.xpose.msra.mxu0 0
      %371 = vmatpush.bf16.xpose.msra.mxu0 0
      %372 = vmatpush.bf16.xpose.msra.mxu0 0
      %373 = vmatpush.bf16.xpose.msra.mxu0 0
      %374 = vmatpush.bf16.xpose.msra.mxu0 %v365
      %375 = vmatmul.bf16.gmra.mxu0 %v362
      %v376 = vpop.f32.mrf.mxu0
      %v377 = vadd.f32 %v281, %v376
      %v378 = vpop.f32.mrf.mxu0
      %379 = vdwg.mxu0
      %v380 = vsel %vm308, %v377, -inf
      %381 = vmax.xlane.f32.xlu0 %v380
      %v382 = vpop.xlane.xlu0 %381
      %v383 = vsub.f32 %v377, %v382
      %v384 = vmul.f32 %v383, 1.442695
      %v385 = vpow.pop %v384
      %v386 = vsel %vm308, %v385, 0.0
      %387 = vadd.xlane.f32.xlu0 %v386
      %v388 = vpop.xlane.xlu0 %387
      %v389 = vpack.c.bf16 %v385, %v385
      %390 = vrot.lane.b32.xlu0 %v285, 48
      %v391 = vpop.permute.xlu0 %390
      %v393 = vsel %vm308, %v389, 0
      %v396 = vsel %vm324, %v391, 0
      %398 = vmatpush.bf16.msra.mxu0 0
      %399 = vmatpush.bf16.msra.mxu0 0
      %400 = vmatpush.bf16.msra.mxu0 0
      %401 = vmatpush.bf16.msra.mxu0 0
      %402 = vmatpush.bf16.msra.mxu0 0
      %403 = vmatpush.bf16.msra.mxu0 0
      %404 = vmatpush.bf16.msra.mxu0 0
      %405 = vmatpush.bf16.msra.mxu0 %v396
      %406 = vmatmul.bf16.gmra.mxu0 %v393
      %v407 = vpop.f32.mrf.mxu0
      %v408 = vadd.f32 0.0, %v407
      %v409 = vpop.f32.mrf.mxu0
      %410 = vdwg.mxu0
      %v411 = vrcp.pop %v388
      %v412 = vmul.f32 %v388, %v411
      %v413 = vsub.f32 1.0, %v412
      %v414 = vmul.f32 %v411, %v413
      %v415 = vadd.f32 %v411, %v414
      %vm416 = vweird.f32 %v388
      %vm417 = vweird.f32 %v411
      %vm418 = vmor %vm416, %vm417
      %v419 = vsel %vm418, %v411, %v415
      %v420 = vand.u32 2147483647, %v388
      %vm421 = vcmp.eq.f32.partialorder %v420, 8.507059e+37
      %v422 = vand.u32 %v388, 2147483648
      %v423 = vor.u32 1.1754944e-38, %v422
      %v424 = vsel %vm421, %v423, %v419
      %v425 = vmul.f32 %v408, %v424
      %427 = vrot.lane.b32.xlu0 %v425, 16
      %v428 = vpop.permute.xlu0 %427
      %v430 = vsel %vm288, %v355, %v428
      %v431 = vpack.c.bf16 %v430, %v430
      %vm432 = vcmask 257024
      %433 = vst.msk [vmem:[%s272] sm:$0xf] %vm432, %v431
      %p434 = scmp.lt.s32.totalorder %s19, 1
      %s435 = scalar_select %p434, %s19, 1
      %p436 = scmp.lt.s32.totalorder %s20, 1
      %s437 = scalar_select %p436, %s20, 1
      %p438 = scmp.lt.s32.totalorder %s21, 0
      %s439 = scalar_select %p438, %s21, 0
      %s440 = sadd.s32 %s439, %s437
      %s441 = smul.addr %s435, 2
      %s442 = sadd.s32 %s440, %s441
      %s443 = smul.addr %s442, 4
      %s444 = scalar_lea.vmem %s3, %s443
      // Predicated region
      $region33: #{_lambda_.13} parent=31 // pred_check
        %p445 = pneg %p139
      $region34: #{_lambda_.13} parent=31 // pred_check_branch
        %447 = sbr.rel (%p445) target = $region36
      $region35: #{_lambda_.13} parent=31 // pred_region
        _
      $region36: #{_lambda_.13} parent=31 // pred_fallthru
        _
    $region32: #{_lambda_.13} parent=5 // pred_fallthru
      _
    %p448 = scmp.le.s32.totalorder 2, %s9
    // Predicated region
    $region37: #{_lambda_.13} parent=5 // pred_check
      %p449 = pneg %p448
    $region38: #{_lambda_.13} parent=5 // pred_check_branch
      %451 = sbr.rel (%p449) target = $region40
    $region39: #{_lambda_.13} parent=5 // pred_region
      %s452 = ssub.s32 %s9, 2
      // Predicated region
      $region41: #{_lambda_.13} parent=39 // pred_check
        %p453 = pneg %p145
      $region42: #{_lambda_.13} parent=39 // pred_check_branch
        %455 = sbr.rel (%p453) target = $region44
      $region43: #{_lambda_.13} parent=39 // pred_region
        %p456 = scmp.lt.s32.totalorder %s22, 1
        %s457 = scalar_select %p456, %s22, 1
        %p458 = scmp.lt.s32.totalorder %s23, 1
        %s459 = scalar_select %p458, %s23, 1
        %p460 = scmp.lt.s32.totalorder %s24, 0
        %s461 = scalar_select %p460, %s24, 0
        %s462 = sadd.s32 %s461, %s459
        %s463 = smul.addr %s457, 2
        %s464 = sadd.s32 %s462, %s463
        %s465 = smul.addr %s464, 4
        %s466 = scalar_lea.vmem %s3, %s465
      $region44: #{_lambda_.13} parent=39 // pred_fallthru
        _
    $region40: #{_lambda_.13} parent=5 // pred_fallthru
      _
  $region6: #{_lambda_.13} parent=0 // loop_footer
    %s13 = sadd.s32 1, %s9
  $region7: #{_lambda_.13} parent=0 // loop_footer_branch
    %8 = sbr.rel target = $region3
  $region8: #{_lambda_.13} parent=0 // loop_exit
    _

// kernel: _lambda_.12
$region0: #{_lambda_.12}
  #allocation0 [shape = 'u32[]', space=smem, size = 0x4, offset = 0x4, fixed_abs, tag = 'smem constant byte address 0x4 - core index']
  #allocation1 [shape = 'u32[72,128]{1,0:T(1,128)}', space=vmem, size = 0x9000, scoped, tag = 'internal scratch']
  %s0 = inlined_call_operand.vmem [shape: bf16[2,16,32], index: 0, kind: input, shape index: {}]
  %s1 = inlined_call_operand.hbm [shape: bf16[2,32,96], index: 1, kind: input, shape index: {}]
  %s2 = inlined_call_operand.vmem [shape: f32[2,1,96], index: 2, kind: input, shape index: {}]
  %s3 = inlined_call_operand.vmem [shape: bf16[2,16,96], index: 3, kind: output, shape index: {}]
  %s4 = sld [smem:[#allocation0]]
  $region49: #{_lambda_.12} parent=0
    _
  %s6 = ssub.s32 1, %s4
  %s7 = scalar_select 0, %s6, %s4
  $region1: #{_lambda_.12} parent=0
    #allocation2 [shape = 'u8[16384]{0}', space=vmem, size = 0x4000, scoped, tag = 'input window, operand 1']
    #allocation3 [shape = 's32[2]{0}', space=sflag, size = 0x8, scoped, tag = 'scoped memory for _lambda_.12']
    %8 = vsyncpa [#allocation3], 0
    %s9 = scalar_lea.sflag [#allocation3], 1
    %10 = vsyncpa %s9, 0
    loop: start=0, step=1, limit=4
    $region2: #{_lambda_.12} parent=1 // loop_pre_header
      _
    $region3: #{_lambda_.12} parent=1 // loop_header
      %s12 = sphi 0, %s16
      %p13 = scmp.ge.s32.totalorder %s12, 4
      %s19 = sphi 0, %s31
      %s20 = sphi 0, %s27
      %s21 = sphi 0, %s19
      %s22 = sphi 0, %s20
      %s23 = sphi 0, %s21
      %s24 = sphi 0, %s22
      %s36 = sphi 0, %s38
      %s39 = sphi 0, %s36
      %s40 = sphi 0, %s39
      %s56 = sphi 0, %s40
      %s62 = sphi 0, %s64
      %s65 = sphi 0, %s62
      %s66 = sphi 0, %s65
      %s82 = sphi 0, %s66
      %s88 = sphi 0, %s90
      %s91 = sphi 0, %s88
      %s92 = sphi 0, %s91
      %s108 = sphi 0, %s92
      %s116 = sphi 0, %s118
      %s119 = sphi 0, %s116
      %s120 = sphi 0, %s119
      %s136 = sphi 0, %s120
    $region4: #{_lambda_.12} parent=1 // loop_header_branch
      %15 = sbr.rel (%p13) target = $region8
    $region5: #{_lambda_.12} parent=1 // loop_body
      %s17 = ssub.s32 %s12, 1
      %s18 = ssub.s32 %s12, 2
      %s25 = sadd.s32 1, %s20
      %p26 = scmp.ge.s32.totalorder %s25, 1
      %s27 = scalar_select %p26, 0, %s25
      %s28 = sadd.s32 1, %s19
      %s29 = scalar_select %p26, %s28, %s19
      %p30 = scmp.ge.s32.totalorder %s29, 2
      %s31 = scalar_select %p30, 0, %s29
      %s32 = ssub.s32 %s19, %s31
      %s33 = ssub.s32 %s20, %s27
      %s34 = sor.u32 %s32, %s33
      %p35 = scmp.eq.s32.totalorder %s34, 0
      %s37 = sadd.s32 %s36, 1
      %s38 = scalar_select %p35, %s36, %s37
      %p41 = pneg %p35
      %p42 = scmp.eq.s32.totalorder %s12, 1
      %p43 = por %p41, %p42
      %p44 = scmp.ne.s32.totalorder %s36, %s39
      %p45 = scmp.eq.s32.totalorder %s12, 0
      %p46 = por %p44, %p45
      %p47 = scmp.ne.s32.totalorder %s36, %s39
      %p48 = scmp.eq.s32.totalorder %s17, 1
      %p49 = por %p47, %p48
      %p50 = scmp.ne.s32.totalorder %s39, %s40
      %p51 = scmp.eq.s32.totalorder %s17, 0
      %p52 = por %p50, %p51
      %p53 = scmp.ne.s32.totalorder %s39, %s40
      %p54 = scmp.eq.s32.totalorder %s18, 1
      %p55 = por %p53, %p54
      %p57 = scmp.ne.s32.totalorder %s40, %s56
      %p58 = scmp.eq.s32.totalorder %s18, 0
      %p59 = por %p57, %p58
      %s60 = ssub.s32 %s19, %s31
      %p61 = scmp.eq.s32.totalorder %s60, 0
      %s63 = sadd.s32 %s62, 1
      %s64 = scalar_select %p61, %s62, %s63
      %p67 = pneg %p61
      %p68 = scmp.eq.s32.totalorder %s12, 1
      %p69 = por %p67, %p68
      %p70 = scmp.ne.s32.totalorder %s62, %s65
      %p71 = scmp.eq.s32.totalorder %s12, 0
      %p72 = por %p70, %p71
      %p73 = scmp.ne.s32.totalorder %s62, %s65
      %p74 = scmp.eq.s32.totalorder %s17, 1
      %p75 = por %p73, %p74
      %p76 = scmp.ne.s32.totalorder %s65, %s66
      %p77 = scmp.eq.s32.totalorder %s17, 0
      %p78 = por %p76, %p77
      %p79 = scmp.ne.s32.totalorder %s65, %s66
      %p80 = scmp.eq.s32.totalorder %s18, 1
      %p81 = por %p79, %p80
      %p83 = scmp.ne.s32.totalorder %s66, %s82
      %p84 = scmp.eq.s32.totalorder %s18, 0
      %p85 = por %p83, %p84
      %s86 = ssub.s32 %s19, %s31
      %p87 = scmp.eq.s32.totalorder %s86, 0
      %s89 = sadd.s32 %s88, 1
      %s90 = scalar_select %p87, %s88, %s89
      %p93 = pneg %p87
      %p94 = scmp.eq.s32.totalorder %s12, 1
      %p95 = por %p93, %p94
      %p96 = scmp.ne.s32.totalorder %s88, %s91
      %p97 = scmp.eq.s32.totalorder %s12, 0
      %p98 = por %p96, %p97
      %p99 = scmp.ne.s32.totalorder %s88, %s91
      %p100 = scmp.eq.s32.totalorder %s17, 1
      %p101 = por %p99, %p100
      %p102 = scmp.ne.s32.totalorder %s91, %s92
      %p103 = scmp.eq.s32.totalorder %s17, 0
      %p104 = por %p102, %p103
      %p105 = scmp.ne.s32.totalorder %s91, %s92
      %p106 = scmp.eq.s32.totalorder %s18, 1
      %p107 = por %p105, %p106
      %p109 = scmp.ne.s32.totalorder %s92, %s108
      %p110 = scmp.eq.s32.totalorder %s18, 0
      %p111 = por %p109, %p110
      %s112 = ssub.s32 %s19, %s31
      %s113 = ssub.s32 %s20, %s27
      %s114 = sor.u32 %s112, %s113
      %p115 = scmp.eq.s32.totalorder %s114, 0
      %s117 = sadd.s32 %s116, 1
      %s118 = scalar_select %p115, %s116, %s117
      %p121 = pneg %p115
      %p122 = scmp.eq.s32.totalorder %s12, 1
      %p123 = por %p121, %p122
      %p124 = scmp.ne.s32.totalorder %s116, %s119
      %p125 = scmp.eq.s32.totalorder %s12, 0
      %p126 = por %p124, %p125
      %p127 = scmp.ne.s32.totalorder %s116, %s119
      %p128 = scmp.eq.s32.totalorder %s17, 1
      %p129 = por %p127, %p128
      %p130 = scmp.ne.s32.totalorder %s119, %s120
      %p131 = scmp.eq.s32.totalorder %s17, 0
      %p132 = por %p130, %p131
      %p133 = scmp.ne.s32.totalorder %s119, %s120
      %p134 = scmp.eq.s32.totalorder %s18, 1
      %p135 = por %p133, %p134
      %p137 = scmp.ne.s32.totalorder %s120, %s136
      %p138 = scmp.eq.s32.totalorder %s18, 0
      %p139 = por %p137, %p138
      %p140 = scmp.le.s32.totalorder 1, %s12
      %p141 = scmp.lt.s32.totalorder %s12, 3
      %p142 = pnand %p140, %p141
      %p143 = pneg %p142
      // Predicated region
      $region9: #{_lambda_.12} parent=5 // pred_check
        _
      $region10: #{_lambda_.12} parent=5 // pred_check_branch
        %145 = sbr.rel (%p142) target = $region12
      $region11: #{_lambda_.12} parent=5 // pred_region
        %s146 = ssub.s32 %s12, 1
      $region12: #{_lambda_.12} parent=5 // pred_fallthru
        _
      %p147 = scmp.lt.s32.totalorder %s12, 2
      // Predicated region
      $region13: #{_lambda_.12} parent=5 // pred_check
        %p148 = pneg %p147
      $region14: #{_lambda_.12} parent=5 // pred_check_branch
        %150 = sbr.rel (%p148) target = $region16
      $region15: #{_lambda_.12} parent=5 // pred_region
        // Predicated region
        $region17: #{_lambda_.12} parent=15 // pred_check
          %p151 = pneg %p46
        $region18: #{_lambda_.12} parent=15 // pred_check_branch
          %153 = sbr.rel (%p151) target = $region20
        $region19: #{_lambda_.12} parent=15 // pred_region
          %s154 = smul.u32 2, %s20
          %p155 = scmp.lt.s32.totalorder %s19, 1
          %s156 = scalar_select %p155, %s19, 1
          %p157 = scmp.lt.s32.totalorder %s154, 1
          %s158 = scalar_select %p157, %s154, 1
          %s159 = smul.addr %s156, 2
          %s160 = sadd.s32 %s158, %s159
          %s161 = smul.addr %s160, 4
          %s162 = scalar_lea.vmem %s0, %s161
          %s163 = smul.u32 2, %s20
        $region20: #{_lambda_.12} parent=15 // pred_fallthru
          _
        // Predicated region
        $region21: #{_lambda_.12} parent=15 // pred_check
          %p164 = pneg %p72
        $region22: #{_lambda_.12} parent=15 // pred_check_branch
          %166 = sbr.rel (%p164) target = $region24
        $region23: #{_lambda_.12} parent=15 // pred_region
          %s167 = sand.u32 %s62, 1
          %s168 = scalar_lea.sflag [#allocation3], %s167
          %s169 = sand.u32 %s62, 1
          %s170 = smul.addr %s169, 16
          %s171 = scalar_lea.vmem [#allocation2], %s170
          %173 = vsyncadd %s168, 0
          %s174 = smul.addr %s19, 4
          %s175 = smul.addr %s174, 4
          %s176 = scalar_lea.hbm %s1, %s175
          %s177 = sshll.u32 %s176, 4
          %s178 = int_to_ptr.hbm [resolvable:$true] %s177
          %s179 = sshll.u32 %s171, 4
          %s180 = int_to_ptr.vmem [resolvable:$true] %s179
          %185 = dma.hbm_to_vmem [thread:$0]  %s178, 256, %s180, %s168, 64, 64, 4
        $region24: #{_lambda_.12} parent=15 // pred_fallthru
          _
        // Predicated region
        $region25: #{_lambda_.12} parent=15 // pred_check
          %p186 = pneg %p98
        $region26: #{_lambda_.12} parent=15 // pred_check_branch
          %188 = sbr.rel (%p186) target = $region28
        $region27: #{_lambda_.12} parent=15 // pred_region
          %p189 = scmp.lt.s32.totalorder %s19, 1
          %s190 = scalar_select %p189, %s19, 1
          %s191 = scalar_lea.vmem %s2, %s190
        $region28: #{_lambda_.12} parent=15 // pred_fallthru
          _
      $region16: #{_lambda_.12} parent=5 // pred_fallthru
        _
      %p192 = scmp.le.s32.totalorder 1, %s12
      %p193 = scmp.lt.s32.totalorder %s12, 3
      %p194 = pnand %p192, %p193
      %p195 = pneg %p194
      // Predicated region
      $region29: #{_lambda_.12} parent=5 // pred_check
        _
      $region30: #{_lambda_.12} parent=5 // pred_check_branch
        %197 = sbr.rel (%p194) target = $region32
      $region31: #{_lambda_.12} parent=5 // pred_region
        %s198 = ssub.s32 %s12, 1
        %s199 = sand.u32 %s65, 1
        %s200 = scalar_lea.sflag [#allocation3], %s199
        %s201 = sand.u32 %s65, 1
        %s202 = smul.addr %s201, 16
        %s203 = scalar_lea.vmem [#allocation2], %s202
        // Predicated region
        $region33: #{_lambda_.12} parent=31 // pred_check
          %p204 = pneg %p78
        $region34: #{_lambda_.12} parent=31 // pred_check_branch
          %206 = sbr.rel (%p204) target = $region36
        $region35: #{_lambda_.12} parent=31 // pred_region
          %208 = dma.done %s200, 256
        $region36: #{_lambda_.12} parent=31 // pred_fallthru
          _
        %s209 = smul.u32 2, %s22
        %p210 = scmp.lt.s32.totalorder %s21, 1
        %s211 = scalar_select %p210, %s21, 1
        %p212 = scmp.lt.s32.totalorder %s209, 1
        %s213 = scalar_select %p212, %s209, 1
        %s214 = smul.addr %s211, 2
        %s215 = sadd.s32 %s213, %s214
        %s216 = smul.addr %s215, 4
        %s217 = scalar_lea.vmem %s0, %s216
        %p218 = pneg %p52
        %p219 = pneg %p49
        %s220 = sand.u32 %s65, 1
        %s221 = scalar_lea.sflag [#allocation3], %s220
        %s222 = sand.u32 %s65, 1
        %s223 = smul.addr %s222, 16
        %s224 = scalar_lea.vmem [#allocation2], %s223
        %p225 = pneg %p78
        %p226 = pneg %p75
        %p227 = scmp.lt.s32.totalorder %s21, 1
        %s228 = scalar_select %p227, %s21, 1
        %s229 = scalar_lea.vmem %s2, %s228
        %p230 = pneg %p104
        %p231 = pneg %p101
        %p232 = pneg %p132
        %p233 = pneg %p129
        %s234 = smul.u32 2, %s22
        %p235 = scmp.lt.s32.totalorder %s21, 1
        %s236 = scalar_select %p235, %s21, 1
        %p237 = scmp.lt.s32.totalorder %s234, 1
        %s238 = scalar_select %p237, %s234, 1
        %s239 = smul.addr %s236, 2
        %s240 = sadd.s32 %s238, %s239
        %s241 = smul.addr %s240, 4
        %s242 = scalar_lea.vmem %s3, %s241
        %s243 = smul.u32 2, %s22
        %p244 = scmp.lt.s32.totalorder %s21, 1
        %s245 = scalar_select %p244, %s21, 1
        %p246 = scmp.lt.s32.totalorder %s243, 1
        %s247 = scalar_select %p246, %s243, 1
        %s248 = smul.addr %s245, 2
        %s249 = sadd.s32 %s247, %s248
        %s250 = smul.addr %s249, 4
        %s251 = scalar_lea.vmem %s0, %s250
        %s252 = smul.u32 2, %s22
        %p253 = scmp.lt.s32.totalorder %s21, 1
        %s254 = scalar_select %p253, %s21, 1
        %s255 = scalar_lea.vmem %s2, %s254
        %s256 = smul.u32 2, %s22
        %p257 = scmp.lt.s32.totalorder %s21, 1
        %s258 = scalar_select %p257, %s21, 1
        %p259 = scmp.lt.s32.totalorder %s256, 1
        %s260 = scalar_select %p259, %s256, 1
        %s261 = smul.addr %s258, 2
        %s262 = sadd.s32 %s260, %s261
        %s263 = smul.addr %s262, 4
        %s264 = scalar_lea.vmem %s3, %s263
        %s265 = smul.u32 2, %s22
        %v267 = vld [vmem:[%s251] sm:$0xf]
        %v268 = vld [vmem:[%s251 + $0x4] sm:$0xf]
        %v269 = vld [vmem:[%s203] sm:$0xf]
        %v270 = vld [vmem:[%s203 + $0x4] sm:$0xf]
        %v271 = vld [vmem:[%s203 + $0x8] sm:$0xf]
        %v272 = vld [vmem:[%s203 + $0xc] sm:$0xf]
        %v273 = vld [vmem:[%s255] sm:$0x1]
        %v275 = vperm.slane %v273, 0
        %v279 = vunpack.c.l.b16 %v267
        %v280 = vunpack.c.l.b16 %v268
        %v281 = vpack.c.b16 %v280, %v279
        %v286 = vunpack.c.l.b16 %v269
        %v287 = vunpack.c.l.b16 %v270
        %v288 = vunpack.c.l.b16 %v271
        %v289 = vunpack.c.l.b16 %v272
        %v290 = vpack.c.b16 %v287, %v286
        %v291 = vpack.c.b16 %v289, %v288
        %vm294 = vcmask 261120
        %v296 = vsel %vm294, %v281, 0
        %298 = vmatpush.bf16.msra.mxu0 0
        %299 = vmatpush.bf16.msra.mxu0 0
        %300 = vmatpush.bf16.msra.mxu0 0
        %301 = vmatpush.bf16.msra.mxu0 0
        %302 = vmatpush.bf16.msra.mxu0 0
        %303 = vmatpush.bf16.msra.mxu0 0
        %304 = vmatpush.bf16.msra.mxu0 %v291
        %305 = vmatpush.bf16.msra.mxu0 %v290
        %306 = vmatmul.bf16.gmra.mxu0 %v296
        %v307 = vpop.f32.mrf.mxu0
        %v308 = vadd.f32 %v275, %v307
        %v309 = vpop.f32.mrf.mxu0
        %v310 = vadd.f32 %v275, %v309
        %311 = vdwg.mxu0
        %v312 = vpack.c.bf16 %v308, %v308
        %v313 = vpack.c.bf16 %v310, %v310
        %vm314 = vcmask 781312
        %315 = vst.msk [vmem:[%s264] sm:$0xf] %vm314, %v312
        %316 = vst.msk [vmem:[%s264 + $0x4] sm:$0xf] %vm314, %v313
        %s317 = smul.u32 2, %s22
        %p318 = scmp.lt.s32.totalorder %s21, 1
        %s319 = scalar_select %p318, %s21, 1
        %p320 = scmp.lt.s32.totalorder %s317, 1
        %s321 = scalar_select %p320, %s317, 1
        %s322 = smul.addr %s319, 2
        %s323 = sadd.s32 %s321, %s322
        %s324 = smul.addr %s323, 4
        %s325 = scalar_lea.vmem %s3, %s324
        // Predicated region
        $region37: #{_lambda_.12} parent=31 // pred_check
          %p326 = pneg %p129
        $region38: #{_lambda_.12} parent=31 // pred_check_branch
          %328 = sbr.rel (%p326) target = $region40
        $region39: #{_lambda_.12} parent=31 // pred_region
          %s329 = smul.u32 2, %s22
        $region40: #{_lambda_.12} parent=31 // pred_fallthru
          _
      $region32: #{_lambda_.12} parent=5 // pred_fallthru
        _
      %p330 = scmp.le.s32.totalorder 2, %s12
      // Predicated region
      $region41: #{_lambda_.12} parent=5 // pred_check
        %p331 = pneg %p330
      $region42: #{_lambda_.12} parent=5 // pred_check_branch
        %333 = sbr.rel (%p331) target = $region44
      $region43: #{_lambda_.12} parent=5 // pred_region
        %s334 = ssub.s32 %s12, 2
        // Predicated region
        $region45: #{_lambda_.12} parent=43 // pred_check
          %p335 = pneg %p135
        $region46: #{_lambda_.12} parent=43 // pred_check_branch
          %337 = sbr.rel (%p335) target = $region48
        $region47: #{_lambda_.12} parent=43 // pred_region
          %s338 = smul.u32 2, %s24
          %p339 = scmp.lt.s32.totalorder %s23, 1
          %s340 = scalar_select %p339, %s23, 1
          %p341 = scmp.lt.s32.totalorder %s338, 1
          %s342 = scalar_select %p341, %s338, 1
          %s343 = smul.addr %s340, 2
          %s344 = sadd.s32 %s342, %s343
          %s345 = smul.addr %s344, 4
          %s346 = scalar_lea.vmem %s3, %s345
        $region48: #{_lambda_.12} parent=43 // pred_fallthru
          _
      $region44: #{_lambda_.12} parent=5 // pred_fallthru
        _
    $region6: #{_lambda_.12} parent=1 // loop_footer
      %s16 = sadd.s32 1, %s12
    $region7: #{_lambda_.12} parent=1 // loop_footer_branch
      %11 = sbr.rel target = $region3
    $region8: #{_lambda_.12} parent=1 // loop_exit
      _
    %347 = vsyncpa [#allocation3], 1
    %s348 = scalar_lea.sflag [#allocation3], 1
    %349 = vsyncpa %s348, 1

// kernel: _lambda_.14
$region0: #{_lambda_.14}
  #allocation0 [shape = 'u32[]', space=smem, size = 0x4, offset = 0x4, fixed_abs, tag = 'smem constant byte address 0x4 - core index']
  #allocation1 [shape = 'u32[72,128]{1,0:T(1,128)}', space=vmem, size = 0x9000, scoped, tag = 'internal scratch']
  %s0 = inlined_call_operand.vmem [shape: bf16[2,16,32], index: 0, kind: input, shape index: {}]
  %s1 = inlined_call_operand.vmem [shape: bf16[2,32,32], index: 1, kind: input, shape index: {}]
  %s2 = inlined_call_operand.vmem [shape: f32[2,1,32], index: 2, kind: input, shape index: {}, may-alias: {2,5}]
  %s3 = inlined_call_operand.vmem [shape: bf16[2,16,32], index: 3, kind: input, shape index: {}]
  %s4 = inlined_call_operand.vmem [shape: f32[2,1,32], index: 4, kind: input, shape index: {}]
  %s5 = inlined_call_operand.vmem [shape: f32[2,1,32], index: 5, kind: input, shape index: {}, may-alias: {2,5}]
  %s6 = inlined_call_operand.vmem [shape: bf16[2,16,32], index: 6, kind: output, shape index: {}]
  %s7 = sld [smem:[#allocation0]]
  $region57: #{_lambda_.14} parent=0
    _
  %s9 = ssub.s32 1, %s7
  %s10 = scalar_select 0, %s9, %s7
  loop: start=0, step=1, limit=4
  $region2: #{_lambda_.14} parent=0 // loop_pre_header
    _
  $region3: #{_lambda_.14} parent=0 // loop_header
    %s12 = sphi 0, %s16
    %p13 = scmp.ge.s32.totalorder %s12, 4
    %s19 = sphi 0, %s31
    %s20 = sphi 0, %s27
    %s21 = sphi 0, %s19
    %s22 = sphi 0, %s20
    %s23 = sphi 0, %s21
    %s24 = sphi 0, %s22
    %s36 = sphi 0, %s38
    %s39 = sphi 0, %s36
    %s40 = sphi 0, %s39
    %s56 = sphi 0, %s40
    %s62 = sphi 0, %s64
    %s65 = sphi 0, %s62
    %s66 = sphi 0, %s65
    %s82 = sphi 0, %s66
    %s88 = sphi 0, %s90
    %s91 = sphi 0, %s88
    %s92 = sphi 0, %s91
    %s108 = sphi 0, %s92
    %s116 = sphi 0, %s118
    %s119 = sphi 0, %s116
    %s120 = sphi 0, %s119
    %s136 = sphi 0, %s120
    %s142 = sphi 0, %s144
    %s145 = sphi 0, %s142
    %s146 = sphi 0, %s145
    %s162 = sphi 0, %s146
    %s168 = sphi 0, %s170
    %s171 = sphi 0, %s168
    %s172 = sphi 0, %s171
    %s188 = sphi 0, %s172
    %s196 = sphi 0, %s198
    %s199 = sphi 0, %s196
    %s200 = sphi 0, %s199
    %s216 = sphi 0, %s200
  $region4: #{_lambda_.14} parent=0 // loop_header_branch
    %15 = sbr.rel (%p13) target = $region8
  $region5: #{_lambda_.14} parent=0 // loop_body
    %s17 = ssub.s32 %s12, 1
    %s18 = ssub.s32 %s12, 2
    %s25 = sadd.s32 1, %s20
    %p26 = scmp.ge.s32.totalorder %s25, 1
    %s27 = scalar_select %p26, 0, %s25
    %s28 = sadd.s32 1, %s19
    %s29 = scalar_select %p26, %s28, %s19
    %p30 = scmp.ge.s32.totalorder %s29, 2
    %s31 = scalar_select %p30, 0, %s29
    %s32 = ssub.s32 %s19, %s31
    %s33 = ssub.s32 %s20, %s27
    %s34 = sor.u32 %s32, %s33
    %p35 = scmp.eq.s32.totalorder %s34, 0
    %s37 = sadd.s32 %s36, 1
    %s38 = scalar_select %p35, %s36, %s37
    %p41 = pneg %p35
    %p42 = scmp.eq.s32.totalorder %s12, 1
    %p43 = por %p41, %p42
    %p44 = scmp.ne.s32.totalorder %s36, %s39
    %p45 = scmp.eq.s32.totalorder %s12, 0
    %p46 = por %p44, %p45
    %p47 = scmp.ne.s32.totalorder %s36, %s39
    %p48 = scmp.eq.s32.totalorder %s17, 1
    %p49 = por %p47, %p48
    %p50 = scmp.ne.s32.totalorder %s39, %s40
    %p51 = scmp.eq.s32.totalorder %s17, 0
    %p52 = por %p50, %p51
    %p53 = scmp.ne.s32.totalorder %s39, %s40
    %p54 = scmp.eq.s32.totalorder %s18, 1
    %p55 = por %p53, %p54
    %p57 = scmp.ne.s32.totalorder %s40, %s56
    %p58 = scmp.eq.s32.totalorder %s18, 0
    %p59 = por %p57, %p58
    %s60 = ssub.s32 %s19, %s31
    %p61 = scmp.eq.s32.totalorder %s60, 0
    %s63 = sadd.s32 %s62, 1
    %s64 = scalar_select %p61, %s62, %s63
    %p67 = pneg %p61
    %p68 = scmp.eq.s32.totalorder %s12, 1
    %p69 = por %p67, %p68
    %p70 = scmp.ne.s32.totalorder %s62, %s65
    %p71 = scmp.eq.s32.totalorder %s12, 0
    %p72 = por %p70, %p71
    %p73 = scmp.ne.s32.totalorder %s62, %s65
    %p74 = scmp.eq.s32.totalorder %s17, 1
    %p75 = por %p73, %p74
    %p76 = scmp.ne.s32.totalorder %s65, %s66
    %p77 = scmp.eq.s32.totalorder %s17, 0
    %p78 = por %p76, %p77
    %p79 = scmp.ne.s32.totalorder %s65, %s66
    %p80 = scmp.eq.s32.totalorder %s18, 1
    %p81 = por %p79, %p80
    %p83 = scmp.ne.s32.totalorder %s66, %s82
    %p84 = scmp.eq.s32.totalorder %s18, 0
    %p85 = por %p83, %p84
    %s86 = ssub.s32 %s19, %s31
    %p87 = scmp.eq.s32.totalorder %s86, 0
    %s89 = sadd.s32 %s88, 1
    %s90 = scalar_select %p87, %s88, %s89
    %p93 = pneg %p87
    %p94 = scmp.eq.s32.totalorder %s12, 1
    %p95 = por %p93, %p94
    %p96 = scmp.ne.s32.totalorder %s88, %s91
    %p97 = scmp.eq.s32.totalorder %s12, 0
    %p98 = por %p96, %p97
    %p99 = scmp.ne.s32.totalorder %s88, %s91
    %p100 = scmp.eq.s32.totalorder %s17, 1
    %p101 = por %p99, %p100
    %p102 = scmp.ne.s32.totalorder %s91, %s92
    %p103 = scmp.eq.s32.totalorder %s17, 0
    %p104 = por %p102, %p103
    %p105 = scmp.ne.s32.totalorder %s91, %s92
    %p106 = scmp.eq.s32.totalorder %s18, 1
    %p107 = por %p105, %p106
    %p109 = scmp.ne.s32.totalorder %s92, %s108
    %p110 = scmp.eq.s32.totalorder %s18, 0
    %p111 = por %p109, %p110
    %s112 = ssub.s32 %s19, %s31
    %s113 = ssub.s32 %s20, %s27
    %s114 = sor.u32 %s112, %s113
    %p115 = scmp.eq.s32.totalorder %s114, 0
    %s117 = sadd.s32 %s116, 1
    %s118 = scalar_select %p115, %s116, %s117
    %p121 = pneg %p115
    %p122 = scmp.eq.s32.totalorder %s12, 1
    %p123 = por %p121, %p122
    %p124 = scmp.ne.s32.totalorder %s116, %s119
    %p125 = scmp.eq.s32.totalorder %s12, 0
    %p126 = por %p124, %p125
    %p127 = scmp.ne.s32.totalorder %s116, %s119
    %p128 = scmp.eq.s32.totalorder %s17, 1
    %p129 = por %p127, %p128
    %p130 = scmp.ne.s32.totalorder %s119, %s120
    %p131 = scmp.eq.s32.totalorder %s17, 0
    %p132 = por %p130, %p131
    %p133 = scmp.ne.s32.totalorder %s119, %s120
    %p134 = scmp.eq.s32.totalorder %s18, 1
    %p135 = por %p133, %p134
    %p137 = scmp.ne.s32.totalorder %s120, %s136
    %p138 = scmp.eq.s32.totalorder %s18, 0
    %p139 = por %p137, %p138
    %s140 = ssub.s32 %s19, %s31
    %p141 = scmp.eq.s32.totalorder %s140, 0
    %s143 = sadd.s32 %s142, 1
    %s144 = scalar_select %p141, %s142, %s143
    %p147 = pneg %p141
    %p148 = scmp.eq.s32.totalorder %s12, 1
    %p149 = por %p147, %p148
    %p150 = scmp.ne.s32.totalorder %s142, %s145
    %p151 = scmp.eq.s32.totalorder %s12, 0
    %p152 = por %p150, %p151
    %p153 = scmp.ne.s32.totalorder %s142, %s145
    %p154 = scmp.eq.s32.totalorder %s17, 1
    %p155 = por %p153, %p154
    %p156 = scmp.ne.s32.totalorder %s145, %s146
    %p157 = scmp.eq.s32.totalorder %s17, 0
    %p158 = por %p156, %p157
    %p159 = scmp.ne.s32.totalorder %s145, %s146
    %p160 = scmp.eq.s32.totalorder %s18, 1
    %p161 = por %p159, %p160
    %p163 = scmp.ne.s32.totalorder %s146, %s162
    %p164 = scmp.eq.s32.totalorder %s18, 0
    %p165 = por %p163, %p164
    %s166 = ssub.s32 %s19, %s31
    %p167 = scmp.eq.s32.totalorder %s166, 0
    %s169 = sadd.s32 %s168, 1
    %s170 = scalar_select %p167, %s168, %s169
    %p173 = pneg %p167
    %p174 = scmp.eq.s32.totalorder %s12, 1
    %p175 = por %p173, %p174
    %p176 = scmp.ne.s32.totalorder %s168, %s171
    %p177 = scmp.eq.s32.totalorder %s12, 0
    %p178 = por %p176, %p177
    %p179 = scmp.ne.s32.totalorder %s168, %s171
    %p180 = scmp.eq.s32.totalorder %s17, 1
    %p181 = por %p179, %p180
    %p182 = scmp.ne.s32.totalorder %s171, %s172
    %p183 = scmp.eq.s32.totalorder %s17, 0
    %p184 = por %p182, %p183
    %p185 = scmp.ne.s32.totalorder %s171, %s172
    %p186 = scmp.eq.s32.totalorder %s18, 1
    %p187 = por %p185, %p186
    %p189 = scmp.ne.s32.totalorder %s172, %s188
    %p190 = scmp.eq.s32.totalorder %s18, 0
    %p191 = por %p189, %p190
    %s192 = ssub.s32 %s19, %s31
    %s193 = ssub.s32 %s20, %s27
    %s194 = sor.u32 %s192, %s193
    %p195 = scmp.eq.s32.totalorder %s194, 0
    %s197 = sadd.s32 %s196, 1
    %s198 = scalar_select %p195, %s196, %s197
    %p201 = pneg %p195
    %p202 = scmp.eq.s32.totalorder %s12, 1
    %p203 = por %p201, %p202
    %p204 = scmp.ne.s32.totalorder %s196, %s199
    %p205 = scmp.eq.s32.totalorder %s12, 0
    %p206 = por %p204, %p205
    %p207 = scmp.ne.s32.totalorder %s196, %s199
    %p208 = scmp.eq.s32.totalorder %s17, 1
    %p209 = por %p207, %p208
    %p210 = scmp.ne.s32.totalorder %s199, %s200
    %p211 = scmp.eq.s32.totalorder %s17, 0
    %p212 = por %p210, %p211
    %p213 = scmp.ne.s32.totalorder %s199, %s200
    %p214 = scmp.eq.s32.totalorder %s18, 1
    %p215 = por %p213, %p214
    %p217 = scmp.ne.s32.totalorder %s200, %s216
    %p218 = scmp.eq.s32.totalorder %s18, 0
    %p219 = por %p217, %p218
    %p220 = scmp.le.s32.totalorder 1, %s12
    %p221 = scmp.lt.s32.totalorder %s12, 3
    %p222 = pnand %p220, %p221
    %p223 = pneg %p222
    // Predicated region
    $region9: #{_lambda_.14} parent=5 // pred_check
      _
    $region10: #{_lambda_.14} parent=5 // pred_check_branch
      %225 = sbr.rel (%p222) target = $region12
    $region11: #{_lambda_.14} parent=5 // pred_region
      %s226 = ssub.s32 %s12, 1
    $region12: #{_lambda_.14} parent=5 // pred_fallthru
      _
    %p227 = scmp.lt.s32.totalorder %s12, 2
    // Predicated region
    $region13: #{_lambda_.14} parent=5 // pred_check
      %p228 = pneg %p227
    $region14: #{_lambda_.14} parent=5 // pred_check_branch
      %230 = sbr.rel (%p228) target = $region16
    $region15: #{_lambda_.14} parent=5 // pred_region
      // Predicated region
      $region17: #{_lambda_.14} parent=15 // pred_check
        %p231 = pneg %p46
      $region18: #{_lambda_.14} parent=15 // pred_check_branch
        %233 = sbr.rel (%p231) target = $region20
      $region19: #{_lambda_.14} parent=15 // pred_region
        %s234 = smul.u32 2, %s20
        %p235 = scmp.lt.s32.totalorder %s19, 1
        %s236 = scalar_select %p235, %s19, 1
        %p237 = scmp.lt.s32.totalorder %s234, 1
        %s238 = scalar_select %p237, %s234, 1
        %s239 = smul.addr %s236, 2
        %s240 = sadd.s32 %s238, %s239
        %s241 = smul.addr %s240, 4
        %s242 = scalar_lea.vmem %s0, %s241
        %s243 = smul.u32 2, %s20
      $region20: #{_lambda_.14} parent=15 // pred_fallthru
        _
      // Predicated region
      $region21: #{_lambda_.14} parent=15 // pred_check
        %p244 = pneg %p72
      $region22: #{_lambda_.14} parent=15 // pred_check_branch
        %246 = sbr.rel (%p244) target = $region24
      $region23: #{_lambda_.14} parent=15 // pred_region
        %p247 = scmp.lt.s32.totalorder %s19, 1
        %s248 = scalar_select %p247, %s19, 1
        %s249 = smul.addr %s248, 4
        %s250 = smul.addr %s249, 4
        %s251 = scalar_lea.vmem %s1, %s250
      $region24: #{_lambda_.14} parent=15 // pred_fallthru
        _
      // Predicated region
      $region25: #{_lambda_.14} parent=15 // pred_check
        %p252 = pneg %p98
      $region26: #{_lambda_.14} parent=15 // pred_check_branch
        %254 = sbr.rel (%p252) target = $region28
      $region27: #{_lambda_.14} parent=15 // pred_region
        %p255 = scmp.lt.s32.totalorder %s19, 1
        %s256 = scalar_select %p255, %s19, 1
        %s257 = scalar_lea.vmem %s2, %s256
      $region28: #{_lambda_.14} parent=15 // pred_fallthru
        _
      // Predicated region
      $region29: #{_lambda_.14} parent=15 // pred_check
        %p258 = pneg %p126
      $region30: #{_lambda_.14} parent=15 // pred_check_branch
        %260 = sbr.rel (%p258) target = $region32
      $region31: #{_lambda_.14} parent=15 // pred_region
        %s261 = smul.u32 2, %s20
        %p262 = scmp.lt.s32.totalorder %s19, 1
        %s263 = scalar_select %p262, %s19, 1
        %p264 = scmp.lt.s32.totalorder %s261, 1
        %s265 = scalar_select %p264, %s261, 1
        %s266 = smul.addr %s263, 2
        %s267 = sadd.s32 %s265, %s266
        %s268 = smul.addr %s267, 4
        %s269 = scalar_lea.vmem %s3, %s268
        %s270 = smul.u32 2, %s20
      $region32: #{_lambda_.14} parent=15 // pred_fallthru
        _
      // Predicated region
      $region33: #{_lambda_.14} parent=15 // pred_check
        %p271 = pneg %p152
      $region34: #{_lambda_.14} parent=15 // pred_check_branch
        %273 = sbr.rel (%p271) target = $region36
      $region35: #{_lambda_.14} parent=15 // pred_region
        %p274 = scmp.lt.s32.totalorder %s19, 1
        %s275 = scalar_select %p274, %s19, 1
        %s276 = scalar_lea.vmem %s4, %s275
      $region36: #{_lambda_.14} parent=15 // pred_fallthru
        _
      // Predicated region
      $region37: #{_lambda_.14} parent=15 // pred_check
        %p277 = pneg %p178
      $region38: #{_lambda_.14} parent=15 // pred_check_branch
        %279 = sbr.rel (%p277) target = $region40
      $region39: #{_lambda_.14} parent=15 // pred_region
        %p280 = scmp.lt.s32.totalorder %s19, 1
        %s281 = scalar_select %p280, %s19, 1
        %s282 = scalar_lea.vmem %s5, %s281
      $region40: #{_lambda_.14} parent=15 // pred_fallthru
        _
    $region16: #{_lambda_.14} parent=5 // pred_fallthru
      _
    %p283 = scmp.le.s32.totalorder 1, %s12
    %p284 = scmp.lt.s32.totalorder %s12, 3
    %p285 = pnand %p283, %p284
    %p286 = pneg %p285
    // Predicated region
    $region41: #{_lambda_.14} parent=5 // pred_check
      _
    $region42: #{_lambda_.14} parent=5 // pred_check_branch
      %288 = sbr.rel (%p285) target = $region44
    $region43: #{_lambda_.14} parent=5 // pred_region
      %s289 = ssub.s32 %s12, 1
      %s290 = smul.u32 2, %s22
      %p291 = scmp.lt.s32.totalorder %s21, 1
      %s292 = scalar_select %p291, %s21, 1
      %p293 = scmp.lt.s32.totalorder %s290, 1
      %s294 = scalar_select %p293, %s290, 1
      %s295 = smul.addr %s292, 2
      %s296 = sadd.s32 %s294, %s295
      %s297 = smul.addr %s296, 4
      %s298 = scalar_lea.vmem %s0, %s297
      %p299 = pneg %p52
      %p300 = pneg %p49
      %p301 = scmp.lt.s32.totalorder %s21, 1
      %s302 = scalar_select %p301, %s21, 1
      %s303 = smul.addr %s302, 4
      %s304 = smul.addr %s303, 4
      %s305 = scalar_lea.vmem %s1, %s304
      %p306 = pneg %p78
      %p307 = pneg %p75
      %p308 = scmp.lt.s32.totalorder %s21, 1
      %s309 = scalar_select %p308, %s21, 1
      %s310 = scalar_lea.vmem %s2, %s309
      %p311 = pneg %p104
      %p312 = pneg %p101
      %s313 = smul.u32 2, %s22
      %p314 = scmp.lt.s32.totalorder %s21, 1
      %s315 = scalar_select %p314, %s21, 1
      %p316 = scmp.lt.s32.totalorder %s313, 1
      %s317 = scalar_select %p316, %s313, 1
      %s318 = smul.addr %s315, 2
      %s319 = sadd.s32 %s317, %s318
      %s320 = smul.addr %s319, 4
      %s321 = scalar_lea.vmem %s3, %s320
      %p322 = pneg %p132
      %p323 = pneg %p129
      %p324 = scmp.lt.s32.totalorder %s21, 1
      %s325 = scalar_select %p324, %s21, 1
      %s326 = scalar_lea.vmem %s4, %s325
      %p327 = pneg %p158
      %p328 = pneg %p155
      %p329 = scmp.lt.s32.totalorder %s21, 1
      %s330 = scalar_select %p329, %s21, 1
      %s331 = scalar_lea.vmem %s5, %s330
      %p332 = pneg %p184
      %p333 = pneg %p181
      %p334 = pneg %p212
      %p335 = pneg %p209
      %s336 = smul.u32 2, %s22
      %p337 = scmp.lt.s32.totalorder %s21, 1
      %s338 = scalar_select %p337, %s21, 1
      %p339 = scmp.lt.s32.totalorder %s336, 1
      %s340 = scalar_select %p339, %s336, 1
      %s341 = smul.addr %s338, 2
      %s342 = sadd.s32 %s340, %s341
      %s343 = smul.addr %s342, 4
      %s344 = scalar_lea.vmem %s6, %s343
      %s345 = smul.u32 2, %s22
      %p346 = scmp.lt.s32.totalorder %s21, 1
      %s347 = scalar_select %p346, %s21, 1
      %p348 = scmp.lt.s32.totalorder %s345, 1
      %s349 = scalar_select %p348, %s345, 1
      %s350 = smul.addr %s347, 2
      %s351 = sadd.s32 %s349, %s350
      %s352 = smul.addr %s351, 4
      %s353 = scalar_lea.vmem %s0, %s352
      %s354 = smul.u32 2, %s22
      %p355 = scmp.lt.s32.totalorder %s21, 1
      %s356 = scalar_select %p355, %s21, 1
      %s357 = smul.addr %s356, 4
      %s358 = smul.addr %s357, 4
      %s359 = scalar_lea.vmem %s1, %s358
      %p360 = scmp.lt.s32.totalorder %s21, 1
      %s361 = scalar_select %p360, %s21, 1
      %s362 = scalar_lea.vmem %s2, %s361
      %s363 = smul.u32 2, %s22
      %p364 = scmp.lt.s32.totalorder %s21, 1
      %s365 = scalar_select %p364, %s21, 1
      %p366 = scmp.lt.s32.totalorder %s363, 1
      %s367 = scalar_select %p366, %s363, 1
      %s368 = smul.addr %s365, 2
      %s369 = sadd.s32 %s367, %s368
      %s370 = smul.addr %s369, 4
      %s371 = scalar_lea.vmem %s3, %s370
      %s372 = smul.u32 2, %s22
      %p373 = scmp.lt.s32.totalorder %s21, 1
      %s374 = scalar_select %p373, %s21, 1
      %s375 = scalar_lea.vmem %s4, %s374
      %p376 = scmp.lt.s32.totalorder %s21, 1
      %s377 = scalar_select %p376, %s21, 1
      %s378 = scalar_lea.vmem %s5, %s377
      %s379 = smul.u32 2, %s22
      %p380 = scmp.lt.s32.totalorder %s21, 1
      %s381 = scalar_select %p380, %s21, 1
      %p382 = scmp.lt.s32.totalorder %s379, 1
      %s383 = scalar_select %p382, %s379, 1
      %s384 = smul.addr %s381, 2
      %s385 = sadd.s32 %s383, %s384
      %s386 = smul.addr %s385, 4
      %s387 = scalar_lea.vmem %s6, %s386
      %s388 = smul.u32 2, %s22
      %v390 = vld [vmem:[%s353] sm:$0xf]
      %v391 = vld [vmem:[%s353 + $0x4] sm:$0xf]
      %v392 = vld [vmem:[%s359] sm:$0xf]
      %v393 = vld [vmem:[%s359 + $0x4] sm:$0xf]
      %v394 = vld [vmem:[%s359 + $0x8] sm:$0xf]
      %v395 = vld [vmem:[%s359 + $0xc] sm:$0xf]
      %v396 = vld [vmem:[%s362] sm:$0x1]
      %v398 = vperm.slane %v396, 0
      %v402 = vunpack.c.l.b16 %v390
      %v403 = vunpack.c.l.b16 %v391
      %v404 = vpack.c.b16 %v403, %v402
      %v409 = vunpack.c.l.b16 %v392
      %v410 = vunpack.c.l.b16 %v393
      %v411 = vunpack.c.l.b16 %v394
      %v412 = vunpack.c.l.b16 %v395
      %v413 = vpack.c.b16 %v410, %v409
      %v414 = vpack.c.b16 %v412, %v411
      %vm417 = vcmask 261120
      %v419 = vsel %vm417, %v404, 0
      %421 = vmatpush.bf16.msra.mxu0 0
      %422 = vmatpush.bf16.msra.mxu0 0
      %423 = vmatpush.bf16.msra.mxu0 0
      %424 = vmatpush.bf16.msra.mxu0 0
      %425 = vmatpush.bf16.msra.mxu0 0
      %426 = vmatpush.bf16.msra.mxu0 0
      %427 = vmatpush.bf16.msra.mxu0 %v414
      %428 = vmatpush.bf16.msra.mxu0 %v413
      %429 = vmatmul.bf16.gmra.mxu0 %v419
      %v430 = vpop.f32.mrf.mxu0
      %v431 = vadd.f32 %v398, %v430
      %v432 = vpop.f32.mrf.mxu0
      %v433 = vadd.f32 %v398, %v432
      %434 = vdwg.mxu0
      %v435 = vld [vmem:[%s371] sm:$0xf]
      %v436 = vld [vmem:[%s371 + $0x4] sm:$0xf]
      %v437 = vunpack.c.l.bf16 %v435
      %v438 = vunpack.c.l.bf16 %v436
      %v439 = vadd.f32 %v431, %v437
      %v440 = vadd.f32 %v433, %v438
      %v441 = vsel %vm417, %v439, 0.0
      %442 = vadd.xlane.f32.xlu0 %v441
      %v443 = vpop.xlane.xlu0 %442
      %v444 = vsel %vm417, %v440, 0.0
      %445 = vadd.xlane.f32.xlu0 %v444
      %v446 = vpop.xlane.xlu0 %445
      %v447 = vrcp.pop 32.0
      %v448 = vmul.f32 32.0, %v447
      %v449 = vsub.f32 1.0, %v448
      %v450 = vmul.f32 %v447, %v449
      %v451 = vadd.f32 %v447, %v450
      %vm452 = vweird.f32 %v447
      %v453 = vsel %vm452, %v447, %v451
      %v454 = vmul.f32 %v443, %v453
      %v455 = vmul.f32 %v446, %v453
      %v456 = vsub.f32 %v439, %v454
      %v457 = vsub.f32 %v440, %v455
      %v458 = vmul.f32 %v456, %v456
      %v459 = vmul.f32 %v457, %v457
      %v460 = vsel %vm417, %v458, 0.0
      %461 = vadd.xlane.f32.xlu0 %v460
      %v462 = vpop.xlane.xlu0 %461
      %v463 = vsel %vm417, %v459, 0.0
      %464 = vadd.xlane.f32.xlu0 %v463
      %v465 = vpop.xlane.xlu0 %464
      %v466 = vmul.f32 %v462, %v453
      %v467 = vmul.f32 %v465, %v453
      %v468 = vadd.f32 %v466, 1e-12
      %v469 = vadd.f32 %v467, 1e-12
      %v470 = vrsqrt.pop %v468
      %v471 = vmul.f32 %v470, %v468
      %v472 = vmul.f32 %v471, %v470
      %v473 = vmul.f32 0.5, %v472
      %v474 = vsub.f32 1.5, %v473
      %v475 = vmul.f32 %v470, %v474
      %vm476 = vweird.f32 %v468
      %vm477 = vweird.f32 %v470
      %vm478 = vmor %vm476, %vm477
      %v479 = vsel %vm478, %v470, %v475
      %v480 = vrsqrt.pop %v469
      %v481 = vmul.f32 %v480, %v469
      %v482 = vmul.f32 %v481, %v480
      %v483 = vmul.f32 0.5, %v482
      %v484 = vsub.f32 1.5, %v483
      %v485 = vmul.f32 %v480, %v484
      %vm486 = vweird.f32 %v469
      %vm487 = vweird.f32 %v480
      %vm488 = vmor %vm486, %vm487
      %v489 = vsel %vm488, %v480, %v485
      %v490 = vmul.f32 %v456, %v479
      %v491 = vmul.f32 %v457, %v489
      %v492 = vld [vmem:[%s375] sm:$0x1]
      %v494 = vperm.slane %v492, 0
      %v496 = vmul.f32 %v490, %v494
      %v497 = vmul.f32 %v491, %v494
      %v498 = vld [vmem:[%s378] sm:$0x1]
      %v500 = vperm.slane %v498, 0
      %v502 = vadd.f32 %v496, %v500
      %v503 = vadd.f32 %v497, %v500
      %v504 = vpack.c.bf16 %v502, %v502
      %v505 = vpack.c.bf16 %v503, %v503
      %vm506 = vcmask 257024
      %507 = vst.msk [vmem:[%s387] sm:$0xf] %vm506, %v504
      %508 = vst.msk [vmem:[%s387 + $0x4] sm:$0xf] %vm506, %v505
      %s509 = smul.u32 2, %s22
      %p510 = scmp.lt.s32.totalorder %s21, 1
      %s511 = scalar_select %p510, %s21, 1
      %p512 = scmp.lt.s32.totalorder %s509, 1
      %s513 = scalar_select %p512, %s509, 1
      %s514 = smul.addr %s511, 2
      %s515 = sadd.s32 %s513, %s514
      %s516 = smul.addr %s515, 4
      %s517 = scalar_lea.vmem %s6, %s516
      // Predicated region
      $region45: #{_lambda_.14} parent=43 // pred_check
        %p518 = pneg %p209
      $region46: #{_lambda_.14} parent=43 // pred_check_branch
        %520 = sbr.rel (%p518) target = $region48
      $region47: #{_lambda_.14} parent=43 // pred_region
        %s521 = smul.u32 2, %s22
      $region48: #{_lambda_.14} parent=43 // pred_fallthru
        _
    $region44: #{_lambda_.14} parent=5 // pred_fallthru
      _
    %p522 = scmp.le.s32.totalorder 2, %s12
    // Predicated region
    $region49: #{_lambda_.14} parent=5 // pred_check
      %p523 = pneg %p522
    $region50: #{_lambda_.14} parent=5 // pred_check_branch
      %525 = sbr.rel (%p523) target = $region52
    $region51: #{_lambda_.14} parent=5 // pred_region
      %s526 = ssub.s32 %s12, 2
      // Predicated region
      $region53: #{_lambda_.14} parent=51 // pred_check
        %p527 = pneg %p215
      $region54: #{_lambda_.14} parent=51 // pred_check_branch
        %529 = sbr.rel (%p527) target = $region56
      $region55: #{_lambda_.14} parent=51 // pred_region
        %s530 = smul.u32 2, %s24
        %p531 = scmp.lt.s32.totalorder %s23, 1
        %s532 = scalar_select %p531, %s23, 1
        %p533 = scmp.lt.s32.totalorder %s530, 1
        %s534 = scalar_select %p533, %s530, 1
        %s535 = smul.addr %s532, 2
        %s536 = sadd.s32 %s534, %s535
        %s537 = smul.addr %s536, 4
        %s538 = scalar_lea.vmem %s6, %s537
      $region56: #{_lambda_.14} parent=51 // pred_fallthru
        _
    $region52: #{_lambda_.14} parent=5 // pred_fallthru
      _
  $region6: #{_lambda_.14} parent=0 // loop_footer
    %s16 = sadd.s32 1, %s12
  $region7: #{_lambda_.14} parent=0 // loop_footer_branch
    %11 = sbr.rel target = $region3
  $region8: #{_lambda_.14} parent=0 // loop_exit
    _

// kernel: _lambda_.11
$region0: #{_lambda_.11}
  #allocation0 [shape = 'u32[]', space=smem, size = 0x4, offset = 0x4, fixed_abs, tag = 'smem constant byte address 0x4 - core index']
  #allocation1 [shape = 'u32[72,128]{1,0:T(1,128)}', space=vmem, size = 0x9000, scoped, tag = 'internal scratch']
  %s0 = inlined_call_operand.vmem [shape: f32[2,16,32], index: 0, kind: input, shape index: {}]
  %s1 = inlined_call_operand.vmem [shape: f32[2,1,32], index: 1, kind: input, shape index: {}]
  %s2 = inlined_call_operand.vmem [shape: f32[2,1,32], index: 2, kind: input, shape index: {}]
  %s3 = inlined_call_operand.vmem [shape: bf16[2,16,32], index: 3, kind: output, shape index: {}]
  %s4 = sld [smem:[#allocation0]]
  $region45: #{_lambda_.11} parent=0
    _
  %s6 = ssub.s32 1, %s4
  %s7 = scalar_select 0, %s6, %s4
  loop: start=0, step=1, limit=4
  $region2: #{_lambda_.11} parent=0 // loop_pre_header
    _
  $region3: #{_lambda_.11} parent=0 // loop_header
    %s9 = sphi 0, %s13
    %p10 = scmp.ge.s32.totalorder %s9, 4
    %s16 = sphi 0, %s28
    %s17 = sphi 0, %s24
    %s18 = sphi 0, %s16
    %s19 = sphi 0, %s17
    %s20 = sphi 0, %s18
    %s21 = sphi 0, %s19
    %s33 = sphi 0, %s35
    %s36 = sphi 0, %s33
    %s37 = sphi 0, %s36
    %s53 = sphi 0, %s37
    %s59 = sphi 0, %s61
    %s62 = sphi 0, %s59
    %s63 = sphi 0, %s62
    %s79 = sphi 0, %s63
    %s85 = sphi 0, %s87
    %s88 = sphi 0, %s85
    %s89 = sphi 0, %s88
    %s105 = sphi 0, %s89
    %s113 = sphi 0, %s115
    %s116 = sphi 0, %s113
    %s117 = sphi 0, %s116
    %s133 = sphi 0, %s117
  $region4: #{_lambda_.11} parent=0 // loop_header_branch
    %12 = sbr.rel (%p10) target = $region8
  $region5: #{_lambda_.11} parent=0 // loop_body
    %s14 = ssub.s32 %s9, 1
    %s15 = ssub.s32 %s9, 2
    %s22 = sadd.s32 1, %s17
    %p23 = scmp.ge.s32.totalorder %s22, 1
    %s24 = scalar_select %p23, 0, %s22
    %s25 = sadd.s32 1, %s16
    %s26 = scalar_select %p23, %s25, %s16
    %p27 = scmp.ge.s32.totalorder %s26, 2
    %s28 = scalar_select %p27, 0, %s26
    %s29 = ssub.s32 %s16, %s28
    %s30 = ssub.s32 %s17, %s24
    %s31 = sor.u32 %s29, %s30
    %p32 = scmp.eq.s32.totalorder %s31, 0
    %s34 = sadd.s32 %s33, 1
    %s35 = scalar_select %p32, %s33, %s34
    %p38 = pneg %p32
    %p39 = scmp.eq.s32.totalorder %s9, 1
    %p40 = por %p38, %p39
    %p41 = scmp.ne.s32.totalorder %s33, %s36
    %p42 = scmp.eq.s32.totalorder %s9, 0
    %p43 = por %p41, %p42
    %p44 = scmp.ne.s32.totalorder %s33, %s36
    %p45 = scmp.eq.s32.totalorder %s14, 1
    %p46 = por %p44, %p45
    %p47 = scmp.ne.s32.totalorder %s36, %s37
    %p48 = scmp.eq.s32.totalorder %s14, 0
    %p49 = por %p47, %p48
    %p50 = scmp.ne.s32.totalorder %s36, %s37
    %p51 = scmp.eq.s32.totalorder %s15, 1
    %p52 = por %p50, %p51
    %p54 = scmp.ne.s32.totalorder %s37, %s53
    %p55 = scmp.eq.s32.totalorder %s15, 0
    %p56 = por %p54, %p55
    %s57 = ssub.s32 %s16, %s28
    %p58 = scmp.eq.s32.totalorder %s57, 0
    %s60 = sadd.s32 %s59, 1
    %s61 = scalar_select %p58, %s59, %s60
    %p64 = pneg %p58
    %p65 = scmp.eq.s32.totalorder %s9, 1
    %p66 = por %p64, %p65
    %p67 = scmp.ne.s32.totalorder %s59, %s62
    %p68 = scmp.eq.s32.totalorder %s9, 0
    %p69 = por %p67, %p68
    %p70 = scmp.ne.s32.totalorder %s59, %s62
    %p71 = scmp.eq.s32.totalorder %s14, 1
    %p72 = por %p70, %p71
    %p73 = scmp.ne.s32.totalorder %s62, %s63
    %p74 = scmp.eq.s32.totalorder %s14, 0
    %p75 = por %p73, %p74
    %p76 = scmp.ne.s32.totalorder %s62, %s63
    %p77 = scmp.eq.s32.totalorder %s15, 1
    %p78 = por %p76, %p77
    %p80 = scmp.ne.s32.totalorder %s63, %s79
    %p81 = scmp.eq.s32.totalorder %s15, 0
    %p82 = por %p80, %p81
    %s83 = ssub.s32 %s16, %s28
    %p84 = scmp.eq.s32.totalorder %s83, 0
    %s86 = sadd.s32 %s85, 1
    %s87 = scalar_select %p84, %s85, %s86
    %p90 = pneg %p84
    %p91 = scmp.eq.s32.totalorder %s9, 1
    %p92 = por %p90, %p91
    %p93 = scmp.ne.s32.totalorder %s85, %s88
    %p94 = scmp.eq.s32.totalorder %s9, 0
    %p95 = por %p93, %p94
    %p96 = scmp.ne.s32.totalorder %s85, %s88
    %p97 = scmp.eq.s32.totalorder %s14, 1
    %p98 = por %p96, %p97
    %p99 = scmp.ne.s32.totalorder %s88, %s89
    %p100 = scmp.eq.s32.totalorder %s14, 0
    %p101 = por %p99, %p100
    %p102 = scmp.ne.s32.totalorder %s88, %s89
    %p103 = scmp.eq.s32.totalorder %s15, 1
    %p104 = por %p102, %p103
    %p106 = scmp.ne.s32.totalorder %s89, %s105
    %p107 = scmp.eq.s32.totalorder %s15, 0
    %p108 = por %p106, %p107
    %s109 = ssub.s32 %s16, %s28
    %s110 = ssub.s32 %s17, %s24
    %s111 = sor.u32 %s109, %s110
    %p112 = scmp.eq.s32.totalorder %s111, 0
    %s114 = sadd.s32 %s113, 1
    %s115 = scalar_select %p112, %s113, %s114
    %p118 = pneg %p112
    %p119 = scmp.eq.s32.totalorder %s9, 1
    %p120 = por %p118, %p119
    %p121 = scmp.ne.s32.totalorder %s113, %s116
    %p122 = scmp.eq.s32.totalorder %s9, 0
    %p123 = por %p121, %p122
    %p124 = scmp.ne.s32.totalorder %s113, %s116
    %p125 = scmp.eq.s32.totalorder %s14, 1
    %p126 = por %p124, %p125
    %p127 = scmp.ne.s32.totalorder %s116, %s117
    %p128 = scmp.eq.s32.totalorder %s14, 0
    %p129 = por %p127, %p128
    %p130 = scmp.ne.s32.totalorder %s116, %s117
    %p131 = scmp.eq.s32.totalorder %s15, 1
    %p132 = por %p130, %p131
    %p134 = scmp.ne.s32.totalorder %s117, %s133
    %p135 = scmp.eq.s32.totalorder %s15, 0
    %p136 = por %p134, %p135
    %p137 = scmp.le.s32.totalorder 1, %s9
    %p138 = scmp.lt.s32.totalorder %s9, 3
    %p139 = pnand %p137, %p138
    %p140 = pneg %p139
    // Predicated region
    $region9: #{_lambda_.11} parent=5 // pred_check
      _
    $region10: #{_lambda_.11} parent=5 // pred_check_branch
      %142 = sbr.rel (%p139) target = $region12
    $region11: #{_lambda_.11} parent=5 // pred_region
      %s143 = ssub.s32 %s9, 1
    $region12: #{_lambda_.11} parent=5 // pred_fallthru
      _
    %p144 = scmp.lt.s32.totalorder %s9, 2
    // Predicated region
    $region13: #{_lambda_.11} parent=5 // pred_check
      %p145 = pneg %p144
    $region14: #{_lambda_.11} parent=5 // pred_check_branch
      %147 = sbr.rel (%p145) target = $region16
    $region15: #{_lambda_.11} parent=5 // pred_region
      // Predicated region
      $region17: #{_lambda_.11} parent=15 // pred_check
        %p148 = pneg %p43
      $region18: #{_lambda_.11} parent=15 // pred_check_branch
        %150 = sbr.rel (%p148) target = $region20
      $region19: #{_lambda_.11} parent=15 // pred_region
        %s151 = smul.u32 2, %s17
        %p152 = scmp.lt.s32.totalorder %s16, 1
        %s153 = scalar_select %p152, %s16, 1
        %p154 = scmp.lt.s32.totalorder %s151, 1
        %s155 = scalar_select %p154, %s151, 1
        %s156 = smul.addr %s153, 2
        %s157 = sadd.s32 %s155, %s156
        %s158 = smul.addr %s157, 8
        %s159 = scalar_lea.vmem %s0, %s158
        %s160 = smul.u32 2, %s17
      $region20: #{_lambda_.11} parent=15 // pred_fallthru
        _
      // Predicated region
      $region21: #{_lambda_.11} parent=15 // pred_check
        %p161 = pneg %p69
      $region22: #{_lambda_.11} parent=15 // pred_check_branch
        %163 = sbr.rel (%p161) target = $region24
      $region23: #{_lambda_.11} parent=15 // pred_region
        %p164 = scmp.lt.s32.totalorder %s16, 1
        %s165 = scalar_select %p164, %s16, 1
        %s166 = scalar_lea.vmem %s1, %s165
      $region24: #{_lambda_.11} parent=15 // pred_fallthru
        _
      // Predicated region
      $region25: #{_lambda_.11} parent=15 // pred_check
        %p167 = pneg %p95
      $region26: #{_lambda_.11} parent=15 // pred_check_branch
        %169 = sbr.rel (%p167) target = $region28
      $region27: #{_lambda_.11} parent=15 // pred_region
        %p170 = scmp.lt.s32.totalorder %s16, 1
        %s171 = scalar_select %p170, %s16, 1
        %s172 = scalar_lea.vmem %s2, %s171
      $region28: #{_lambda_.11} parent=15 // pred_fallthru
        _
    $region16: #{_lambda_.11} parent=5 // pred_fallthru
      _
    %p173 = scmp.le.s32.totalorder 1, %s9
    %p174 = scmp.lt.s32.totalorder %s9, 3
    %p175 = pnand %p173, %p174
    %p176 = pneg %p175
    // Predicated region
    $region29: #{_lambda_.11} parent=5 // pred_check
      _
    $region30: #{_lambda_.11} parent=5 // pred_check_branch
      %178 = sbr.rel (%p175) target = $region32
    $region31: #{_lambda_.11} parent=5 // pred_region
      %s179 = ssub.s32 %s9, 1
      %s180 = smul.u32 2, %s19
      %p181 = scmp.lt.s32.totalorder %s18, 1
      %s182 = scalar_select %p181, %s18, 1
      %p183 = scmp.lt.s32.totalorder %s180, 1
      %s184 = scalar_select %p183, %s180, 1
      %s185 = smul.addr %s182, 2
      %s186 = sadd.s32 %s184, %s185
      %s187 = smul.addr %s186, 8
      %s188 = scalar_lea.vmem %s0, %s187
      %p189 = pneg %p49
      %p190 = pneg %p46
      %p191 = scmp.lt.s32.totalorder %s18, 1
      %s192 = scalar_select %p191, %s18, 1
      %s193 = scalar_lea.vmem %s1, %s192
      %p194 = pneg %p75
      %p195 = pneg %p72
      %p196 = scmp.lt.s32.totalorder %s18, 1
      %s197 = scalar_select %p196, %s18, 1
      %s198 = scalar_lea.vmem %s2, %s197
      %p199 = pneg %p101
      %p200 = pneg %p98
      %p201 = pneg %p129
      %p202 = pneg %p126
      %s203 = smul.u32 2, %s19
      %p204 = scmp.lt.s32.totalorder %s18, 1
      %s205 = scalar_select %p204, %s18, 1
      %p206 = scmp.lt.s32.totalorder %s203, 1
      %s207 = scalar_select %p206, %s203, 1
      %s208 = smul.addr %s205, 2
      %s209 = sadd.s32 %s207, %s208
      %s210 = smul.addr %s209, 4
      %s211 = scalar_lea.vmem %s3, %s210
      %s212 = smul.u32 2, %s19
      %p213 = scmp.lt.s32.totalorder %s18, 1
      %s214 = scalar_select %p213, %s18, 1
      %p215 = scmp.lt.s32.totalorder %s212, 1
      %s216 = scalar_select %p215, %s212, 1
      %s217 = smul.addr %s214, 2
      %s218 = sadd.s32 %s216, %s217
      %s219 = smul.addr %s218, 8
      %s220 = scalar_lea.vmem %s0, %s219
      %s221 = smul.u32 2, %s19
      %p222 = scmp.lt.s32.totalorder %s18, 1
      %s223 = scalar_select %p222, %s18, 1
      %s224 = scalar_lea.vmem %s1, %s223
      %p225 = scmp.lt.s32.totalorder %s18, 1
      %s226 = scalar_select %p225, %s18, 1
      %s227 = scalar_lea.vmem %s2, %s226
      %s228 = smul.u32 2, %s19
      %p229 = scmp.lt.s32.totalorder %s18, 1
      %s230 = scalar_select %p229, %s18, 1
      %p231 = scmp.lt.s32.totalorder %s228, 1
      %s232 = scalar_select %p231, %s228, 1
      %s233 = smul.addr %s230, 2
      %s234 = sadd.s32 %s232, %s233
      %s235 = smul.addr %s234, 4
      %s236 = scalar_lea.vmem %s3, %s235
      %s237 = smul.u32 2, %s19
      %v238 = vld [vmem:[%s220] sm:$0xff]
      %v239 = vld [vmem:[%s220 + $0x8] sm:$0xff]
      %vm240 = vcmask 261120
      %v241 = vsel %vm240, %v238, 0.0
      %242 = vadd.xlane.f32.xlu0 %v241
      %v243 = vpop.xlane.xlu0 %242
      %v244 = vsel %vm240, %v239, 0.0
      %245 = vadd.xlane.f32.xlu0 %v244
      %v246 = vpop.xlane.xlu0 %245
      %v247 = vrcp.pop 32.0
      %v248 = vmul.f32 32.0, %v247
      %v249 = vsub.f32 1.0, %v248
      %v250 = vmul.f32 %v247, %v249
      %v251 = vadd.f32 %v247, %v250
      %vm252 = vweird.f32 %v247
      %v253 = vsel %vm252, %v247, %v251
      %v254 = vmul.f32 %v243, %v253
      %v255 = vmul.f32 %v246, %v253
      %v256 = vsub.f32 %v238, %v254
      %v257 = vsub.f32 %v239, %v255
      %v258 = vmul.f32 %v256, %v256
      %v259 = vmul.f32 %v257, %v257
      %v260 = vsel %vm240, %v258, 0.0
      %261 = vadd.xlane.f32.xlu0 %v260
      %v262 = vpop.xlane.xlu0 %261
      %v263 = vsel %vm240, %v259, 0.0
      %264 = vadd.xlane.f32.xlu0 %v263
      %v265 = vpop.xlane.xlu0 %264
      %v266 = vmul.f32 %v262, %v253
      %v267 = vmul.f32 %v265, %v253
      %v268 = vadd.f32 %v266, 1e-12
      %v269 = vadd.f32 %v267, 1e-12
      %v270 = vrsqrt.pop %v268
      %v271 = vmul.f32 %v270, %v268
      %v272 = vmul.f32 %v271, %v270
      %v273 = vmul.f32 0.5, %v272
      %v274 = vsub.f32 1.5, %v273
      %v275 = vmul.f32 %v270, %v274
      %vm276 = vweird.f32 %v268
      %vm277 = vweird.f32 %v270
      %vm278 = vmor %vm276, %vm277
      %v279 = vsel %vm278, %v270, %v275
      %v280 = vrsqrt.pop %v269
      %v281 = vmul.f32 %v280, %v269
      %v282 = vmul.f32 %v281, %v280
      %v283 = vmul.f32 0.5, %v282
      %v284 = vsub.f32 1.5, %v283
      %v285 = vmul.f32 %v280, %v284
      %vm286 = vweird.f32 %v269
      %vm287 = vweird.f32 %v280
      %vm288 = vmor %vm286, %vm287
      %v289 = vsel %vm288, %v280, %v285
      %v290 = vmul.f32 %v256, %v279
      %v291 = vmul.f32 %v257, %v289
      %v292 = vld [vmem:[%s224] sm:$0x1]
      %v294 = vperm.slane %v292, 0
      %v296 = vmul.f32 %v290, %v294
      %v297 = vmul.f32 %v291, %v294
      %v298 = vld [vmem:[%s227] sm:$0x1]
      %v300 = vperm.slane %v298, 0
      %v302 = vadd.f32 %v296, %v300
      %v303 = vadd.f32 %v297, %v300
      %v304 = vpack.c.bf16 %v302, %v302
      %v305 = vpack.c.bf16 %v303, %v303
      %vm306 = vcmask 257024
      %307 = vst.msk [vmem:[%s236] sm:$0xf] %vm306, %v304
      %308 = vst.msk [vmem:[%s236 + $0x4] sm:$0xf] %vm306, %v305
      %s309 = smul.u32 2, %s19
      %p310 = scmp.lt.s32.totalorder %s18, 1
      %s311 = scalar_select %p310, %s18, 1
      %p312 = scmp.lt.s32.totalorder %s309, 1
      %s313 = scalar_select %p312, %s309, 1
      %s314 = smul.addr %s311, 2
      %s315 = sadd.s32 %s313, %s314
      %s316 = smul.addr %s315, 4
      %s317 = scalar_lea.vmem %s3, %s316
      // Predicated region
      $region33: #{_lambda_.11} parent=31 // pred_check
        %p318 = pneg %p126
      $region34: #{_lambda_.11} parent=31 // pred_check_branch
        %320 = sbr.rel (%p318) target = $region36
      $region35: #{_lambda_.11} parent=31 // pred_region
        %s321 = smul.u32 2, %s19
      $region36: #{_lambda_.11} parent=31 // pred_fallthru
        _
    $region32: #{_lambda_.11} parent=5 // pred_fallthru
      _
    %p322 = scmp.le.s32.totalorder 2, %s9
    // Predicated region
    $region37: #{_lambda_.11} parent=5 // pred_check
      %p323 = pneg %p322
    $region38: #{_lambda_.11} parent=5 // pred_check_branch
      %325 = sbr.rel (%p323) target = $region40
    $region39: #{_lambda_.11} parent=5 // pred_region
      %s326 = ssub.s32 %s9, 2
      // Predicated region
      $region41: #{_lambda_.11} parent=39 // pred_check
        %p327 = pneg %p132
      $region42: #{_lambda_.11} parent=39 // pred_check_branch
        %329 = sbr.rel (%p327) target = $region44
      $region43: #{_lambda_.11} parent=39 // pred_region
        %s330 = smul.u32 2, %s21
        %p331 = scmp.lt.s32.totalorder %s20, 1
        %s332 = scalar_select %p331, %s20, 1
        %p333 = scmp.lt.s32.totalorder %s330, 1
        %s334 = scalar_select %p333, %s330, 1
        %s335 = smul.addr %s332, 2
        %s336 = sadd.s32 %s334, %s335
        %s337 = smul.addr %s336, 4
        %s338 = scalar_lea.vmem %s3, %s337
      $region44: #{_lambda_.11} parent=39 // pred_fallthru
        _
    $region40: #{_lambda_.11} parent=5 // pred_fallthru
      _
  $region6: #{_lambda_.11} parent=0 // loop_footer
    %s13 = sadd.s32 1, %s9
  $region7: #{_lambda_.11} parent=0 // loop_footer_branch
    %8 = sbr.rel target = $region3
  $region8: #{_lambda_.11} parent=0 // loop_exit
    _

// kernel: _lambda_.17
$region0: #{_lambda_.17}
  #allocation0 [shape = 'u32[]', space=smem, size = 0x4, offset = 0x4, fixed_abs, tag = 'smem constant byte address 0x4 - core index']
  #allocation1 [shape = 'u32[72,128]{1,0:T(1,128)}', space=vmem, size = 0x9000, scoped, tag = 'internal scratch']
  %s0 = inlined_call_operand.vmem [shape: bf16[2,16,32], index: 0, kind: input, shape index: {}]
  %s1 = inlined_call_operand.vmem [shape: bf16[2,32,96], index: 1, kind: input, shape index: {}]
  %s2 = inlined_call_operand.vmem [shape: f32[2,1,96], index: 2, kind: input, shape index: {}]
  %s3 = inlined_call_operand.vmem [shape: bf16[2,16,96], index: 3, kind: output, shape index: {}]
  %s4 = sld [smem:[#allocation0]]
  $region45: #{_lambda_.17} parent=0
    _
  %s6 = ssub.s32 1, %s4
  %s7 = scalar_select 0, %s6, %s4
  loop: start=0, step=1, limit=4
  $region2: #{_lambda_.17} parent=0 // loop_pre_header
    _
  $region3: #{_lambda_.17} parent=0 // loop_header
    %s9 = sphi 0, %s13
    %p10 = scmp.ge.s32.totalorder %s9, 4
    %s16 = sphi 0, %s28
    %s17 = sphi 0, %s24
    %s18 = sphi 0, %s16
    %s19 = sphi 0, %s17
    %s20 = sphi 0, %s18
    %s21 = sphi 0, %s19
    %s33 = sphi 0, %s35
    %s36 = sphi 0, %s33
    %s37 = sphi 0, %s36
    %s53 = sphi 0, %s37
    %s59 = sphi 0, %s61
    %s62 = sphi 0, %s59
    %s63 = sphi 0, %s62
    %s79 = sphi 0, %s63
    %s85 = sphi 0, %s87
    %s88 = sphi 0, %s85
    %s89 = sphi 0, %s88
    %s105 = sphi 0, %s89
    %s113 = sphi 0, %s115
    %s116 = sphi 0, %s113
    %s117 = sphi 0, %s116
    %s133 = sphi 0, %s117
  $region4: #{_lambda_.17} parent=0 // loop_header_branch
    %12 = sbr.rel (%p10) target = $region8
  $region5: #{_lambda_.17} parent=0 // loop_body
    %s14 = ssub.s32 %s9, 1
    %s15 = ssub.s32 %s9, 2
    %s22 = sadd.s32 1, %s17
    %p23 = scmp.ge.s32.totalorder %s22, 1
    %s24 = scalar_select %p23, 0, %s22
    %s25 = sadd.s32 1, %s16
    %s26 = scalar_select %p23, %s25, %s16
    %p27 = scmp.ge.s32.totalorder %s26, 2
    %s28 = scalar_select %p27, 0, %s26
    %s29 = ssub.s32 %s16, %s28
    %s30 = ssub.s32 %s17, %s24
    %s31 = sor.u32 %s29, %s30
    %p32 = scmp.eq.s32.totalorder %s31, 0
    %s34 = sadd.s32 %s33, 1
    %s35 = scalar_select %p32, %s33, %s34
    %p38 = pneg %p32
    %p39 = scmp.eq.s32.totalorder %s9, 1
    %p40 = por %p38, %p39
    %p41 = scmp.ne.s32.totalorder %s33, %s36
    %p42 = scmp.eq.s32.totalorder %s9, 0
    %p43 = por %p41, %p42
    %p44 = scmp.ne.s32.totalorder %s33, %s36
    %p45 = scmp.eq.s32.totalorder %s14, 1
    %p46 = por %p44, %p45
    %p47 = scmp.ne.s32.totalorder %s36, %s37
    %p48 = scmp.eq.s32.totalorder %s14, 0
    %p49 = por %p47, %p48
    %p50 = scmp.ne.s32.totalorder %s36, %s37
    %p51 = scmp.eq.s32.totalorder %s15, 1
    %p52 = por %p50, %p51
    %p54 = scmp.ne.s32.totalorder %s37, %s53
    %p55 = scmp.eq.s32.totalorder %s15, 0
    %p56 = por %p54, %p55
    %s57 = ssub.s32 %s16, %s28
    %p58 = scmp.eq.s32.totalorder %s57, 0
    %s60 = sadd.s32 %s59, 1
    %s61 = scalar_select %p58, %s59, %s60
    %p64 = pneg %p58
    %p65 = scmp.eq.s32.totalorder %s9, 1
    %p66 = por %p64, %p65
    %p67 = scmp.ne.s32.totalorder %s59, %s62
    %p68 = scmp.eq.s32.totalorder %s9, 0
    %p69 = por %p67, %p68
    %p70 = scmp.ne.s32.totalorder %s59, %s62
    %p71 = scmp.eq.s32.totalorder %s14, 1
    %p72 = por %p70, %p71
    %p73 = scmp.ne.s32.totalorder %s62, %s63
    %p74 = scmp.eq.s32.totalorder %s14, 0
    %p75 = por %p73, %p74
    %p76 = scmp.ne.s32.totalorder %s62, %s63
    %p77 = scmp.eq.s32.totalorder %s15, 1
    %p78 = por %p76, %p77
    %p80 = scmp.ne.s32.totalorder %s63, %s79
    %p81 = scmp.eq.s32.totalorder %s15, 0
    %p82 = por %p80, %p81
    %s83 = ssub.s32 %s16, %s28
    %p84 = scmp.eq.s32.totalorder %s83, 0
    %s86 = sadd.s32 %s85, 1
    %s87 = scalar_select %p84, %s85, %s86
    %p90 = pneg %p84
    %p91 = scmp.eq.s32.totalorder %s9, 1
    %p92 = por %p90, %p91
    %p93 = scmp.ne.s32.totalorder %s85, %s88
    %p94 = scmp.eq.s32.totalorder %s9, 0
    %p95 = por %p93, %p94
    %p96 = scmp.ne.s32.totalorder %s85, %s88
    %p97 = scmp.eq.s32.totalorder %s14, 1
    %p98 = por %p96, %p97
    %p99 = scmp.ne.s32.totalorder %s88, %s89
    %p100 = scmp.eq.s32.totalorder %s14, 0
    %p101 = por %p99, %p100
    %p102 = scmp.ne.s32.totalorder %s88, %s89
    %p103 = scmp.eq.s32.totalorder %s15, 1
    %p104 = por %p102, %p103
    %p106 = scmp.ne.s32.totalorder %s89, %s105
    %p107 = scmp.eq.s32.totalorder %s15, 0
    %p108 = por %p106, %p107
    %s109 = ssub.s32 %s16, %s28
    %s110 = ssub.s32 %s17, %s24
    %s111 = sor.u32 %s109, %s110
    %p112 = scmp.eq.s32.totalorder %s111, 0
    %s114 = sadd.s32 %s113, 1
    %s115 = scalar_select %p112, %s113, %s114
    %p118 = pneg %p112
    %p119 = scmp.eq.s32.totalorder %s9, 1
    %p120 = por %p118, %p119
    %p121 = scmp.ne.s32.totalorder %s113, %s116
    %p122 = scmp.eq.s32.totalorder %s9, 0
    %p123 = por %p121, %p122
    %p124 = scmp.ne.s32.totalorder %s113, %s116
    %p125 = scmp.eq.s32.totalorder %s14, 1
    %p126 = por %p124, %p125
    %p127 = scmp.ne.s32.totalorder %s116, %s117
    %p128 = scmp.eq.s32.totalorder %s14, 0
    %p129 = por %p127, %p128
    %p130 = scmp.ne.s32.totalorder %s116, %s117
    %p131 = scmp.eq.s32.totalorder %s15, 1
    %p132 = por %p130, %p131
    %p134 = scmp.ne.s32.totalorder %s117, %s133
    %p135 = scmp.eq.s32.totalorder %s15, 0
    %p136 = por %p134, %p135
    %p137 = scmp.le.s32.totalorder 1, %s9
    %p138 = scmp.lt.s32.totalorder %s9, 3
    %p139 = pnand %p137, %p138
    %p140 = pneg %p139
    // Predicated region
    $region9: #{_lambda_.17} parent=5 // pred_check
      _
    $region10: #{_lambda_.17} parent=5 // pred_check_branch
      %142 = sbr.rel (%p139) target = $region12
    $region11: #{_lambda_.17} parent=5 // pred_region
      %s143 = ssub.s32 %s9, 1
    $region12: #{_lambda_.17} parent=5 // pred_fallthru
      _
    %p144 = scmp.lt.s32.totalorder %s9, 2
    // Predicated region
    $region13: #{_lambda_.17} parent=5 // pred_check
      %p145 = pneg %p144
    $region14: #{_lambda_.17} parent=5 // pred_check_branch
      %147 = sbr.rel (%p145) target = $region16
    $region15: #{_lambda_.17} parent=5 // pred_region
      // Predicated region
      $region17: #{_lambda_.17} parent=15 // pred_check
        %p148 = pneg %p43
      $region18: #{_lambda_.17} parent=15 // pred_check_branch
        %150 = sbr.rel (%p148) target = $region20
      $region19: #{_lambda_.17} parent=15 // pred_region
        %s151 = smul.u32 2, %s17
        %p152 = scmp.lt.s32.totalorder %s16, 1
        %s153 = scalar_select %p152, %s16, 1
        %p154 = scmp.lt.s32.totalorder %s151, 1
        %s155 = scalar_select %p154, %s151, 1
        %s156 = smul.addr %s153, 2
        %s157 = sadd.s32 %s155, %s156
        %s158 = smul.addr %s157, 4
        %s159 = scalar_lea.vmem %s0, %s158
        %s160 = smul.u32 2, %s17
      $region20: #{_lambda_.17} parent=15 // pred_fallthru
        _
      // Predicated region
      $region21: #{_lambda_.17} parent=15 // pred_check
        %p161 = pneg %p69
      $region22: #{_lambda_.17} parent=15 // pred_check_branch
        %163 = sbr.rel (%p161) target = $region24
      $region23: #{_lambda_.17} parent=15 // pred_region
        %p164 = scmp.lt.s32.totalorder %s16, 1
        %s165 = scalar_select %p164, %s16, 1
        %s166 = smul.addr %s165, 4
        %s167 = smul.addr %s166, 4
        %s168 = scalar_lea.vmem %s1, %s167
      $region24: #{_lambda_.17} parent=15 // pred_fallthru
        _
      // Predicated region
      $region25: #{_lambda_.17} parent=15 // pred_check
        %p169 = pneg %p95
      $region26: #{_lambda_.17} parent=15 // pred_check_branch
        %171 = sbr.rel (%p169) target = $region28
      $region27: #{_lambda_.17} parent=15 // pred_region
        %p172 = scmp.lt.s32.totalorder %s16, 1
        %s173 = scalar_select %p172, %s16, 1
        %s174 = scalar_lea.vmem %s2, %s173
      $region28: #{_lambda_.17} parent=15 // pred_fallthru
        _
    $region16: #{_lambda_.17} parent=5 // pred_fallthru
      _
    %p175 = scmp.le.s32.totalorder 1, %s9
    %p176 = scmp.lt.s32.totalorder %s9, 3
    %p177 = pnand %p175, %p176
    %p178 = pneg %p177
    // Predicated region
    $region29: #{_lambda_.17} parent=5 // pred_check
      _
    $region30: #{_lambda_.17} parent=5 // pred_check_branch
      %180 = sbr.rel (%p177) target = $region32
    $region31: #{_lambda_.17} parent=5 // pred_region
      %s181 = ssub.s32 %s9, 1
      %s182 = smul.u32 2, %s19
      %p183 = scmp.lt.s32.totalorder %s18, 1
      %s184 = scalar_select %p183, %s18, 1
      %p185 = scmp.lt.s32.totalorder %s182, 1
      %s186 = scalar_select %p185, %s182, 1
      %s187 = smul.addr %s184, 2
      %s188 = sadd.s32 %s186, %s187
      %s189 = smul.addr %s188, 4
      %s190 = scalar_lea.vmem %s0, %s189
      %p191 = pneg %p49
      %p192 = pneg %p46
      %p193 = scmp.lt.s32.totalorder %s18, 1
      %s194 = scalar_select %p193, %s18, 1
      %s195 = smul.addr %s194, 4
      %s196 = smul.addr %s195, 4
      %s197 = scalar_lea.vmem %s1, %s196
      %p198 = pneg %p75
      %p199 = pneg %p72
      %p200 = scmp.lt.s32.totalorder %s18, 1
      %s201 = scalar_select %p200, %s18, 1
      %s202 = scalar_lea.vmem %s2, %s201
      %p203 = pneg %p101
      %p204 = pneg %p98
      %p205 = pneg %p129
      %p206 = pneg %p126
      %s207 = smul.u32 2, %s19
      %p208 = scmp.lt.s32.totalorder %s18, 1
      %s209 = scalar_select %p208, %s18, 1
      %p210 = scmp.lt.s32.totalorder %s207, 1
      %s211 = scalar_select %p210, %s207, 1
      %s212 = smul.addr %s209, 2
      %s213 = sadd.s32 %s211, %s212
      %s214 = smul.addr %s213, 4
      %s215 = scalar_lea.vmem %s3, %s214
      %s216 = smul.u32 2, %s19
      %p217 = scmp.lt.s32.totalorder %s18, 1
      %s218 = scalar_select %p217, %s18, 1
      %p219 = scmp.lt.s32.totalorder %s216, 1
      %s220 = scalar_select %p219, %s216, 1
      %s221 = smul.addr %s218, 2
      %s222 = sadd.s32 %s220, %s221
      %s223 = smul.addr %s222, 4
      %s224 = scalar_lea.vmem %s0, %s223
      %s225 = smul.u32 2, %s19
      %p226 = scmp.lt.s32.totalorder %s18, 1
      %s227 = scalar_select %p226, %s18, 1
      %s228 = smul.addr %s227, 4
      %s229 = smul.addr %s228, 4
      %s230 = scalar_lea.vmem %s1, %s229
      %p231 = scmp.lt.s32.totalorder %s18, 1
      %s232 = scalar_select %p231, %s18, 1
      %s233 = scalar_lea.vmem %s2, %s232
      %s234 = smul.u32 2, %s19
      %p235 = scmp.lt.s32.totalorder %s18, 1
      %s236 = scalar_select %p235, %s18, 1
      %p237 = scmp.lt.s32.totalorder %s234, 1
      %s238 = scalar_select %p237, %s234, 1
      %s239 = smul.addr %s236, 2
      %s240 = sadd.s32 %s238, %s239
      %s241 = smul.addr %s240, 4
      %s242 = scalar_lea.vmem %s3, %s241
      %s243 = smul.u32 2, %s19
      %v245 = vld [vmem:[%s224] sm:$0xf]
      %v246 = vld [vmem:[%s224 + $0x4] sm:$0xf]
      %v247 = vld [vmem:[%s230] sm:$0xf]
      %v248 = vld [vmem:[%s230 + $0x4] sm:$0xf]
      %v249 = vld [vmem:[%s230 + $0x8] sm:$0xf]
      %v250 = vld [vmem:[%s230 + $0xc] sm:$0xf]
      %v251 = vld [vmem:[%s233] sm:$0x1]
      %v253 = vperm.slane %v251, 0
      %v257 = vunpack.c.l.b16 %v245
      %v258 = vunpack.c.l.b16 %v246
      %v259 = vpack.c.b16 %v258, %v257
      %v264 = vunpack.c.l.b16 %v247
      %v265 = vunpack.c.l.b16 %v248
      %v266 = vunpack.c.l.b16 %v249
      %v267 = vunpack.c.l.b16 %v250
      %v268 = vpack.c.b16 %v265, %v264
      %v269 = vpack.c.b16 %v267, %v266
      %vm272 = vcmask 261120
      %v274 = vsel %vm272, %v259, 0
      %276 = vmatpush.bf16.msra.mxu0 0
      %277 = vmatpush.bf16.msra.mxu0 0
      %278 = vmatpush.bf16.msra.mxu0 0
      %279 = vmatpush.bf16.msra.mxu0 0
      %280 = vmatpush.bf16.msra.mxu0 0
      %281 = vmatpush.bf16.msra.mxu0 0
      %282 = vmatpush.bf16.msra.mxu0 %v269
      %283 = vmatpush.bf16.msra.mxu0 %v268
      %284 = vmatmul.bf16.gmra.mxu0 %v274
      %v285 = vpop.f32.mrf.mxu0
      %v286 = vadd.f32 %v253, %v285
      %v287 = vpop.f32.mrf.mxu0
      %v288 = vadd.f32 %v253, %v287
      %289 = vdwg.mxu0
      %v290 = vpack.c.bf16 %v286, %v286
      %v291 = vpack.c.bf16 %v288, %v288
      %vm292 = vcmask 781312
      %293 = vst.msk [vmem:[%s242] sm:$0xf] %vm292, %v290
      %294 = vst.msk [vmem:[%s242 + $0x4] sm:$0xf] %vm292, %v291
      %s295 = smul.u32 2, %s19
      %p296 = scmp.lt.s32.totalorder %s18, 1
      %s297 = scalar_select %p296, %s18, 1
      %p298 = scmp.lt.s32.totalorder %s295, 1
      %s299 = scalar_select %p298, %s295, 1
      %s300 = smul.addr %s297, 2
      %s301 = sadd.s32 %s299, %s300
      %s302 = smul.addr %s301, 4
      %s303 = scalar_lea.vmem %s3, %s302
      // Predicated region
      $region33: #{_lambda_.17} parent=31 // pred_check
        %p304 = pneg %p126
      $region34: #{_lambda_.17} parent=31 // pred_check_branch
        %306 = sbr.rel (%p304) target = $region36
      $region35: #{_lambda_.17} parent=31 // pred_region
        %s307 = smul.u32 2, %s19
      $region36: #{_lambda_.17} parent=31 // pred_fallthru
        _
    $region32: #{_lambda_.17} parent=5 // pred_fallthru
      _
    %p308 = scmp.le.s32.totalorder 2, %s9
    // Predicated region
    $region37: #{_lambda_.17} parent=5 // pred_check
      %p309 = pneg %p308
    $region38: #{_lambda_.17} parent=5 // pred_check_branch
      %311 = sbr.rel (%p309) target = $region40
    $region39: #{_lambda_.17} parent=5 // pred_region
      %s312 = ssub.s32 %s9, 2
      // Predicated region
      $region41: #{_lambda_.17} parent=39 // pred_check
        %p313 = pneg %p132
      $region42: #{_lambda_.17} parent=39 // pred_check_branch
        %315 = sbr.rel (%p313) target = $region44
      $region43: #{_lambda_.17} parent=39 // pred_region
        %s316 = smul.u32 2, %s21
        %p317 = scmp.lt.s32.totalorder %s20, 1
        %s318 = scalar_select %p317, %s20, 1
        %p319 = scmp.lt.s32.totalorder %s316, 1
        %s320 = scalar_select %p319, %s316, 1
        %s321 = smul.addr %s318, 2
        %s322 = sadd.s32 %s320, %s321
        %s323 = smul.addr %s322, 4
        %s324 = scalar_lea.vmem %s3, %s323
      $region44: #{_lambda_.17} parent=39 // pred_fallthru
        _
    $region40: #{_lambda_.17} parent=5 // pred_fallthru
      _
  $region6: #{_lambda_.17} parent=0 // loop_footer
    %s13 = sadd.s32 1, %s9
  $region7: #{_lambda_.17} parent=0 // loop_footer_branch
    %8 = sbr.rel target = $region3
  $region8: #{_lambda_.17} parent=0 // loop_exit
    _

// kernel: _lambda_.15
$region0: #{_lambda_.15}
  #allocation0 [shape = 'u32[]', space=smem, size = 0x4, offset = 0x4, fixed_abs, tag = 'smem constant byte address 0x4 - core index']
  #allocation1 [shape = 'u32[72,128]{1,0:T(1,128)}', space=vmem, size = 0x9000, scoped, tag = 'internal scratch']
  %s0 = inlined_call_operand.vmem [shape: bf16[2,16,32], index: 0, kind: input, shape index: {}]
  %s1 = inlined_call_operand.vmem [shape: bf16[2,32,64], index: 1, kind: input, shape index: {}]
  %s2 = inlined_call_operand.vmem [shape: f32[2,1,64], index: 2, kind: input, shape index: {}]
  %s3 = inlined_call_operand.vmem [shape: bf16[2,16,64], index: 3, kind: output, shape index: {}]
  %s4 = sld [smem:[#allocation0]]
  $region45: #{_lambda_.15} parent=0
    _
  %s6 = ssub.s32 1, %s4
  %s7 = scalar_select 0, %s6, %s4
  loop: start=0, step=1, limit=4
  $region2: #{_lambda_.15} parent=0 // loop_pre_header
    _
  $region3: #{_lambda_.15} parent=0 // loop_header
    %s9 = sphi 0, %s13
    %p10 = scmp.ge.s32.totalorder %s9, 4
    %s16 = sphi 0, %s28
    %s17 = sphi 0, %s24
    %s18 = sphi 0, %s16
    %s19 = sphi 0, %s17
    %s20 = sphi 0, %s18
    %s21 = sphi 0, %s19
    %s33 = sphi 0, %s35
    %s36 = sphi 0, %s33
    %s37 = sphi 0, %s36
    %s53 = sphi 0, %s37
    %s59 = sphi 0, %s61
    %s62 = sphi 0, %s59
    %s63 = sphi 0, %s62
    %s79 = sphi 0, %s63
    %s85 = sphi 0, %s87
    %s88 = sphi 0, %s85
    %s89 = sphi 0, %s88
    %s105 = sphi 0, %s89
    %s113 = sphi 0, %s115
    %s116 = sphi 0, %s113
    %s117 = sphi 0, %s116
    %s133 = sphi 0, %s117
  $region4: #{_lambda_.15} parent=0 // loop_header_branch
    %12 = sbr.rel (%p10) target = $region8
  $region5: #{_lambda_.15} parent=0 // loop_body
    %s14 = ssub.s32 %s9, 1
    %s15 = ssub.s32 %s9, 2
    %s22 = sadd.s32 1, %s17
    %p23 = scmp.ge.s32.totalorder %s22, 1
    %s24 = scalar_select %p23, 0, %s22
    %s25 = sadd.s32 1, %s16
    %s26 = scalar_select %p23, %s25, %s16
    %p27 = scmp.ge.s32.totalorder %s26, 2
    %s28 = scalar_select %p27, 0, %s26
    %s29 = ssub.s32 %s16, %s28
    %s30 = ssub.s32 %s17, %s24
    %s31 = sor.u32 %s29, %s30
    %p32 = scmp.eq.s32.totalorder %s31, 0
    %s34 = sadd.s32 %s33, 1
    %s35 = scalar_select %p32, %s33, %s34
    %p38 = pneg %p32
    %p39 = scmp.eq.s32.totalorder %s9, 1
    %p40 = por %p38, %p39
    %p41 = scmp.ne.s32.totalorder %s33, %s36
    %p42 = scmp.eq.s32.totalorder %s9, 0
    %p43 = por %p41, %p42
    %p44 = scmp.ne.s32.totalorder %s33, %s36
    %p45 = scmp.eq.s32.totalorder %s14, 1
    %p46 = por %p44, %p45
    %p47 = scmp.ne.s32.totalorder %s36, %s37
    %p48 = scmp.eq.s32.totalorder %s14, 0
    %p49 = por %p47, %p48
    %p50 = scmp.ne.s32.totalorder %s36, %s37
    %p51 = scmp.eq.s32.totalorder %s15, 1
    %p52 = por %p50, %p51
    %p54 = scmp.ne.s32.totalorder %s37, %s53
    %p55 = scmp.eq.s32.totalorder %s15, 0
    %p56 = por %p54, %p55
    %s57 = ssub.s32 %s16, %s28
    %p58 = scmp.eq.s32.totalorder %s57, 0
    %s60 = sadd.s32 %s59, 1
    %s61 = scalar_select %p58, %s59, %s60
    %p64 = pneg %p58
    %p65 = scmp.eq.s32.totalorder %s9, 1
    %p66 = por %p64, %p65
    %p67 = scmp.ne.s32.totalorder %s59, %s62
    %p68 = scmp.eq.s32.totalorder %s9, 0
    %p69 = por %p67, %p68
    %p70 = scmp.ne.s32.totalorder %s59, %s62
    %p71 = scmp.eq.s32.totalorder %s14, 1
    %p72 = por %p70, %p71
    %p73 = scmp.ne.s32.totalorder %s62, %s63
    %p74 = scmp.eq.s32.totalorder %s14, 0
    %p75 = por %p73, %p74
    %p76 = scmp.ne.s32.totalorder %s62, %s63
    %p77 = scmp.eq.s32.totalorder %s15, 1
    %p78 = por %p76, %p77
    %p80 = scmp.ne.s32.totalorder %s63, %s79
    %p81 = scmp.eq.s32.totalorder %s15, 0
    %p82 = por %p80, %p81
    %s83 = ssub.s32 %s16, %s28
    %p84 = scmp.eq.s32.totalorder %s83, 0
    %s86 = sadd.s32 %s85, 1
    %s87 = scalar_select %p84, %s85, %s86
    %p90 = pneg %p84
    %p91 = scmp.eq.s32.totalorder %s9, 1
    %p92 = por %p90, %p91
    %p93 = scmp.ne.s32.totalorder %s85, %s88
    %p94 = scmp.eq.s32.totalorder %s9, 0
    %p95 = por %p93, %p94
    %p96 = scmp.ne.s32.totalorder %s85, %s88
    %p97 = scmp.eq.s32.totalorder %s14, 1
    %p98 = por %p96, %p97
    %p99 = scmp.ne.s32.totalorder %s88, %s89
    %p100 = scmp.eq.s32.totalorder %s14, 0
    %p101 = por %p99, %p100
    %p102 = scmp.ne.s32.totalorder %s88, %s89
    %p103 = scmp.eq.s32.totalorder %s15, 1
    %p104 = por %p102, %p103
    %p106 = scmp.ne.s32.totalorder %s89, %s105
    %p107 = scmp.eq.s32.totalorder %s15, 0
    %p108 = por %p106, %p107
    %s109 = ssub.s32 %s16, %s28
    %s110 = ssub.s32 %s17, %s24
    %s111 = sor.u32 %s109, %s110
    %p112 = scmp.eq.s32.totalorder %s111, 0
    %s114 = sadd.s32 %s113, 1
    %s115 = scalar_select %p112, %s113, %s114
    %p118 = pneg %p112
    %p119 = scmp.eq.s32.totalorder %s9, 1
    %p120 = por %p118, %p119
    %p121 = scmp.ne.s32.totalorder %s113, %s116
    %p122 = scmp.eq.s32.totalorder %s9, 0
    %p123 = por %p121, %p122
    %p124 = scmp.ne.s32.totalorder %s113, %s116
    %p125 = scmp.eq.s32.totalorder %s14, 1
    %p126 = por %p124, %p125
    %p127 = scmp.ne.s32.totalorder %s116, %s117
    %p128 = scmp.eq.s32.totalorder %s14, 0
    %p129 = por %p127, %p128
    %p130 = scmp.ne.s32.totalorder %s116, %s117
    %p131 = scmp.eq.s32.totalorder %s15, 1
    %p132 = por %p130, %p131
    %p134 = scmp.ne.s32.totalorder %s117, %s133
    %p135 = scmp.eq.s32.totalorder %s15, 0
    %p136 = por %p134, %p135
    %p137 = scmp.le.s32.totalorder 1, %s9
    %p138 = scmp.lt.s32.totalorder %s9, 3
    %p139 = pnand %p137, %p138
    %p140 = pneg %p139
    // Predicated region
    $region9: #{_lambda_.15} parent=5 // pred_check
      _
    $region10: #{_lambda_.15} parent=5 // pred_check_branch
      %142 = sbr.rel (%p139) target = $region12
    $region11: #{_lambda_.15} parent=5 // pred_region
      %s143 = ssub.s32 %s9, 1
    $region12: #{_lambda_.15} parent=5 // pred_fallthru
      _
    %p144 = scmp.lt.s32.totalorder %s9, 2
    // Predicated region
    $region13: #{_lambda_.15} parent=5 // pred_check
      %p145 = pneg %p144
    $region14: #{_lambda_.15} parent=5 // pred_check_branch
      %147 = sbr.rel (%p145) target = $region16
    $region15: #{_lambda_.15} parent=5 // pred_region
      // Predicated region
      $region17: #{_lambda_.15} parent=15 // pred_check
        %p148 = pneg %p43
      $region18: #{_lambda_.15} parent=15 // pred_check_branch
        %150 = sbr.rel (%p148) target = $region20
      $region19: #{_lambda_.15} parent=15 // pred_region
        %s151 = smul.u32 2, %s17
        %p152 = scmp.lt.s32.totalorder %s16, 1
        %s153 = scalar_select %p152, %s16, 1
        %p154 = scmp.lt.s32.totalorder %s151, 1
        %s155 = scalar_select %p154, %s151, 1
        %s156 = smul.addr %s153, 2
        %s157 = sadd.s32 %s155, %s156
        %s158 = smul.addr %s157, 4
        %s159 = scalar_lea.vmem %s0, %s158
        %s160 = smul.u32 2, %s17
      $region20: #{_lambda_.15} parent=15 // pred_fallthru
        _
      // Predicated region
      $region21: #{_lambda_.15} parent=15 // pred_check
        %p161 = pneg %p69
      $region22: #{_lambda_.15} parent=15 // pred_check_branch
        %163 = sbr.rel (%p161) target = $region24
      $region23: #{_lambda_.15} parent=15 // pred_region
        %p164 = scmp.lt.s32.totalorder %s16, 1
        %s165 = scalar_select %p164, %s16, 1
        %s166 = smul.addr %s165, 4
        %s167 = smul.addr %s166, 4
        %s168 = scalar_lea.vmem %s1, %s167
      $region24: #{_lambda_.15} parent=15 // pred_fallthru
        _
      // Predicated region
      $region25: #{_lambda_.15} parent=15 // pred_check
        %p169 = pneg %p95
      $region26: #{_lambda_.15} parent=15 // pred_check_branch
        %171 = sbr.rel (%p169) target = $region28
      $region27: #{_lambda_.15} parent=15 // pred_region
        %p172 = scmp.lt.s32.totalorder %s16, 1
        %s173 = scalar_select %p172, %s16, 1
        %s174 = scalar_lea.vmem %s2, %s173
      $region28: #{_lambda_.15} parent=15 // pred_fallthru
        _
    $region16: #{_lambda_.15} parent=5 // pred_fallthru
      _
    %p175 = scmp.le.s32.totalorder 1, %s9
    %p176 = scmp.lt.s32.totalorder %s9, 3
    %p177 = pnand %p175, %p176
    %p178 = pneg %p177
    // Predicated region
    $region29: #{_lambda_.15} parent=5 // pred_check
      _
    $region30: #{_lambda_.15} parent=5 // pred_check_branch
      %180 = sbr.rel (%p177) target = $region32
    $region31: #{_lambda_.15} parent=5 // pred_region
      %s181 = ssub.s32 %s9, 1
      %s182 = smul.u32 2, %s19
      %p183 = scmp.lt.s32.totalorder %s18, 1
      %s184 = scalar_select %p183, %s18, 1
      %p185 = scmp.lt.s32.totalorder %s182, 1
      %s186 = scalar_select %p185, %s182, 1
      %s187 = smul.addr %s184, 2
      %s188 = sadd.s32 %s186, %s187
      %s189 = smul.addr %s188, 4
      %s190 = scalar_lea.vmem %s0, %s189
      %p191 = pneg %p49
      %p192 = pneg %p46
      %p193 = scmp.lt.s32.totalorder %s18, 1
      %s194 = scalar_select %p193, %s18, 1
      %s195 = smul.addr %s194, 4
      %s196 = smul.addr %s195, 4
      %s197 = scalar_lea.vmem %s1, %s196
      %p198 = pneg %p75
      %p199 = pneg %p72
      %p200 = scmp.lt.s32.totalorder %s18, 1
      %s201 = scalar_select %p200, %s18, 1
      %s202 = scalar_lea.vmem %s2, %s201
      %p203 = pneg %p101
      %p204 = pneg %p98
      %p205 = pneg %p129
      %p206 = pneg %p126
      %s207 = smul.u32 2, %s19
      %p208 = scmp.lt.s32.totalorder %s18, 1
      %s209 = scalar_select %p208, %s18, 1
      %p210 = scmp.lt.s32.totalorder %s207, 1
      %s211 = scalar_select %p210, %s207, 1
      %s212 = smul.addr %s209, 2
      %s213 = sadd.s32 %s211, %s212
      %s214 = smul.addr %s213, 4
      %s215 = scalar_lea.vmem %s3, %s214
      %s216 = smul.u32 2, %s19
      %p217 = scmp.lt.s32.totalorder %s18, 1
      %s218 = scalar_select %p217, %s18, 1
      %p219 = scmp.lt.s32.totalorder %s216, 1
      %s220 = scalar_select %p219, %s216, 1
      %s221 = smul.addr %s218, 2
      %s222 = sadd.s32 %s220, %s221
      %s223 = smul.addr %s222, 4
      %s224 = scalar_lea.vmem %s0, %s223
      %s225 = smul.u32 2, %s19
      %p226 = scmp.lt.s32.totalorder %s18, 1
      %s227 = scalar_select %p226, %s18, 1
      %s228 = smul.addr %s227, 4
      %s229 = smul.addr %s228, 4
      %s230 = scalar_lea.vmem %s1, %s229
      %p231 = scmp.lt.s32.totalorder %s18, 1
      %s232 = scalar_select %p231, %s18, 1
      %s233 = scalar_lea.vmem %s2, %s232
      %s234 = smul.u32 2, %s19
      %p235 = scmp.lt.s32.totalorder %s18, 1
      %s236 = scalar_select %p235, %s18, 1
      %p237 = scmp.lt.s32.totalorder %s234, 1
      %s238 = scalar_select %p237, %s234, 1
      %s239 = smul.addr %s236, 2
      %s240 = sadd.s32 %s238, %s239
      %s241 = smul.addr %s240, 4
      %s242 = scalar_lea.vmem %s3, %s241
      %s243 = smul.u32 2, %s19
      %v245 = vld [vmem:[%s224] sm:$0xf]
      %v246 = vld [vmem:[%s224 + $0x4] sm:$0xf]
      %v247 = vld [vmem:[%s230] sm:$0xf]
      %v248 = vld [vmem:[%s230 + $0x4] sm:$0xf]
      %v249 = vld [vmem:[%s230 + $0x8] sm:$0xf]
      %v250 = vld [vmem:[%s230 + $0xc] sm:$0xf]
      %v251 = vld [vmem:[%s233] sm:$0x1]
      %v253 = vperm.slane %v251, 0
      %v257 = vunpack.c.l.b16 %v245
      %v258 = vunpack.c.l.b16 %v246
      %v259 = vpack.c.b16 %v258, %v257
      %v264 = vunpack.c.l.b16 %v247
      %v265 = vunpack.c.l.b16 %v248
      %v266 = vunpack.c.l.b16 %v249
      %v267 = vunpack.c.l.b16 %v250
      %v268 = vpack.c.b16 %v265, %v264
      %v269 = vpack.c.b16 %v267, %v266
      %vm272 = vcmask 261120
      %v274 = vsel %vm272, %v259, 0
      %276 = vmatpush.bf16.msra.mxu0 0
      %277 = vmatpush.bf16.msra.mxu0 0
      %278 = vmatpush.bf16.msra.mxu0 0
      %279 = vmatpush.bf16.msra.mxu0 0
      %280 = vmatpush.bf16.msra.mxu0 0
      %281 = vmatpush.bf16.msra.mxu0 0
      %282 = vmatpush.bf16.msra.mxu0 %v269
      %283 = vmatpush.bf16.msra.mxu0 %v268
      %284 = vmatmul.bf16.gmra.mxu0 %v274
      %v285 = vpop.f32.mrf.mxu0
      %v286 = vadd.f32 %v253, %v285
      %v287 = vpop.f32.mrf.mxu0
      %v288 = vadd.f32 %v253, %v287
      %289 = vdwg.mxu0
      %v290 = vmul.f32 %v286, 0.5
      %v291 = vmul.f32 %v288, 0.5
      %v292 = vmul.f32 %v286, 0.044715
      %v293 = vmul.f32 %v288, 0.044715
      %v294 = vmul.f32 %v292, %v286
      %v295 = vmul.f32 %v293, %v288
      %v296 = vmul.f32 %v294, %v286
      %v297 = vmul.f32 %v295, %v288
      %v298 = vadd.f32 %v286, %v296
      %v299 = vadd.f32 %v288, %v297
      %v300 = vmul.f32 %v298, 0.7978846
      %v301 = vmul.f32 %v299, 0.7978846
      %v302 = vtanh.pop %v300
      %v303 = vtanh.pop %v301
      %v304 = vadd.f32 %v302, 1.0
      %v305 = vadd.f32 %v303, 1.0
      %v306 = vmul.f32 %v290, %v304
      %v307 = vmul.f32 %v291, %v305
      %v308 = vpack.c.bf16 %v306, %v306
      %v309 = vpack.c.bf16 %v307, %v307
      %vm310 = vcmask 519168
      %311 = vst.msk [vmem:[%s242] sm:$0xf] %vm310, %v308
      %312 = vst.msk [vmem:[%s242 + $0x4] sm:$0xf] %vm310, %v309
      %s313 = smul.u32 2, %s19
      %p314 = scmp.lt.s32.totalorder %s18, 1
      %s315 = scalar_select %p314, %s18, 1
      %p316 = scmp.lt.s32.totalorder %s313, 1
      %s317 = scalar_select %p316, %s313, 1
      %s318 = smul.addr %s315, 2
      %s319 = sadd.s32 %s317, %s318
      %s320 = smul.addr %s319, 4
      %s321 = scalar_lea.vmem %s3, %s320
      // Predicated region
      $region33: #{_lambda_.15} parent=31 // pred_check
        %p322 = pneg %p126
      $region34: #{_lambda_.15} parent=31 // pred_check_branch
        %324 = sbr.rel (%p322) target = $region36
      $region35: #{_lambda_.15} parent=31 // pred_region
        %s325 = smul.u32 2, %s19
      $region36: #{_lambda_.15} parent=31 // pred_fallthru
        _
    $region32: #{_lambda_.15} parent=5 // pred_fallthru
      _
    %p326 = scmp.le.s32.totalorder 2, %s9
    // Predicated region
    $region37: #{_lambda_.15} parent=5 // pred_check
      %p327 = pneg %p326
    $region38: #{_lambda_.15} parent=5 // pred_check_branch
      %329 = sbr.rel (%p327) target = $region40
    $region39: #{_lambda_.15} parent=5 // pred_region
      %s330 = ssub.s32 %s9, 2
      // Predicated region
      $region41: #{_lambda_.15} parent=39 // pred_check
        %p331 = pneg %p132
      $region42: #{_lambda_.15} parent=39 // pred_check_branch
        %333 = sbr.rel (%p331) target = $region44
      $region43: #{_lambda_.15} parent=39 // pred_region
        %s334 = smul.u32 2, %s21
        %p335 = scmp.lt.s32.totalorder %s20, 1
        %s336 = scalar_select %p335, %s20, 1
        %p337 = scmp.lt.s32.totalorder %s334, 1
        %s338 = scalar_select %p337, %s334, 1
        %s339 = smul.addr %s336, 2
        %s340 = sadd.s32 %s338, %s339
        %s341 = smul.addr %s340, 4
        %s342 = scalar_lea.vmem %s3, %s341
      $region44: #{_lambda_.15} parent=39 // pred_fallthru
        _
    $region40: #{_lambda_.15} parent=5 // pred_fallthru
      _
  $region6: #{_lambda_.15} parent=0 // loop_footer
    %s13 = sadd.s32 1, %s9
  $region7: #{_lambda_.15} parent=0 // loop_footer_branch
    %8 = sbr.rel target = $region3
  $region8: #{_lambda_.15} parent=0 // loop_exit
    _

// kernel: _lambda_.16
$region0: #{_lambda_.16}
  #allocation0 [shape = 'u32[]', space=smem, size = 0x4, offset = 0x4, fixed_abs, tag = 'smem constant byte address 0x4 - core index']
  #allocation1 [shape = 'u32[72,128]{1,0:T(1,128)}', space=vmem, size = 0x9000, scoped, tag = 'internal scratch']
  %s0 = inlined_call_operand.vmem [shape: bf16[2,16,64], index: 0, kind: input, shape index: {}]
  %s1 = inlined_call_operand.vmem [shape: bf16[2,64,32], index: 1, kind: input, shape index: {}]
  %s2 = inlined_call_operand.vmem [shape: f32[2,1,32], index: 2, kind: input, shape index: {}, may-alias: {2,5}]
  %s3 = inlined_call_operand.vmem [shape: bf16[2,16,32], index: 3, kind: input, shape index: {}]
  %s4 = inlined_call_operand.vmem [shape: f32[2,1,32], index: 4, kind: input, shape index: {}]
  %s5 = inlined_call_operand.vmem [shape: f32[2,1,32], index: 5, kind: input, shape index: {}, may-alias: {2,5}]
  %s6 = inlined_call_operand.vmem [shape: bf16[2,16,32], index: 6, kind: output, shape index: {}]
  %s7 = sld [smem:[#allocation0]]
  $region57: #{_lambda_.16} parent=0
    _
  %s9 = ssub.s32 1, %s7
  %s10 = scalar_select 0, %s9, %s7
  loop: start=0, step=1, limit=4
  $region2: #{_lambda_.16} parent=0 // loop_pre_header
    _
  $region3: #{_lambda_.16} parent=0 // loop_header
    %s12 = sphi 0, %s16
    %p13 = scmp.ge.s32.totalorder %s12, 4
    %s19 = sphi 0, %s31
    %s20 = sphi 0, %s27
    %s21 = sphi 0, %s19
    %s22 = sphi 0, %s20
    %s23 = sphi 0, %s21
    %s24 = sphi 0, %s22
    %s36 = sphi 0, %s38
    %s39 = sphi 0, %s36
    %s40 = sphi 0, %s39
    %s56 = sphi 0, %s40
    %s62 = sphi 0, %s64
    %s65 = sphi 0, %s62
    %s66 = sphi 0, %s65
    %s82 = sphi 0, %s66
    %s88 = sphi 0, %s90
    %s91 = sphi 0, %s88
    %s92 = sphi 0, %s91
    %s108 = sphi 0, %s92
    %s116 = sphi 0, %s118
    %s119 = sphi 0, %s116
    %s120 = sphi 0, %s119
    %s136 = sphi 0, %s120
    %s142 = sphi 0, %s144
    %s145 = sphi 0, %s142
    %s146 = sphi 0, %s145
    %s162 = sphi 0, %s146
    %s168 = sphi 0, %s170
    %s171 = sphi 0, %s168
    %s172 = sphi 0, %s171
    %s188 = sphi 0, %s172
    %s196 = sphi 0, %s198
    %s199 = sphi 0, %s196
    %s200 = sphi 0, %s199
    %s216 = sphi 0, %s200
  $region4: #{_lambda_.16} parent=0 // loop_header_branch
    %15 = sbr.rel (%p13) target = $region8
  $region5: #{_lambda_.16} parent=0 // loop_body
    %s17 = ssub.s32 %s12, 1
    %s18 = ssub.s32 %s12, 2
    %s25 = sadd.s32 1, %s20
    %p26 = scmp.ge.s32.totalorder %s25, 1
    %s27 = scalar_select %p26, 0, %s25
    %s28 = sadd.s32 1, %s19
    %s29 = scalar_select %p26, %s28, %s19
    %p30 = scmp.ge.s32.totalorder %s29, 2
    %s31 = scalar_select %p30, 0, %s29
    %s32 = ssub.s32 %s19, %s31
    %s33 = ssub.s32 %s20, %s27
    %s34 = sor.u32 %s32, %s33
    %p35 = scmp.eq.s32.totalorder %s34, 0
    %s37 = sadd.s32 %s36, 1
    %s38 = scalar_select %p35, %s36, %s37
    %p41 = pneg %p35
    %p42 = scmp.eq.s32.totalorder %s12, 1
    %p43 = por %p41, %p42
    %p44 = scmp.ne.s32.totalorder %s36, %s39
    %p45 = scmp.eq.s32.totalorder %s12, 0
    %p46 = por %p44, %p45
    %p47 = scmp.ne.s32.totalorder %s36, %s39
    %p48 = scmp.eq.s32.totalorder %s17, 1
    %p49 = por %p47, %p48
    %p50 = scmp.ne.s32.totalorder %s39, %s40
    %p51 = scmp.eq.s32.totalorder %s17, 0
    %p52 = por %p50, %p51
    %p53 = scmp.ne.s32.totalorder %s39, %s40
    %p54 = scmp.eq.s32.totalorder %s18, 1
    %p55 = por %p53, %p54
    %p57 = scmp.ne.s32.totalorder %s40, %s56
    %p58 = scmp.eq.s32.totalorder %s18, 0
    %p59 = por %p57, %p58
    %s60 = ssub.s32 %s19, %s31
    %p61 = scmp.eq.s32.totalorder %s60, 0
    %s63 = sadd.s32 %s62, 1
    %s64 = scalar_select %p61, %s62, %s63
    %p67 = pneg %p61
    %p68 = scmp.eq.s32.totalorder %s12, 1
    %p69 = por %p67, %p68
    %p70 = scmp.ne.s32.totalorder %s62, %s65
    %p71 = scmp.eq.s32.totalorder %s12, 0
    %p72 = por %p70, %p71
    %p73 = scmp.ne.s32.totalorder %s62, %s65
    %p74 = scmp.eq.s32.totalorder %s17, 1
    %p75 = por %p73, %p74
    %p76 = scmp.ne.s32.totalorder %s65, %s66
    %p77 = scmp.eq.s32.totalorder %s17, 0
    %p78 = por %p76, %p77
    %p79 = scmp.ne.s32.totalorder %s65, %s66
    %p80 = scmp.eq.s32.totalorder %s18, 1
    %p81 = por %p79, %p80
    %p83 = scmp.ne.s32.totalorder %s66, %s82
    %p84 = scmp.eq.s32.totalorder %s18, 0
    %p85 = por %p83, %p84
    %s86 = ssub.s32 %s19, %s31
    %p87 = scmp.eq.s32.totalorder %s86, 0
    %s89 = sadd.s32 %s88, 1
    %s90 = scalar_select %p87, %s88, %s89
    %p93 = pneg %p87
    %p94 = scmp.eq.s32.totalorder %s12, 1
    %p95 = por %p93, %p94
    %p96 = scmp.ne.s32.totalorder %s88, %s91
    %p97 = scmp.eq.s32.totalorder %s12, 0
    %p98 = por %p96, %p97
    %p99 = scmp.ne.s32.totalorder %s88, %s91
    %p100 = scmp.eq.s32.totalorder %s17, 1
    %p101 = por %p99, %p100
    %p102 = scmp.ne.s32.totalorder %s91, %s92
    %p103 = scmp.eq.s32.totalorder %s17, 0
    %p104 = por %p102, %p103
    %p105 = scmp.ne.s32.totalorder %s91, %s92
    %p106 = scmp.eq.s32.totalorder %s18, 1
    %p107 = por %p105, %p106
    %p109 = scmp.ne.s32.totalorder %s92, %s108
    %p110 = scmp.eq.s32.totalorder %s18, 0
    %p111 = por %p109, %p110
    %s112 = ssub.s32 %s19, %s31
    %s113 = ssub.s32 %s20, %s27
    %s114 = sor.u32 %s112, %s113
    %p115 = scmp.eq.s32.totalorder %s114, 0
    %s117 = sadd.s32 %s116, 1
    %s118 = scalar_select %p115, %s116, %s117
    %p121 = pneg %p115
    %p122 = scmp.eq.s32.totalorder %s12, 1
    %p123 = por %p121, %p122
    %p124 = scmp.ne.s32.totalorder %s116, %s119
    %p125 = scmp.eq.s32.totalorder %s12, 0
    %p126 = por %p124, %p125
    %p127 = scmp.ne.s32.totalorder %s116, %s119
    %p128 = scmp.eq.s32.totalorder %s17, 1
    %p129 = por %p127, %p128
    %p130 = scmp.ne.s32.totalorder %s119, %s120
    %p131 = scmp.eq.s32.totalorder %s17, 0
    %p132 = por %p130, %p131
    %p133 = scmp.ne.s32.totalorder %s119, %s120
    %p134 = scmp.eq.s32.totalorder %s18, 1
    %p135 = por %p133, %p134
    %p137 = scmp.ne.s32.totalorder %s120, %s136
    %p138 = scmp.eq.s32.totalorder %s18, 0
    %p139 = por %p137, %p138
    %s140 = ssub.s32 %s19, %s31
    %p141 = scmp.eq.s32.totalorder %s140, 0
    %s143 = sadd.s32 %s142, 1
    %s144 = scalar_select %p141, %s142, %s143
    %p147 = pneg %p141
    %p148 = scmp.eq.s32.totalorder %s12, 1
    %p149 = por %p147, %p148
    %p150 = scmp.ne.s32.totalorder %s142, %s145
    %p151 = scmp.eq.s32.totalorder %s12, 0
    %p152 = por %p150, %p151
    %p153 = scmp.ne.s32.totalorder %s142, %s145
    %p154 = scmp.eq.s32.totalorder %s17, 1
    %p155 = por %p153, %p154
    %p156 = scmp.ne.s32.totalorder %s145, %s146
    %p157 = scmp.eq.s32.totalorder %s17, 0
    %p158 = por %p156, %p157
    %p159 = scmp.ne.s32.totalorder %s145, %s146
    %p160 = scmp.eq.s32.totalorder %s18, 1
    %p161 = por %p159, %p160
    %p163 = scmp.ne.s32.totalorder %s146, %s162
    %p164 = scmp.eq.s32.totalorder %s18, 0
    %p165 = por %p163, %p164
    %s166 = ssub.s32 %s19, %s31
    %p167 = scmp.eq.s32.totalorder %s166, 0
    %s169 = sadd.s32 %s168, 1
    %s170 = scalar_select %p167, %s168, %s169
    %p173 = pneg %p167
    %p174 = scmp.eq.s32.totalorder %s12, 1
    %p175 = por %p173, %p174
    %p176 = scmp.ne.s32.totalorder %s168, %s171
    %p177 = scmp.eq.s32.totalorder %s12, 0
    %p178 = por %p176, %p177
    %p179 = scmp.ne.s32.totalorder %s168, %s171
    %p180 = scmp.eq.s32.totalorder %s17, 1
    %p181 = por %p179, %p180
    %p182 = scmp.ne.s32.totalorder %s171, %s172
    %p183 = scmp.eq.s32.totalorder %s17, 0
    %p184 = por %p182, %p183
    %p185 = scmp.ne.s32.totalorder %s171, %s172
    %p186 = scmp.eq.s32.totalorder %s18, 1
    %p187 = por %p185, %p186
    %p189 = scmp.ne.s32.totalorder %s172, %s188
    %p190 = scmp.eq.s32.totalorder %s18, 0
    %p191 = por %p189, %p190
    %s192 = ssub.s32 %s19, %s31
    %s193 = ssub.s32 %s20, %s27
    %s194 = sor.u32 %s192, %s193
    %p195 = scmp.eq.s32.totalorder %s194, 0
    %s197 = sadd.s32 %s196, 1
    %s198 = scalar_select %p195, %s196, %s197
    %p201 = pneg %p195
    %p202 = scmp.eq.s32.totalorder %s12, 1
    %p203 = por %p201, %p202
    %p204 = scmp.ne.s32.totalorder %s196, %s199
    %p205 = scmp.eq.s32.totalorder %s12, 0
    %p206 = por %p204, %p205
    %p207 = scmp.ne.s32.totalorder %s196, %s199
    %p208 = scmp.eq.s32.totalorder %s17, 1
    %p209 = por %p207, %p208
    %p210 = scmp.ne.s32.totalorder %s199, %s200
    %p211 = scmp.eq.s32.totalorder %s17, 0
    %p212 = por %p210, %p211
    %p213 = scmp.ne.s32.totalorder %s199, %s200
    %p214 = scmp.eq.s32.totalorder %s18, 1
    %p215 = por %p213, %p214
    %p217 = scmp.ne.s32.totalorder %s200, %s216
    %p218 = scmp.eq.s32.totalorder %s18, 0
    %p219 = por %p217, %p218
    %p220 = scmp.le.s32.totalorder 1, %s12
    %p221 = scmp.lt.s32.totalorder %s12, 3
    %p222 = pnand %p220, %p221
    %p223 = pneg %p222
    // Predicated region
    $region9: #{_lambda_.16} parent=5 // pred_check
      _
    $region10: #{_lambda_.16} parent=5 // pred_check_branch
      %225 = sbr.rel (%p222) target = $region12
    $region11: #{_lambda_.16} parent=5 // pred_region
      %s226 = ssub.s32 %s12, 1
    $region12: #{_lambda_.16} parent=5 // pred_fallthru
      _
    %p227 = scmp.lt.s32.totalorder %s12, 2
    // Predicated region
    $region13: #{_lambda_.16} parent=5 // pred_check
      %p228 = pneg %p227
    $region14: #{_lambda_.16} parent=5 // pred_check_branch
      %230 = sbr.rel (%p228) target = $region16
    $region15: #{_lambda_.16} parent=5 // pred_region
      // Predicated region
      $region17: #{_lambda_.16} parent=15 // pred_check
        %p231 = pneg %p46
      $region18: #{_lambda_.16} parent=15 // pred_check_branch
        %233 = sbr.rel (%p231) target = $region20
      $region19: #{_lambda_.16} parent=15 // pred_region
        %s234 = smul.u32 2, %s20
        %p235 = scmp.lt.s32.totalorder %s19, 1
        %s236 = scalar_select %p235, %s19, 1
        %p237 = scmp.lt.s32.totalorder %s234, 1
        %s238 = scalar_select %p237, %s234, 1
        %s239 = smul.addr %s236, 2
        %s240 = sadd.s32 %s238, %s239
        %s241 = smul.addr %s240, 4
        %s242 = scalar_lea.vmem %s0, %s241
        %s243 = smul.u32 2, %s20
      $region20: #{_lambda_.16} parent=15 // pred_fallthru
        _
      // Predicated region
      $region21: #{_lambda_.16} parent=15 // pred_check
        %p244 = pneg %p72
      $region22: #{_lambda_.16} parent=15 // pred_check_branch
        %246 = sbr.rel (%p244) target = $region24
      $region23: #{_lambda_.16} parent=15 // pred_region
        %p247 = scmp.lt.s32.totalorder %s19, 1
        %s248 = scalar_select %p247, %s19, 1
        %s249 = smul.addr %s248, 8
        %s250 = smul.addr %s249, 4
        %s251 = scalar_lea.vmem %s1, %s250
      $region24: #{_lambda_.16} parent=15 // pred_fallthru
        _
      // Predicated region
      $region25: #{_lambda_.16} parent=15 // pred_check
        %p252 = pneg %p98
      $region26: #{_lambda_.16} parent=15 // pred_check_branch
        %254 = sbr.rel (%p252) target = $region28
      $region27: #{_lambda_.16} parent=15 // pred_region
        %p255 = scmp.lt.s32.totalorder %s19, 1
        %s256 = scalar_select %p255, %s19, 1
        %s257 = scalar_lea.vmem %s2, %s256
      $region28: #{_lambda_.16} parent=15 // pred_fallthru
        _
      // Predicated region
      $region29: #{_lambda_.16} parent=15 // pred_check
        %p258 = pneg %p126
      $region30: #{_lambda_.16} parent=15 // pred_check_branch
        %260 = sbr.rel (%p258) target = $region32
      $region31: #{_lambda_.16} parent=15 // pred_region
        %s261 = smul.u32 2, %s20
        %p262 = scmp.lt.s32.totalorder %s19, 1
        %s263 = scalar_select %p262, %s19, 1
        %p264 = scmp.lt.s32.totalorder %s261, 1
        %s265 = scalar_select %p264, %s261, 1
        %s266 = smul.addr %s263, 2
        %s267 = sadd.s32 %s265, %s266
        %s268 = smul.addr %s267, 4
        %s269 = scalar_lea.vmem %s3, %s268
        %s270 = smul.u32 2, %s20
      $region32: #{_lambda_.16} parent=15 // pred_fallthru
        _
      // Predicated region
      $region33: #{_lambda_.16} parent=15 // pred_check
        %p271 = pneg %p152
      $region34: #{_lambda_.16} parent=15 // pred_check_branch
        %273 = sbr.rel (%p271) target = $region36
      $region35: #{_lambda_.16} parent=15 // pred_region
        %p274 = scmp.lt.s32.totalorder %s19, 1
        %s275 = scalar_select %p274, %s19, 1
        %s276 = scalar_lea.vmem %s4, %s275
      $region36: #{_lambda_.16} parent=15 // pred_fallthru
        _
      // Predicated region
      $region37: #{_lambda_.16} parent=15 // pred_check
        %p277 = pneg %p178
      $region38: #{_lambda_.16} parent=15 // pred_check_branch
        %279 = sbr.rel (%p277) target = $region40
      $region39: #{_lambda_.16} parent=15 // pred_region
        %p280 = scmp.lt.s32.totalorder %s19, 1
        %s281 = scalar_select %p280, %s19, 1
        %s282 = scalar_lea.vmem %s5, %s281
      $region40: #{_lambda_.16} parent=15 // pred_fallthru
        _
    $region16: #{_lambda_.16} parent=5 // pred_fallthru
      _
    %p283 = scmp.le.s32.totalorder 1, %s12
    %p284 = scmp.lt.s32.totalorder %s12, 3
    %p285 = pnand %p283, %p284
    %p286 = pneg %p285
    // Predicated region
    $region41: #{_lambda_.16} parent=5 // pred_check
      _
    $region42: #{_lambda_.16} parent=5 // pred_check_branch
      %288 = sbr.rel (%p285) target = $region44
    $region43: #{_lambda_.16} parent=5 // pred_region
      %s289 = ssub.s32 %s12, 1
      %s290 = smul.u32 2, %s22
      %p291 = scmp.lt.s32.totalorder %s21, 1
      %s292 = scalar_select %p291, %s21, 1
      %p293 = scmp.lt.s32.totalorder %s290, 1
      %s294 = scalar_select %p293, %s290, 1
      %s295 = smul.addr %s292, 2
      %s296 = sadd.s32 %s294, %s295
      %s297 = smul.addr %s296, 4
      %s298 = scalar_lea.vmem %s0, %s297
      %p299 = pneg %p52
      %p300 = pneg %p49
      %p301 = scmp.lt.s32.totalorder %s21, 1
      %s302 = scalar_select %p301, %s21, 1
      %s303 = smul.addr %s302, 8
      %s304 = smul.addr %s303, 4
      %s305 = scalar_lea.vmem %s1, %s304
      %p306 = pneg %p78
      %p307 = pneg %p75
      %p308 = scmp.lt.s32.totalorder %s21, 1
      %s309 = scalar_select %p308, %s21, 1
      %s310 = scalar_lea.vmem %s2, %s309
      %p311 = pneg %p104
      %p312 = pneg %p101
      %s313 = smul.u32 2, %s22
      %p314 = scmp.lt.s32.totalorder %s21, 1
      %s315 = scalar_select %p314, %s21, 1
      %p316 = scmp.lt.s32.totalorder %s313, 1
      %s317 = scalar_select %p316, %s313, 1
      %s318 = smul.addr %s315, 2
      %s319 = sadd.s32 %s317, %s318
      %s320 = smul.addr %s319, 4
      %s321 = scalar_lea.vmem %s3, %s320
      %p322 = pneg %p132
      %p323 = pneg %p129
      %p324 = scmp.lt.s32.totalorder %s21, 1
      %s325 = scalar_select %p324, %s21, 1
      %s326 = scalar_lea.vmem %s4, %s325
      %p327 = pneg %p158
      %p328 = pneg %p155
      %p329 = scmp.lt.s32.totalorder %s21, 1
      %s330 = scalar_select %p329, %s21, 1
      %s331 = scalar_lea.vmem %s5, %s330
      %p332 = pneg %p184
      %p333 = pneg %p181
      %p334 = pneg %p212
      %p335 = pneg %p209
      %s336 = smul.u32 2, %s22
      %p337 = scmp.lt.s32.totalorder %s21, 1
      %s338 = scalar_select %p337, %s21, 1
      %p339 = scmp.lt.s32.totalorder %s336, 1
      %s340 = scalar_select %p339, %s336, 1
      %s341 = smul.addr %s338, 2
      %s342 = sadd.s32 %s340, %s341
      %s343 = smul.addr %s342, 4
      %s344 = scalar_lea.vmem %s6, %s343
      %s345 = smul.u32 2, %s22
      %p346 = scmp.lt.s32.totalorder %s21, 1
      %s347 = scalar_select %p346, %s21, 1
      %p348 = scmp.lt.s32.totalorder %s345, 1
      %s349 = scalar_select %p348, %s345, 1
      %s350 = smul.addr %s347, 2
      %s351 = sadd.s32 %s349, %s350
      %s352 = smul.addr %s351, 4
      %s353 = scalar_lea.vmem %s0, %s352
      %s354 = smul.u32 2, %s22
      %p355 = scmp.lt.s32.totalorder %s21, 1
      %s356 = scalar_select %p355, %s21, 1
      %s357 = smul.addr %s356, 8
      %s358 = smul.addr %s357, 4
      %s359 = scalar_lea.vmem %s1, %s358
      %p360 = scmp.lt.s32.totalorder %s21, 1
      %s361 = scalar_select %p360, %s21, 1
      %s362 = scalar_lea.vmem %s2, %s361
      %s363 = smul.u32 2, %s22
      %p364 = scmp.lt.s32.totalorder %s21, 1
      %s365 = scalar_select %p364, %s21, 1
      %p366 = scmp.lt.s32.totalorder %s363, 1
      %s367 = scalar_select %p366, %s363, 1
      %s368 = smul.addr %s365, 2
      %s369 = sadd.s32 %s367, %s368
      %s370 = smul.addr %s369, 4
      %s371 = scalar_lea.vmem %s3, %s370
      %s372 = smul.u32 2, %s22
      %p373 = scmp.lt.s32.totalorder %s21, 1
      %s374 = scalar_select %p373, %s21, 1
      %s375 = scalar_lea.vmem %s4, %s374
      %p376 = scmp.lt.s32.totalorder %s21, 1
      %s377 = scalar_select %p376, %s21, 1
      %s378 = scalar_lea.vmem %s5, %s377
      %s379 = smul.u32 2, %s22
      %p380 = scmp.lt.s32.totalorder %s21, 1
      %s381 = scalar_select %p380, %s21, 1
      %p382 = scmp.lt.s32.totalorder %s379, 1
      %s383 = scalar_select %p382, %s379, 1
      %s384 = smul.addr %s381, 2
      %s385 = sadd.s32 %s383, %s384
      %s386 = smul.addr %s385, 4
      %s387 = scalar_lea.vmem %s6, %s386
      %s388 = smul.u32 2, %s22
      %v390 = vld [vmem:[%s353] sm:$0xf]
      %v391 = vld [vmem:[%s353 + $0x4] sm:$0xf]
      %v392 = vld [vmem:[%s359] sm:$0xf]
      %v393 = vld [vmem:[%s359 + $0x4] sm:$0xf]
      %v394 = vld [vmem:[%s359 + $0x8] sm:$0xf]
      %v395 = vld [vmem:[%s359 + $0xc] sm:$0xf]
      %v396 = vld [vmem:[%s359 + $0x10] sm:$0xf]
      %v397 = vld [vmem:[%s359 + $0x14] sm:$0xf]
      %v398 = vld [vmem:[%s359 + $0x18] sm:$0xf]
      %v399 = vld [vmem:[%s359 + $0x1c] sm:$0xf]
      %v400 = vld [vmem:[%s362] sm:$0x1]
      %v402 = vperm.slane %v400, 0
      %v406 = vunpack.c.l.b16 %v390
      %v407 = vunpack.c.l.b16 %v391
      %v408 = vpack.c.b16 %v407, %v406
      %v417 = vunpack.c.l.b16 %v392
      %v418 = vunpack.c.l.b16 %v393
      %v419 = vunpack.c.l.b16 %v394
      %v420 = vunpack.c.l.b16 %v395
      %v421 = vunpack.c.l.b16 %v396
      %v422 = vunpack.c.l.b16 %v397
      %v423 = vunpack.c.l.b16 %v398
      %v424 = vunpack.c.l.b16 %v399
      %v425 = vpack.c.b16 %v418, %v417
      %v426 = vpack.c.b16 %v420, %v419
      %v427 = vpack.c.b16 %v422, %v421
      %v428 = vpack.c.b16 %v424, %v423
      %vm433 = vcmask 523264
      %v435 = vsel %vm433, %v408, 0
      %437 = vmatpush.bf16.msra.mxu0 0
      %438 = vmatpush.bf16.msra.mxu0 0
      %439 = vmatpush.bf16.msra.mxu0 0
      %440 = vmatpush.bf16.msra.mxu0 0
      %441 = vmatpush.bf16.msra.mxu0 %v428
      %442 = vmatpush.bf16.msra.mxu0 %v427
      %443 = vmatpush.bf16.msra.mxu0 %v426
      %444 = vmatpush.bf16.msra.mxu0 %v425
      %445 = vmatmul.bf16.gmra.mxu0 %v435
      %v446 = vpop.f32.mrf.mxu0
      %v447 = vadd.f32 %v402, %v446
      %v448 = vpop.f32.mrf.mxu0
      %v449 = vadd.f32 %v402, %v448
      %450 = vdwg.mxu0
      %v451 = vld [vmem:[%s371] sm:$0xf]
      %v452 = vld [vmem:[%s371 + $0x4] sm:$0xf]
      %v453 = vunpack.c.l.bf16 %v451
      %v454 = vunpack.c.l.bf16 %v452
      %v455 = vadd.f32 %v447, %v453
      %v456 = vadd.f32 %v449, %v454
      %vm457 = vcmask 261120
      %v458 = vsel %vm457, %v455, 0.0
      %459 = vadd.xlane.f32.xlu0 %v458
      %v460 = vpop.xlane.xlu0 %459
      %v461 = vsel %vm457, %v456, 0.0
      %462 = vadd.xlane.f32.xlu0 %v461
      %v463 = vpop.xlane.xlu0 %462
      %v464 = vrcp.pop 32.0
      %v465 = vmul.f32 32.0, %v464
      %v466 = vsub.f32 1.0, %v465
      %v467 = vmul.f32 %v464, %v466
      %v468 = vadd.f32 %v464, %v467
      %vm469 = vweird.f32 %v464
      %v470 = vsel %vm469, %v464, %v468
      %v471 = vmul.f32 %v460, %v470
      %v472 = vmul.f32 %v463, %v470
      %v473 = vsub.f32 %v455, %v471
      %v474 = vsub.f32 %v456, %v472
      %v475 = vmul.f32 %v473, %v473
      %v476 = vmul.f32 %v474, %v474
      %v477 = vsel %vm457, %v475, 0.0
      %478 = vadd.xlane.f32.xlu0 %v477
      %v479 = vpop.xlane.xlu0 %478
      %v480 = vsel %vm457, %v476, 0.0
      %481 = vadd.xlane.f32.xlu0 %v480
      %v482 = vpop.xlane.xlu0 %481
      %v483 = vmul.f32 %v479, %v470
      %v484 = vmul.f32 %v482, %v470
      %v485 = vadd.f32 %v483, 1e-12
      %v486 = vadd.f32 %v484, 1e-12
      %v487 = vrsqrt.pop %v485
      %v488 = vmul.f32 %v487, %v485
      %v489 = vmul.f32 %v488, %v487
      %v490 = vmul.f32 0.5, %v489
      %v491 = vsub.f32 1.5, %v490
      %v492 = vmul.f32 %v487, %v491
      %vm493 = vweird.f32 %v485
      %vm494 = vweird.f32 %v487
      %vm495 = vmor %vm493, %vm494
      %v496 = vsel %vm495, %v487, %v492
      %v497 = vrsqrt.pop %v486
      %v498 = vmul.f32 %v497, %v486
      %v499 = vmul.f32 %v498, %v497
      %v500 = vmul.f32 0.5, %v499
      %v501 = vsub.f32 1.5, %v500
      %v502 = vmul.f32 %v497, %v501
      %vm503 = vweird.f32 %v486
      %vm504 = vweird.f32 %v497
      %vm505 = vmor %vm503, %vm504
      %v506 = vsel %vm505, %v497, %v502
      %v507 = vmul.f32 %v473, %v496
      %v508 = vmul.f32 %v474, %v506
      %v509 = vld [vmem:[%s375] sm:$0x1]
      %v511 = vperm.slane %v509, 0
      %v513 = vmul.f32 %v507, %v511
      %v514 = vmul.f32 %v508, %v511
      %v515 = vld [vmem:[%s378] sm:$0x1]
      %v517 = vperm.slane %v515, 0
      %v519 = vadd.f32 %v513, %v517
      %v520 = vadd.f32 %v514, %v517
      %v521 = vpack.c.bf16 %v519, %v519
      %v522 = vpack.c.bf16 %v520, %v520
      %vm523 = vcmask 257024
      %524 = vst.msk [vmem:[%s387] sm:$0xf] %vm523, %v521
      %525 = vst.msk [vmem:[%s387 + $0x4] sm:$0xf] %vm523, %v522
      %s526 = smul.u32 2, %s22
      %p527 = scmp.lt.s32.totalorder %s21, 1
      %s528 = scalar_select %p527, %s21, 1
      %p529 = scmp.lt.s32.totalorder %s526, 1
      %s530 = scalar_select %p529, %s526, 1
      %s531 = smul.addr %s528, 2
      %s532 = sadd.s32 %s530, %s531
      %s533 = smul.addr %s532, 4
      %s534 = scalar_lea.vmem %s6, %s533
      // Predicated region
      $region45: #{_lambda_.16} parent=43 // pred_check
        %p535 = pneg %p209
      $region46: #{_lambda_.16} parent=43 // pred_check_branch
        %537 = sbr.rel (%p535) target = $region48
      $region47: #{_lambda_.16} parent=43 // pred_region
        %s538 = smul.u32 2, %s22
      $region48: #{_lambda_.16} parent=43 // pred_fallthru
        _
    $region44: #{_lambda_.16} parent=5 // pred_fallthru
      _
    %p539 = scmp.le.s32.totalorder 2, %s12
    // Predicated region
    $region49: #{_lambda_.16} parent=5 // pred_check
      %p540 = pneg %p539
    $region50: #{_lambda_.16} parent=5 // pred_check_branch
      %542 = sbr.rel (%p540) target = $region52
    $region51: #{_lambda_.16} parent=5 // pred_region
      %s543 = ssub.s32 %s12, 2
      // Predicated region
      $region53: #{_lambda_.16} parent=51 // pred_check
        %p544 = pneg %p215
      $region54: #{_lambda_.16} parent=51 // pred_check_branch
        %546 = sbr.rel (%p544) target = $region56
      $region55: #{_lambda_.16} parent=51 // pred_region
        %s547 = smul.u32 2, %s24
        %p548 = scmp.lt.s32.totalorder %s23, 1
        %s549 = scalar_select %p548, %s23, 1
        %p550 = scmp.lt.s32.totalorder %s547, 1
        %s551 = scalar_select %p550, %s547, 1
        %s552 = smul.addr %s549, 2
        %s553 = sadd.s32 %s551, %s552
        %s554 = smul.addr %s553, 4
        %s555 = scalar_lea.vmem %s6, %s554
      $region56: #{_lambda_.16} parent=51 // pred_fallthru
        _
    $region52: #{_lambda_.16} parent=5 // pred_fallthru
      _
  $region6: #{_lambda_.16} parent=0 // loop_footer
    %s16 = sadd.s32 1, %s12
  $region7: #{_lambda_.16} parent=0 // loop_footer_branch
    %11 = sbr.rel target = $region3
  $region8: #{_lambda_.16} parent=0 // loop_exit
    _

</llo_original>
